<compile_context>
chip_gen: v6e
topology: v6e:2x2x1
jax: 0.10.0
libtpu: 0.0.40
codegen_flags: <defaults>
</compile_context>

<pallas_src>
import functools

import jax
import jax.numpy as jnp
from jax import lax
from jax.experimental import pallas as pl
from jax.experimental.pallas import tpu as pltpu


# --------------------------------- kernel ---------------------------------

def mha_kernel(q_ref, k_ref, v_ref,
               wq_ref, bq_ref, wk_ref, bk_ref, wv_ref, bv_ref,
               wo_ref, bo_ref, o_ref, *, heads, d_k):
    # blocks are (1, S, D); activations arrive in bf16, weights in bf16,
    # biases in f32.
    xq = q_ref[0]                                     # (S, D) bf16
    xk = k_ref[0]
    xv = v_ref[0]

    # Fused full-width QKV projections: (S, D) @ (D, D), f32 accumulation.
    q = jnp.dot(xq, wq_ref[...], preferred_element_type=jnp.float32) + bq_ref[...]
    k = jnp.dot(xk, wk_ref[...], preferred_element_type=jnp.float32) + bk_ref[...]
    v = jnp.dot(xv, wv_ref[...], preferred_element_type=jnp.float32) + bv_ref[...]

    # Fold the 1/sqrt(d_k) score scaling into Q before the score matmul.
    scale = float(d_k) ** -0.5
    q_b = (q * scale).astype(jnp.bfloat16)
    k_b = k.astype(jnp.bfloat16)
    v_b = v.astype(jnp.bfloat16)

    head_outs = []
    for h in range(heads):                            # static loop, static slices
        sl = slice(h * d_k, (h + 1) * d_k)
        qh = q_b[:, sl]                               # (S, d_k)
        kh = k_b[:, sl]
        vh = v_b[:, sl]

        s = lax.dot_general(qh, kh, (((1,), (1,)), ((), ())),
                            preferred_element_type=jnp.float32)        # (S, S)
        s = s - jnp.max(s, axis=-1, keepdims=True)
        p = jnp.exp(s)
        denom = jnp.sum(p, axis=-1, keepdims=True)
        p = p * pl.reciprocal(denom, approx=True)     # divide on the EUP slot

        head_outs.append(jnp.dot(p.astype(jnp.bfloat16), vh,
                                 preferred_element_type=jnp.float32))  # (S, d_k)

    # concat heads along the lane axis, then ONE full-width out projection.
    concat = jnp.concatenate(head_outs, axis=-1).astype(jnp.bfloat16)  # (S, D)
    out = jnp.dot(concat, wo_ref[...], preferred_element_type=jnp.float32) + bo_ref[...]
    o_ref[0] = out.astype(o_ref.dtype)


# --------------------------------- wrapper ---------------------------------

def _const_spec(a):
    return pl.BlockSpec(a.shape, lambda *_, _n=a.ndim: (0,) * _n)


def multi_head_attention(q, k, v, params, heads):
    """q, k, v: (B, S, D) float32.  params: PyTorch-layout Linear weights.

    Returns (B, S, D) float32, matching MultiHeadAttention.forward (eval mode,
    mask=None)."""
    B, S, D = q.shape
    assert k.shape == (B, S, D) and v.shape == (B, S, D)
    assert D % heads == 0
    d_k = D // heads

    # PyTorch nn.Linear stores weight as (out_features, in_features); transpose
    # to math orientation (in, out) and cast to bf16 once.
    def prep_w(name):
        return jnp.asarray(params[name]).T.astype(jnp.bfloat16)

    def prep_b(name):
        return jnp.asarray(params[name]).reshape(1, D).astype(jnp.float32)

    wq, wk, wv, wo = prep_w("q_w"), prep_w("k_w"), prep_w("v_w"), prep_w("o_w")
    bq, bk, bv, bo = prep_b("q_b"), prep_b("k_b"), prep_b("v_b"), prep_b("o_b")

    # bf16 activations at the pallas_call boundary: half the input DMA bytes.
    qb = q.astype(jnp.bfloat16)
    kb = k.astype(jnp.bfloat16)
    vb = v.astype(jnp.bfloat16)

    kernel = functools.partial(mha_kernel, heads=heads, d_k=d_k)
    seq_spec = pl.BlockSpec((1, S, D), lambda b: (b, 0, 0))

    out = pl.pallas_call(
        kernel,
        out_shape=jax.ShapeDtypeStruct((B, S, D), jnp.float32),
        grid=(B,),
        in_specs=[seq_spec, seq_spec, seq_spec,
                  _const_spec(wq), _const_spec(bq),
                  _const_spec(wk), _const_spec(bk),
                  _const_spec(wv), _const_spec(bv),
                  _const_spec(wo), _const_spec(bo)],
        out_specs=pl.BlockSpec((1, S, D), lambda b: (b, 0, 0)),
        compiler_params=pltpu.CompilerParams(dimension_semantics=("parallel",)),
    )(qb, kb, vb, wq, bq, wk, bk, wv, bv, wo, bo)
    return out


# ------------------------- pure-JAX f32 reference --------------------------

def mha_reference(q, k, v, params, heads):
    B, S, D = q.shape
    d_k = D // heads

    def lin(x, wn, bn):
        return x @ params[wn].T + params[bn]          # torch Linear semantics

    Q = lin(q, "q_w", "q_b").reshape(B, S, heads, d_k).transpose(0, 2, 1, 3)
    K = lin(k, "k_w", "k_b").reshape(B, S, heads, d_k).transpose(0, 2, 1, 3)
    V = lin(v, "v_w", "v_b").reshape(B, S, heads, d_k).transpose(0, 2, 1, 3)
    s = jnp.einsum("bhqd,bhkd->bhqk", Q, K) / jnp.sqrt(jnp.float32(d_k))
    p = jax.nn.softmax(s, axis=-1)
    o = jnp.einsum("bhqk,bhkd->bhqd", p, V)
    concat = o.transpose(0, 2, 1, 3).reshape(B, S, D)
    return concat @ params["o_w"].T + params["o_b"]


# ------------------------ deterministic parameters -------------------------

def init_params(key, d_model, scale=0.05):
    ks = jax.random.split(key, 8)

    def w(k, shape):
        return scale * jax.random.normal(k, shape, jnp.float32)

    # PyTorch layout: Linear.weight is (out_features, in_features), bias (out,)
    return {
        "q_w": w(ks[0], (d_model, d_model)), "q_b": w(ks[1], (d_model,)),
        "k_w": w(ks[2], (d_model, d_model)), "k_b": w(ks[3], (d_model,)),
        "v_w": w(ks[4], (d_model, d_model)), "v_b": w(ks[5], (d_model,)),
        "o_w": w(ks[6], (d_model, d_model)), "o_b": w(ks[7], (d_model,)),
    }


if __name__ == "__main__":
    key = jax.random.PRNGKey(0)
    kq, kk, kv, kp = jax.random.split(key, 4)

    B, S, D, HEADS = 2, 128, 128, 4       # d_model=128, 4 heads -> d_k=32
    q = jax.random.normal(kq, (B, S, D), jnp.float32)
    k = jax.random.normal(kk, (B, S, D), jnp.float32)
    v = jax.random.normal(kv, (B, S, D), jnp.float32)
    params = init_params(kp, D)

    out = multi_head_attention(q, k, v, params, heads=HEADS)
    out = jax.block_until_ready(out)

    assert out.shape == (B, S, D), out.shape
    assert bool(jnp.all(jnp.isfinite(out)))

    ref = mha_reference(q, k, v, params, heads=HEADS)
    max_err = float(jnp.max(jnp.abs(out - ref)))
    assert max_err < 3e-2, f"max abs err vs f32 reference: {max_err}"

    print("KERNEL_OK")
</pallas_src>

<mosaic_0001>
module attributes {stable_mosaic.version = 11 : i64} {
  func.func @mha_kernel(%arg0: i32, %arg1: memref<1x128x128xbf16, #tpu.memory_space<vmem>>, %arg2: memref<1x128x128xbf16, #tpu.memory_space<vmem>>, %arg3: memref<1x128x128xbf16, #tpu.memory_space<vmem>>, %arg4: memref<128x128xbf16, #tpu.memory_space<vmem>>, %arg5: memref<1x128xf32, #tpu.memory_space<vmem>>, %arg6: memref<128x128xbf16, #tpu.memory_space<vmem>>, %arg7: memref<1x128xf32, #tpu.memory_space<vmem>>, %arg8: memref<128x128xbf16, #tpu.memory_space<vmem>>, %arg9: memref<1x128xf32, #tpu.memory_space<vmem>>, %arg10: memref<128x128xbf16, #tpu.memory_space<vmem>>, %arg11: memref<1x128xf32, #tpu.memory_space<vmem>>, %arg12: memref<1x128x128xf32, #tpu.memory_space<vmem>>) attributes {dimension_semantics = [#tpu.dimension_semantics<parallel>], iteration_bounds = array<i64: 2>, scalar_prefetch = 0 : i64, scratch_operands = 0 : i64, tpu.core_type = #tpu.core_type<tc>, window_params = [{transform_indices = @transform_0, window_bounds = array<i64: 1, 128, 128>}, {transform_indices = @transform_1, window_bounds = array<i64: 1, 128, 128>}, {transform_indices = @transform_2, window_bounds = array<i64: 1, 128, 128>}, {pipeline_mode = #tpu.pipeline_mode<synchronous>, transform_indices = @transform_3, window_bounds = array<i64: 128, 128>}, {pipeline_mode = #tpu.pipeline_mode<synchronous>, transform_indices = @transform_4, window_bounds = array<i64: 1, 128>}, {pipeline_mode = #tpu.pipeline_mode<synchronous>, transform_indices = @transform_5, window_bounds = array<i64: 128, 128>}, {pipeline_mode = #tpu.pipeline_mode<synchronous>, transform_indices = @transform_6, window_bounds = array<i64: 1, 128>}, {pipeline_mode = #tpu.pipeline_mode<synchronous>, transform_indices = @transform_7, window_bounds = array<i64: 128, 128>}, {pipeline_mode = #tpu.pipeline_mode<synchronous>, transform_indices = @transform_8, window_bounds = array<i64: 1, 128>}, {pipeline_mode = #tpu.pipeline_mode<synchronous>, transform_indices = @transform_9, window_bounds = array<i64: 128, 128>}, {pipeline_mode = #tpu.pipeline_mode<synchronous>, transform_indices = @transform_10, window_bounds = array<i64: 1, 128>}, {transform_indices = @transform_11, window_bounds = array<i64: 1, 128, 128>}]} {
    %c0 = arith.constant 0 : index
    %c0_0 = arith.constant 0 : index
    %c0_1 = arith.constant 0 : index
    %0 = vector.load %arg1[%c0, %c0_0, %c0_1] : memref<1x128x128xbf16, #tpu.memory_space<vmem>>, vector<1x128x128xbf16>
    %1 = vector.shape_cast %0 : vector<1x128x128xbf16> to vector<128x128xbf16>
    %c0_2 = arith.constant 0 : index
    %c0_3 = arith.constant 0 : index
    %c0_4 = arith.constant 0 : index
    %2 = vector.load %arg2[%c0_2, %c0_3, %c0_4] : memref<1x128x128xbf16, #tpu.memory_space<vmem>>, vector<1x128x128xbf16>
    %3 = vector.shape_cast %2 : vector<1x128x128xbf16> to vector<128x128xbf16>
    %c0_5 = arith.constant 0 : index
    %c0_6 = arith.constant 0 : index
    %c0_7 = arith.constant 0 : index
    %4 = vector.load %arg3[%c0_5, %c0_6, %c0_7] : memref<1x128x128xbf16, #tpu.memory_space<vmem>>, vector<1x128x128xbf16>
    %5 = vector.shape_cast %4 : vector<1x128x128xbf16> to vector<128x128xbf16>
    %c0_8 = arith.constant 0 : index
    %c0_9 = arith.constant 0 : index
    %6 = vector.load %arg4[%c0_8, %c0_9] : memref<128x128xbf16, #tpu.memory_space<vmem>>, vector<128x128xbf16>
    %cst = arith.constant dense<0.000000e+00> : vector<128x128xf32>
    %7 = tpu.matmul %1, %6, %cst {dimension_numbers = #tpu.dot_dimension_numbers<[1], [0], [0], [1], [0, 0, 1, 1], [], []>} : vector<128x128xbf16>, vector<128x128xbf16>, vector<128x128xf32> -> vector<128x128xf32>
    %c0_10 = arith.constant 0 : index
    %c0_11 = arith.constant 0 : index
    %8 = vector.load %arg5[%c0_10, %c0_11] : memref<1x128xf32, #tpu.memory_space<vmem>>, vector<1x128xf32>
    %9 = vector.broadcast %8 : vector<1x128xf32> to vector<128x128xf32>
    %10 = arith.addf %7, %9 : vector<128x128xf32>
    %c0_12 = arith.constant 0 : index
    %c0_13 = arith.constant 0 : index
    %11 = vector.load %arg6[%c0_12, %c0_13] : memref<128x128xbf16, #tpu.memory_space<vmem>>, vector<128x128xbf16>
    %cst_14 = arith.constant dense<0.000000e+00> : vector<128x128xf32>
    %12 = tpu.matmul %3, %11, %cst_14 {dimension_numbers = #tpu.dot_dimension_numbers<[1], [0], [0], [1], [0, 0, 1, 1], [], []>} : vector<128x128xbf16>, vector<128x128xbf16>, vector<128x128xf32> -> vector<128x128xf32>
    %c0_15 = arith.constant 0 : index
    %c0_16 = arith.constant 0 : index
    %13 = vector.load %arg7[%c0_15, %c0_16] : memref<1x128xf32, #tpu.memory_space<vmem>>, vector<1x128xf32>
    %14 = vector.broadcast %13 : vector<1x128xf32> to vector<128x128xf32>
    %15 = arith.addf %12, %14 : vector<128x128xf32>
    %c0_17 = arith.constant 0 : index
    %c0_18 = arith.constant 0 : index
    %16 = vector.load %arg8[%c0_17, %c0_18] : memref<128x128xbf16, #tpu.memory_space<vmem>>, vector<128x128xbf16>
    %cst_19 = arith.constant dense<0.000000e+00> : vector<128x128xf32>
    %17 = tpu.matmul %5, %16, %cst_19 {dimension_numbers = #tpu.dot_dimension_numbers<[1], [0], [0], [1], [0, 0, 1, 1], [], []>} : vector<128x128xbf16>, vector<128x128xbf16>, vector<128x128xf32> -> vector<128x128xf32>
    %c0_20 = arith.constant 0 : index
    %c0_21 = arith.constant 0 : index
    %18 = vector.load %arg9[%c0_20, %c0_21] : memref<1x128xf32, #tpu.memory_space<vmem>>, vector<1x128xf32>
    %19 = vector.broadcast %18 : vector<1x128xf32> to vector<128x128xf32>
    %20 = arith.addf %17, %19 : vector<128x128xf32>
    %cst_22 = arith.constant 0.176776692 : f32
    %21 = vector.broadcast %cst_22 : f32 to vector<128x128xf32>
    %22 = arith.mulf %10, %21 : vector<128x128xf32>
    %23 = arith.truncf %22 : vector<128x128xf32> to vector<128x128xbf16>
    %24 = arith.truncf %15 : vector<128x128xf32> to vector<128x128xbf16>
    %25 = arith.truncf %20 : vector<128x128xf32> to vector<128x128xbf16>
    %26 = vector.extract_strided_slice %23 {offsets = [0, 0], sizes = [128, 32], strides = [1, 1]} : vector<128x128xbf16> to vector<128x32xbf16>
    %27 = vector.extract_strided_slice %24 {offsets = [0, 0], sizes = [128, 32], strides = [1, 1]} : vector<128x128xbf16> to vector<128x32xbf16>
    %28 = vector.extract_strided_slice %25 {offsets = [0, 0], sizes = [128, 32], strides = [1, 1]} : vector<128x128xbf16> to vector<128x32xbf16>
    %cst_23 = arith.constant dense<0.000000e+00> : vector<128x128xf32>
    %29 = tpu.matmul %26, %27, %cst_23 {dimension_numbers = #tpu.dot_dimension_numbers<[1], [1], [0], [0], [0, 0, 1, 0], [], []>} : vector<128x32xbf16>, vector<128x32xbf16>, vector<128x128xf32> -> vector<128x128xf32>
    %cst_24 = arith.constant dense<0xFF800000> : vector<128xf32>
    %30 = vector.multi_reduction <maximumf>, %29, %cst_24 [1] : vector<128x128xf32> to vector<128xf32>
    %31 = vector.shape_cast %30 : vector<128xf32> to vector<128x1xf32>
    %32 = vector.broadcast %31 : vector<128x1xf32> to vector<128x128xf32>
    %33 = arith.subf %29, %32 : vector<128x128xf32>
    %34 = math.exp %33 : vector<128x128xf32>
    %cst_25 = arith.constant dense<0.000000e+00> : vector<128xf32>
    %35 = vector.multi_reduction <add>, %34, %cst_25 [1] : vector<128x128xf32> to vector<128xf32>
    %36 = vector.shape_cast %35 : vector<128xf32> to vector<128x1xf32>
    %37 = tpu.reciprocal %36 {approx = true} : vector<128x1xf32> -> vector<128x1xf32>
    %38 = vector.broadcast %37 : vector<128x1xf32> to vector<128x128xf32>
    %39 = arith.mulf %34, %38 : vector<128x128xf32>
    %40 = arith.truncf %39 : vector<128x128xf32> to vector<128x128xbf16>
    %cst_26 = arith.constant dense<0.000000e+00> : vector<128x32xf32>
    %41 = tpu.matmul %40, %28, %cst_26 {dimension_numbers = #tpu.dot_dimension_numbers<[1], [0], [0], [1], [0, 0, 1, 1], [], []>} : vector<128x128xbf16>, vector<128x32xbf16>, vector<128x32xf32> -> vector<128x32xf32>
    %42 = vector.extract_strided_slice %23 {offsets = [0, 32], sizes = [128, 32], strides = [1, 1]} : vector<128x128xbf16> to vector<128x32xbf16>
    %43 = vector.extract_strided_slice %24 {offsets = [0, 32], sizes = [128, 32], strides = [1, 1]} : vector<128x128xbf16> to vector<128x32xbf16>
    %44 = vector.extract_strided_slice %25 {offsets = [0, 32], sizes = [128, 32], strides = [1, 1]} : vector<128x128xbf16> to vector<128x32xbf16>
    %cst_27 = arith.constant dense<0.000000e+00> : vector<128x128xf32>
    %45 = tpu.matmul %42, %43, %cst_27 {dimension_numbers = #tpu.dot_dimension_numbers<[1], [1], [0], [0], [0, 0, 1, 0], [], []>} : vector<128x32xbf16>, vector<128x32xbf16>, vector<128x128xf32> -> vector<128x128xf32>
    %cst_28 = arith.constant dense<0xFF800000> : vector<128xf32>
    %46 = vector.multi_reduction <maximumf>, %45, %cst_28 [1] : vector<128x128xf32> to vector<128xf32>
    %47 = vector.shape_cast %46 : vector<128xf32> to vector<128x1xf32>
    %48 = vector.broadcast %47 : vector<128x1xf32> to vector<128x128xf32>
    %49 = arith.subf %45, %48 : vector<128x128xf32>
    %50 = math.exp %49 : vector<128x128xf32>
    %cst_29 = arith.constant dense<0.000000e+00> : vector<128xf32>
    %51 = vector.multi_reduction <add>, %50, %cst_29 [1] : vector<128x128xf32> to vector<128xf32>
    %52 = vector.shape_cast %51 : vector<128xf32> to vector<128x1xf32>
    %53 = tpu.reciprocal %52 {approx = true} : vector<128x1xf32> -> vector<128x1xf32>
    %54 = vector.broadcast %53 : vector<128x1xf32> to vector<128x128xf32>
    %55 = arith.mulf %50, %54 : vector<128x128xf32>
    %56 = arith.truncf %55 : vector<128x128xf32> to vector<128x128xbf16>
    %cst_30 = arith.constant dense<0.000000e+00> : vector<128x32xf32>
    %57 = tpu.matmul %56, %44, %cst_30 {dimension_numbers = #tpu.dot_dimension_numbers<[1], [0], [0], [1], [0, 0, 1, 1], [], []>} : vector<128x128xbf16>, vector<128x32xbf16>, vector<128x32xf32> -> vector<128x32xf32>
    %58 = vector.extract_strided_slice %23 {offsets = [0, 64], sizes = [128, 32], strides = [1, 1]} : vector<128x128xbf16> to vector<128x32xbf16>
    %59 = vector.extract_strided_slice %24 {offsets = [0, 64], sizes = [128, 32], strides = [1, 1]} : vector<128x128xbf16> to vector<128x32xbf16>
    %60 = vector.extract_strided_slice %25 {offsets = [0, 64], sizes = [128, 32], strides = [1, 1]} : vector<128x128xbf16> to vector<128x32xbf16>
    %cst_31 = arith.constant dense<0.000000e+00> : vector<128x128xf32>
    %61 = tpu.matmul %58, %59, %cst_31 {dimension_numbers = #tpu.dot_dimension_numbers<[1], [1], [0], [0], [0, 0, 1, 0], [], []>} : vector<128x32xbf16>, vector<128x32xbf16>, vector<128x128xf32> -> vector<128x128xf32>
    %cst_32 = arith.constant dense<0xFF800000> : vector<128xf32>
    %62 = vector.multi_reduction <maximumf>, %61, %cst_32 [1] : vector<128x128xf32> to vector<128xf32>
    %63 = vector.shape_cast %62 : vector<128xf32> to vector<128x1xf32>
    %64 = vector.broadcast %63 : vector<128x1xf32> to vector<128x128xf32>
    %65 = arith.subf %61, %64 : vector<128x128xf32>
    %66 = math.exp %65 : vector<128x128xf32>
    %cst_33 = arith.constant dense<0.000000e+00> : vector<128xf32>
    %67 = vector.multi_reduction <add>, %66, %cst_33 [1] : vector<128x128xf32> to vector<128xf32>
    %68 = vector.shape_cast %67 : vector<128xf32> to vector<128x1xf32>
    %69 = tpu.reciprocal %68 {approx = true} : vector<128x1xf32> -> vector<128x1xf32>
    %70 = vector.broadcast %69 : vector<128x1xf32> to vector<128x128xf32>
    %71 = arith.mulf %66, %70 : vector<128x128xf32>
    %72 = arith.truncf %71 : vector<128x128xf32> to vector<128x128xbf16>
    %cst_34 = arith.constant dense<0.000000e+00> : vector<128x32xf32>
    %73 = tpu.matmul %72, %60, %cst_34 {dimension_numbers = #tpu.dot_dimension_numbers<[1], [0], [0], [1], [0, 0, 1, 1], [], []>} : vector<128x128xbf16>, vector<128x32xbf16>, vector<128x32xf32> -> vector<128x32xf32>
    %74 = vector.extract_strided_slice %23 {offsets = [0, 96], sizes = [128, 32], strides = [1, 1]} : vector<128x128xbf16> to vector<128x32xbf16>
    %75 = vector.extract_strided_slice %24 {offsets = [0, 96], sizes = [128, 32], strides = [1, 1]} : vector<128x128xbf16> to vector<128x32xbf16>
    %76 = vector.extract_strided_slice %25 {offsets = [0, 96], sizes = [128, 32], strides = [1, 1]} : vector<128x128xbf16> to vector<128x32xbf16>
    %cst_35 = arith.constant dense<0.000000e+00> : vector<128x128xf32>
    %77 = tpu.matmul %74, %75, %cst_35 {dimension_numbers = #tpu.dot_dimension_numbers<[1], [1], [0], [0], [0, 0, 1, 0], [], []>} : vector<128x32xbf16>, vector<128x32xbf16>, vector<128x128xf32> -> vector<128x128xf32>
    %cst_36 = arith.constant dense<0xFF800000> : vector<128xf32>
    %78 = vector.multi_reduction <maximumf>, %77, %cst_36 [1] : vector<128x128xf32> to vector<128xf32>
    %79 = vector.shape_cast %78 : vector<128xf32> to vector<128x1xf32>
    %80 = vector.broadcast %79 : vector<128x1xf32> to vector<128x128xf32>
    %81 = arith.subf %77, %80 : vector<128x128xf32>
    %82 = math.exp %81 : vector<128x128xf32>
    %cst_37 = arith.constant dense<0.000000e+00> : vector<128xf32>
    %83 = vector.multi_reduction <add>, %82, %cst_37 [1] : vector<128x128xf32> to vector<128xf32>
    %84 = vector.shape_cast %83 : vector<128xf32> to vector<128x1xf32>
    %85 = tpu.reciprocal %84 {approx = true} : vector<128x1xf32> -> vector<128x1xf32>
    %86 = vector.broadcast %85 : vector<128x1xf32> to vector<128x128xf32>
    %87 = arith.mulf %82, %86 : vector<128x128xf32>
    %88 = arith.truncf %87 : vector<128x128xf32> to vector<128x128xbf16>
    %cst_38 = arith.constant dense<0.000000e+00> : vector<128x32xf32>
    %89 = tpu.matmul %88, %76, %cst_38 {dimension_numbers = #tpu.dot_dimension_numbers<[1], [0], [0], [1], [0, 0, 1, 1], [], []>} : vector<128x128xbf16>, vector<128x32xbf16>, vector<128x32xf32> -> vector<128x32xf32>
    %90 = tpu.concatenate %41, %57, %73, %89 in 1 : vector<128x32xf32>, vector<128x32xf32>, vector<128x32xf32>, vector<128x32xf32> -> vector<128x128xf32>
    %91 = arith.truncf %90 : vector<128x128xf32> to vector<128x128xbf16>
    %c0_39 = arith.constant 0 : index
    %c0_40 = arith.constant 0 : index
    %92 = vector.load %arg10[%c0_39, %c0_40] : memref<128x128xbf16, #tpu.memory_space<vmem>>, vector<128x128xbf16>
    %cst_41 = arith.constant dense<0.000000e+00> : vector<128x128xf32>
    %93 = tpu.matmul %91, %92, %cst_41 {dimension_numbers = #tpu.dot_dimension_numbers<[1], [0], [0], [1], [0, 0, 1, 1], [], []>} : vector<128x128xbf16>, vector<128x128xbf16>, vector<128x128xf32> -> vector<128x128xf32>
    %c0_42 = arith.constant 0 : index
    %c0_43 = arith.constant 0 : index
    %94 = vector.load %arg11[%c0_42, %c0_43] : memref<1x128xf32, #tpu.memory_space<vmem>>, vector<1x128xf32>
    %95 = vector.broadcast %94 : vector<1x128xf32> to vector<128x128xf32>
    %96 = arith.addf %93, %95 : vector<128x128xf32>
    %c0_44 = arith.constant 0 : index
    %c0_45 = arith.constant 0 : index
    %c0_46 = arith.constant 0 : index
    %97 = vector.load %arg12[%c0_44, %c0_45, %c0_46] : memref<1x128x128xf32, #tpu.memory_space<vmem>>, vector<1x128x128xf32>
    %98 = vector.shape_cast %97 : vector<1x128x128xf32> to vector<128x128xf32>
    %99 = vector.shape_cast %96 : vector<128x128xf32> to vector<1x128x128xf32>
    tpu.vector_store %arg12[%c0_44, %c0_45, %c0_46], %99 {strides = array<i32>} : memref<1x128x128xf32, #tpu.memory_space<vmem>>, vector<1x128x128xf32>,
    return
  }
  func.func @transform_0(%arg0: i32) -> (i32, i32, i32) {
    %c0_i32 = arith.constant 0 : i32
    %c0_i32_0 = arith.constant 0 : i32
    %c0_i32_1 = arith.constant 0 : i32
    return %arg0, %c0_i32, %c0_i32_0 : i32, i32, i32
  }
  func.func @transform_1(%arg0: i32) -> (i32, i32, i32) {
    %c0_i32 = arith.constant 0 : i32
    %c0_i32_0 = arith.constant 0 : i32
    %c0_i32_1 = arith.constant 0 : i32
    return %arg0, %c0_i32, %c0_i32_0 : i32, i32, i32
  }
  func.func @transform_2(%arg0: i32) -> (i32, i32, i32) {
    %c0_i32 = arith.constant 0 : i32
    %c0_i32_0 = arith.constant 0 : i32
    %c0_i32_1 = arith.constant 0 : i32
    return %arg0, %c0_i32, %c0_i32_0 : i32, i32, i32
  }
  func.func @transform_3(%arg0: i32) -> (i32, i32) {
    %c0_i32 = arith.constant 0 : i32
    %c0_i32_0 = arith.constant 0 : i32
    %c0_i32_1 = arith.constant 0 : i32
    return %c0_i32, %c0_i32_0 : i32, i32
  }
  func.func @transform_4(%arg0: i32) -> (i32, i32) {
    %c0_i32 = arith.constant 0 : i32
    %c0_i32_0 = arith.constant 0 : i32
    %c0_i32_1 = arith.constant 0 : i32
    return %c0_i32, %c0_i32_0 : i32, i32
  }
  func.func @transform_5(%arg0: i32) -> (i32, i32) {
    %c0_i32 = arith.constant 0 : i32
    %c0_i32_0 = arith.constant 0 : i32
    %c0_i32_1 = arith.constant 0 : i32
    return %c0_i32, %c0_i32_0 : i32, i32
  }
  func.func @transform_6(%arg0: i32) -> (i32, i32) {
    %c0_i32 = arith.constant 0 : i32
    %c0_i32_0 = arith.constant 0 : i32
    %c0_i32_1 = arith.constant 0 : i32
    return %c0_i32, %c0_i32_0 : i32, i32
  }
  func.func @transform_7(%arg0: i32) -> (i32, i32) {
    %c0_i32 = arith.constant 0 : i32
    %c0_i32_0 = arith.constant 0 : i32
    %c0_i32_1 = arith.constant 0 : i32
    return %c0_i32, %c0_i32_0 : i32, i32
  }
  func.func @transform_8(%arg0: i32) -> (i32, i32) {
    %c0_i32 = arith.constant 0 : i32
    %c0_i32_0 = arith.constant 0 : i32
    %c0_i32_1 = arith.constant 0 : i32
    return %c0_i32, %c0_i32_0 : i32, i32
  }
  func.func @transform_9(%arg0: i32) -> (i32, i32) {
    %c0_i32 = arith.constant 0 : i32
    %c0_i32_0 = arith.constant 0 : i32
    %c0_i32_1 = arith.constant 0 : i32
    return %c0_i32, %c0_i32_0 : i32, i32
  }
  func.func @transform_10(%arg0: i32) -> (i32, i32) {
    %c0_i32 = arith.constant 0 : i32
    %c0_i32_0 = arith.constant 0 : i32
    %c0_i32_1 = arith.constant 0 : i32
    return %c0_i32, %c0_i32_0 : i32, i32
  }
  func.func @transform_11(%arg0: i32) -> (i32, i32, i32) {
    %c0_i32 = arith.constant 0 : i32
    %c0_i32_0 = arith.constant 0 : i32
    %c0_i32_1 = arith.constant 0 : i32
    return %arg0, %c0_i32, %c0_i32_0 : i32, i32, i32
  }
}

</mosaic_0001>

<llo_original>
// kernel: tpu_custom_call.1
$region0: #{tpu_custom_call.1}
  #allocation0 [shape = 'u32[]', space=smem, size = 0x4, offset = 0x4, fixed_abs, tag = 'smem constant byte address 0x4 - core index']
  #allocation1 [shape = 'u32[144,128]{1,0:T(1,128)}', space=vmem, size = 0x12000, scoped, tag = 'internal scratch']
  %s0 = inlined_call_operand.hbm [shape: bf16[2,128,128], index: 0, kind: input, shape index: {}]
  %s1 = inlined_call_operand.hbm [shape: bf16[2,128,128], index: 1, kind: input, shape index: {}]
  %s2 = inlined_call_operand.hbm [shape: bf16[2,128,128], index: 2, kind: input, shape index: {}]
  %s3 = inlined_call_operand.hbm [shape: bf16[128,128], index: 3, kind: input, shape index: {}]
  %s4 = inlined_call_operand.vmem [shape: f32[1,128], index: 4, kind: input, shape index: {}]
  %s5 = inlined_call_operand.hbm [shape: bf16[128,128], index: 5, kind: input, shape index: {}]
  %s6 = inlined_call_operand.vmem [shape: f32[1,128], index: 6, kind: input, shape index: {}]
  %s7 = inlined_call_operand.hbm [shape: bf16[128,128], index: 7, kind: input, shape index: {}]
  %s8 = inlined_call_operand.vmem [shape: f32[1,128], index: 8, kind: input, shape index: {}]
  %s9 = inlined_call_operand.hbm [shape: bf16[128,128], index: 9, kind: input, shape index: {}]
  %s10 = inlined_call_operand.vmem [shape: f32[1,128], index: 10, kind: input, shape index: {}]
  %s11 = inlined_call_operand.hbm [shape: f32[2,128,128], index: 11, kind: output, shape index: {}]
  %s12 = sld [smem:[#allocation0]]
  $region105: #{tpu_custom_call.1} parent=0
    _
  %s14 = ssub.s32 1, %s12
  %s15 = scalar_select 0, %s14, %s12
  $region1: #{tpu_custom_call.1} parent=0
    #allocation2 [shape = 'u8[65536]{0}', space=vmem, size = 0x10000, scoped, tag = 'input window, operand 0']
    #allocation3 [shape = 's32[2]{0}', space=sflag, size = 0x8, scoped, tag = 'scoped memory for tpu_custom_call.1']
    #allocation4 [shape = 's32[2]{0}', space=sflag, size = 0x8, scoped, tag = 'scoped memory for tpu_custom_call.1']
    #allocation5 [shape = 'u8[65536]{0}', space=vmem, size = 0x10000, scoped, tag = 'input window, operand 1']
    #allocation6 [shape = 's32[2]{0}', space=sflag, size = 0x8, scoped, tag = 'scoped memory for tpu_custom_call.1']
    #allocation7 [shape = 'u8[65536]{0}', space=vmem, size = 0x10000, scoped, tag = 'input window, operand 2']
    #allocation8 [shape = 'u8[32768]{0}', space=vmem, size = 0x8000, scoped, tag = 'input window, operand 3, single buffered']
    #allocation9 [shape = 's32[1]{0}', space=sflag, size = 0x4, scoped, tag = 'scoped memory for tpu_custom_call.1']
    #allocation10 [shape = 'u8[32768]{0}', space=vmem, size = 0x8000, scoped, tag = 'input window, operand 5, single buffered']
    #allocation11 [shape = 'u8[32768]{0}', space=vmem, size = 0x8000, scoped, tag = 'input window, operand 7, single buffered']
    #allocation12 [shape = 's32[1]{0}', space=sflag, size = 0x4, scoped, tag = 'scoped memory for tpu_custom_call.1']
    #allocation13 [shape = 'u8[32768]{0}', space=vmem, size = 0x8000, scoped, tag = 'input window, operand 9, single buffered']
    #allocation14 [shape = 'u8[131072]{0}', space=vmem, size = 0x20000, scoped, tag = 'output window, operand 0']
    %16 = vsyncpa [#allocation3], 0
    %s17 = scalar_lea.sflag [#allocation3], 1
    %18 = vsyncpa %s17, 0
    %19 = vsyncpa [#allocation6], 0
    %s20 = scalar_lea.sflag [#allocation6], 1
    %21 = vsyncpa %s20, 0
    %22 = vsyncpa [#allocation9], 0
    %23 = vsyncpa [#allocation12], 0
    %24 = vsyncpa [#allocation4], 0
    %s25 = scalar_lea.sflag [#allocation4], 1
    %26 = vsyncpa %s25, 0
    loop: start=0, step=1, limit=4
    $region2: #{tpu_custom_call.1} parent=1 // loop_pre_header
      _
    $region3: #{tpu_custom_call.1} parent=1 // loop_header
      %s28 = sphi 0, %s32
      %p29 = scmp.ge.s32.totalorder %s28, 4
      %s38 = sphi 0, %s40
      %s41 = sphi 0, %s38
      %s42 = sphi 0, %s41
      %s58 = sphi 0, %s42
      %s64 = sphi 0, %s66
      %s67 = sphi 0, %s64
      %s68 = sphi 0, %s67
      %s84 = sphi 0, %s68
      %s90 = sphi 0, %s92
      %s93 = sphi 0, %s90
      %s94 = sphi 0, %s93
      %s110 = sphi 0, %s94
      %s114 = sphi 0, %s114
      %s116 = sphi 0, %s114
      %s117 = sphi 0, %s116
      %s131 = sphi 0, %s117
      %s135 = sphi 0, %s135
      %s137 = sphi 0, %s135
      %s138 = sphi 0, %s137
      %s152 = sphi 0, %s138
      %s156 = sphi 0, %s156
      %s158 = sphi 0, %s156
      %s159 = sphi 0, %s158
      %s173 = sphi 0, %s159
      %s177 = sphi 0, %s177
      %s179 = sphi 0, %s177
      %s180 = sphi 0, %s179
      %s194 = sphi 0, %s180
      %s198 = sphi 0, %s198
      %s200 = sphi 0, %s198
      %s201 = sphi 0, %s200
      %s215 = sphi 0, %s201
      %s219 = sphi 0, %s219
      %s221 = sphi 0, %s219
      %s222 = sphi 0, %s221
      %s236 = sphi 0, %s222
      %s240 = sphi 0, %s240
      %s242 = sphi 0, %s240
      %s243 = sphi 0, %s242
      %s257 = sphi 0, %s243
      %s261 = sphi 0, %s261
      %s263 = sphi 0, %s261
      %s264 = sphi 0, %s263
      %s278 = sphi 0, %s264
      %s284 = sphi 0, %s286
      %s287 = sphi 0, %s284
      %s288 = sphi 0, %s287
      %s304 = sphi 0, %s288
    $region4: #{tpu_custom_call.1} parent=1 // loop_header_branch
      %31 = sbr.rel (%p29) target = $region8
    $region5: #{tpu_custom_call.1} parent=1 // loop_body
      %s33 = ssub.s32 %s28, 1
      %s34 = ssub.s32 %s28, 2
      %s35 = sadd.s32 %s28, 1
      %s36 = ssub.s32 %s28, %s35
      %p37 = scmp.eq.s32.totalorder %s36, 0
      %s39 = sadd.s32 %s38, 1
      %s40 = scalar_select %p37, %s38, %s39
      %p43 = pneg %p37
      %p44 = scmp.eq.s32.totalorder %s28, 1
      %p45 = por %p43, %p44
      %p46 = scmp.ne.s32.totalorder %s38, %s41
      %p47 = scmp.eq.s32.totalorder %s28, 0
      %p48 = por %p46, %p47
      %p49 = scmp.ne.s32.totalorder %s38, %s41
      %p50 = scmp.eq.s32.totalorder %s33, 1
      %p51 = por %p49, %p50
      %p52 = scmp.ne.s32.totalorder %s41, %s42
      %p53 = scmp.eq.s32.totalorder %s33, 0
      %p54 = por %p52, %p53
      %p55 = scmp.ne.s32.totalorder %s41, %s42
      %p56 = scmp.eq.s32.totalorder %s34, 1
      %p57 = por %p55, %p56
      %p59 = scmp.ne.s32.totalorder %s42, %s58
      %p60 = scmp.eq.s32.totalorder %s34, 0
      %p61 = por %p59, %p60
      %s62 = ssub.s32 %s28, %s35
      %p63 = scmp.eq.s32.totalorder %s62, 0
      %s65 = sadd.s32 %s64, 1
      %s66 = scalar_select %p63, %s64, %s65
      %p69 = pneg %p63
      %p70 = scmp.eq.s32.totalorder %s28, 1
      %p71 = por %p69, %p70
      %p72 = scmp.ne.s32.totalorder %s64, %s67
      %p73 = scmp.eq.s32.totalorder %s28, 0
      %p74 = por %p72, %p73
      %p75 = scmp.ne.s32.totalorder %s64, %s67
      %p76 = scmp.eq.s32.totalorder %s33, 1
      %p77 = por %p75, %p76
      %p78 = scmp.ne.s32.totalorder %s67, %s68
      %p79 = scmp.eq.s32.totalorder %s33, 0
      %p80 = por %p78, %p79
      %p81 = scmp.ne.s32.totalorder %s67, %s68
      %p82 = scmp.eq.s32.totalorder %s34, 1
      %p83 = por %p81, %p82
      %p85 = scmp.ne.s32.totalorder %s68, %s84
      %p86 = scmp.eq.s32.totalorder %s34, 0
      %p87 = por %p85, %p86
      %s88 = ssub.s32 %s28, %s35
      %p89 = scmp.eq.s32.totalorder %s88, 0
      %s91 = sadd.s32 %s90, 1
      %s92 = scalar_select %p89, %s90, %s91
      %p95 = pneg %p89
      %p96 = scmp.eq.s32.totalorder %s28, 1
      %p97 = por %p95, %p96
      %p98 = scmp.ne.s32.totalorder %s90, %s93
      %p99 = scmp.eq.s32.totalorder %s28, 0
      %p100 = por %p98, %p99
      %p101 = scmp.ne.s32.totalorder %s90, %s93
      %p102 = scmp.eq.s32.totalorder %s33, 1
      %p103 = por %p101, %p102
      %p104 = scmp.ne.s32.totalorder %s93, %s94
      %p105 = scmp.eq.s32.totalorder %s33, 0
      %p106 = por %p104, %p105
      %p107 = scmp.ne.s32.totalorder %s93, %s94
      %p108 = scmp.eq.s32.totalorder %s34, 1
      %p109 = por %p107, %p108
      %p111 = scmp.ne.s32.totalorder %s94, %s110
      %p112 = scmp.eq.s32.totalorder %s34, 0
      %p113 = por %p111, %p112
      %s115 = sadd.s32 %s114, 1
      %p118 = scmp.eq.s32.totalorder %s28, 1
      %p119 = scmp.ne.s32.totalorder %s114, %s116
      %p120 = scmp.eq.s32.totalorder %s28, 0
      %p121 = por %p119, %p120
      %p122 = scmp.ne.s32.totalorder %s114, %s116
      %p123 = scmp.eq.s32.totalorder %s33, 1
      %p124 = por %p122, %p123
      %p125 = scmp.ne.s32.totalorder %s116, %s117
      %p126 = scmp.eq.s32.totalorder %s33, 0
      %p127 = por %p125, %p126
      %p128 = scmp.ne.s32.totalorder %s116, %s117
      %p129 = scmp.eq.s32.totalorder %s34, 1
      %p130 = por %p128, %p129
      %p132 = scmp.ne.s32.totalorder %s117, %s131
      %p133 = scmp.eq.s32.totalorder %s34, 0
      %p134 = por %p132, %p133
      %s136 = sadd.s32 %s135, 1
      %p139 = scmp.eq.s32.totalorder %s28, 1
      %p140 = scmp.ne.s32.totalorder %s135, %s137
      %p141 = scmp.eq.s32.totalorder %s28, 0
      %p142 = por %p140, %p141
      %p143 = scmp.ne.s32.totalorder %s135, %s137
      %p144 = scmp.eq.s32.totalorder %s33, 1
      %p145 = por %p143, %p144
      %p146 = scmp.ne.s32.totalorder %s137, %s138
      %p147 = scmp.eq.s32.totalorder %s33, 0
      %p148 = por %p146, %p147
      %p149 = scmp.ne.s32.totalorder %s137, %s138
      %p150 = scmp.eq.s32.totalorder %s34, 1
      %p151 = por %p149, %p150
      %p153 = scmp.ne.s32.totalorder %s138, %s152
      %p154 = scmp.eq.s32.totalorder %s34, 0
      %p155 = por %p153, %p154
      %s157 = sadd.s32 %s156, 1
      %p160 = scmp.eq.s32.totalorder %s28, 1
      %p161 = scmp.ne.s32.totalorder %s156, %s158
      %p162 = scmp.eq.s32.totalorder %s28, 0
      %p163 = por %p161, %p162
      %p164 = scmp.ne.s32.totalorder %s156, %s158
      %p165 = scmp.eq.s32.totalorder %s33, 1
      %p166 = por %p164, %p165
      %p167 = scmp.ne.s32.totalorder %s158, %s159
      %p168 = scmp.eq.s32.totalorder %s33, 0
      %p169 = por %p167, %p168
      %p170 = scmp.ne.s32.totalorder %s158, %s159
      %p171 = scmp.eq.s32.totalorder %s34, 1
      %p172 = por %p170, %p171
      %p174 = scmp.ne.s32.totalorder %s159, %s173
      %p175 = scmp.eq.s32.totalorder %s34, 0
      %p176 = por %p174, %p175
      %s178 = sadd.s32 %s177, 1
      %p181 = scmp.eq.s32.totalorder %s28, 1
      %p182 = scmp.ne.s32.totalorder %s177, %s179
      %p183 = scmp.eq.s32.totalorder %s28, 0
      %p184 = por %p182, %p183
      %p185 = scmp.ne.s32.totalorder %s177, %s179
      %p186 = scmp.eq.s32.totalorder %s33, 1
      %p187 = por %p185, %p186
      %p188 = scmp.ne.s32.totalorder %s179, %s180
      %p189 = scmp.eq.s32.totalorder %s33, 0
      %p190 = por %p188, %p189
      %p191 = scmp.ne.s32.totalorder %s179, %s180
      %p192 = scmp.eq.s32.totalorder %s34, 1
      %p193 = por %p191, %p192
      %p195 = scmp.ne.s32.totalorder %s180, %s194
      %p196 = scmp.eq.s32.totalorder %s34, 0
      %p197 = por %p195, %p196
      %s199 = sadd.s32 %s198, 1
      %p202 = scmp.eq.s32.totalorder %s28, 1
      %p203 = scmp.ne.s32.totalorder %s198, %s200
      %p204 = scmp.eq.s32.totalorder %s28, 0
      %p205 = por %p203, %p204
      %p206 = scmp.ne.s32.totalorder %s198, %s200
      %p207 = scmp.eq.s32.totalorder %s33, 1
      %p208 = por %p206, %p207
      %p209 = scmp.ne.s32.totalorder %s200, %s201
      %p210 = scmp.eq.s32.totalorder %s33, 0
      %p211 = por %p209, %p210
      %p212 = scmp.ne.s32.totalorder %s200, %s201
      %p213 = scmp.eq.s32.totalorder %s34, 1
      %p214 = por %p212, %p213
      %p216 = scmp.ne.s32.totalorder %s201, %s215
      %p217 = scmp.eq.s32.totalorder %s34, 0
      %p218 = por %p216, %p217
      %s220 = sadd.s32 %s219, 1
      %p223 = scmp.eq.s32.totalorder %s28, 1
      %p224 = scmp.ne.s32.totalorder %s219, %s221
      %p225 = scmp.eq.s32.totalorder %s28, 0
      %p226 = por %p224, %p225
      %p227 = scmp.ne.s32.totalorder %s219, %s221
      %p228 = scmp.eq.s32.totalorder %s33, 1
      %p229 = por %p227, %p228
      %p230 = scmp.ne.s32.totalorder %s221, %s222
      %p231 = scmp.eq.s32.totalorder %s33, 0
      %p232 = por %p230, %p231
      %p233 = scmp.ne.s32.totalorder %s221, %s222
      %p234 = scmp.eq.s32.totalorder %s34, 1
      %p235 = por %p233, %p234
      %p237 = scmp.ne.s32.totalorder %s222, %s236
      %p238 = scmp.eq.s32.totalorder %s34, 0
      %p239 = por %p237, %p238
      %s241 = sadd.s32 %s240, 1
      %p244 = scmp.eq.s32.totalorder %s28, 1
      %p245 = scmp.ne.s32.totalorder %s240, %s242
      %p246 = scmp.eq.s32.totalorder %s28, 0
      %p247 = por %p245, %p246
      %p248 = scmp.ne.s32.totalorder %s240, %s242
      %p249 = scmp.eq.s32.totalorder %s33, 1
      %p250 = por %p248, %p249
      %p251 = scmp.ne.s32.totalorder %s242, %s243
      %p252 = scmp.eq.s32.totalorder %s33, 0
      %p253 = por %p251, %p252
      %p254 = scmp.ne.s32.totalorder %s242, %s243
      %p255 = scmp.eq.s32.totalorder %s34, 1
      %p256 = por %p254, %p255
      %p258 = scmp.ne.s32.totalorder %s243, %s257
      %p259 = scmp.eq.s32.totalorder %s34, 0
      %p260 = por %p258, %p259
      %s262 = sadd.s32 %s261, 1
      %p265 = scmp.eq.s32.totalorder %s28, 1
      %p266 = scmp.ne.s32.totalorder %s261, %s263
      %p267 = scmp.eq.s32.totalorder %s28, 0
      %p268 = por %p266, %p267
      %p269 = scmp.ne.s32.totalorder %s261, %s263
      %p270 = scmp.eq.s32.totalorder %s33, 1
      %p271 = por %p269, %p270
      %p272 = scmp.ne.s32.totalorder %s263, %s264
      %p273 = scmp.eq.s32.totalorder %s33, 0
      %p274 = por %p272, %p273
      %p275 = scmp.ne.s32.totalorder %s263, %s264
      %p276 = scmp.eq.s32.totalorder %s34, 1
      %p277 = por %p275, %p276
      %p279 = scmp.ne.s32.totalorder %s264, %s278
      %p280 = scmp.eq.s32.totalorder %s34, 0
      %p281 = por %p279, %p280
      %s282 = ssub.s32 %s28, %s35
      %p283 = scmp.eq.s32.totalorder %s282, 0
      %s285 = sadd.s32 %s284, 1
      %s286 = scalar_select %p283, %s284, %s285
      %p289 = pneg %p283
      %p290 = scmp.eq.s32.totalorder %s28, 1
      %p291 = por %p289, %p290
      %p292 = scmp.ne.s32.totalorder %s284, %s287
      %p293 = scmp.eq.s32.totalorder %s28, 0
      %p294 = por %p292, %p293
      %p295 = scmp.ne.s32.totalorder %s284, %s287
      %p296 = scmp.eq.s32.totalorder %s33, 1
      %p297 = por %p295, %p296
      %p298 = scmp.ne.s32.totalorder %s287, %s288
      %p299 = scmp.eq.s32.totalorder %s33, 0
      %p300 = por %p298, %p299
      %p301 = scmp.ne.s32.totalorder %s287, %s288
      %p302 = scmp.eq.s32.totalorder %s34, 1
      %p303 = por %p301, %p302
      %p305 = scmp.ne.s32.totalorder %s288, %s304
      %p306 = scmp.eq.s32.totalorder %s34, 0
      %p307 = por %p305, %p306
      %p308 = scmp.le.s32.totalorder 1, %s28
      %p309 = scmp.lt.s32.totalorder %s28, 3
      %p310 = pnand %p308, %p309
      %p311 = pneg %p310
      // Predicated region
      $region9: #{tpu_custom_call.1} parent=5 // pred_check
        _
      $region10: #{tpu_custom_call.1} parent=5 // pred_check_branch
        %313 = sbr.rel (%p310) target = $region12
      $region11: #{tpu_custom_call.1} parent=5 // pred_region
        %s314 = ssub.s32 %s28, 1
        // Predicated region
        $region13: #{tpu_custom_call.1} parent=11 // pred_check
          %p315 = pneg %p127
        $region14: #{tpu_custom_call.1} parent=11 // pred_check_branch
          %317 = sbr.rel (%p315) target = $region16
        $region15: #{tpu_custom_call.1} parent=11 // pred_region
          %s319 = ssub.s32 1024, 1024
          %320 = vsyncadd [#allocation9], %s319
          %s321 = sshll.u32 [#allocation8], 4
          %s322 = int_to_ptr.vmem [resolvable:$true] %s321
          %327 = dma.hbm_to_vmem [thread:$0]  %s3, 1024, %s322, [#allocation9], 64, 64, 4
        $region16: #{tpu_custom_call.1} parent=11 // pred_fallthru
          _
        // Predicated region
        $region17: #{tpu_custom_call.1} parent=11 // pred_check
          %p328 = pneg %p148
        $region18: #{tpu_custom_call.1} parent=11 // pred_check_branch
          %330 = sbr.rel (%p328) target = $region20
        $region19: #{tpu_custom_call.1} parent=11 // pred_region
          _
        $region20: #{tpu_custom_call.1} parent=11 // pred_fallthru
          _
        // Predicated region
        $region21: #{tpu_custom_call.1} parent=11 // pred_check
          %p331 = pneg %p169
        $region22: #{tpu_custom_call.1} parent=11 // pred_check_branch
          %333 = sbr.rel (%p331) target = $region24
        $region23: #{tpu_custom_call.1} parent=11 // pred_region
          %s335 = ssub.s32 1024, 1024
          %336 = vsyncadd [#allocation9], %s335
          %s337 = sshll.u32 [#allocation10], 4
          %s338 = int_to_ptr.vmem [resolvable:$true] %s337
          %343 = dma.hbm_to_vmem [thread:$0]  %s5, 1024, %s338, [#allocation9], 64, 64, 4
        $region24: #{tpu_custom_call.1} parent=11 // pred_fallthru
          _
        // Predicated region
        $region25: #{tpu_custom_call.1} parent=11 // pred_check
          %p344 = pneg %p190
        $region26: #{tpu_custom_call.1} parent=11 // pred_check_branch
          %346 = sbr.rel (%p344) target = $region28
        $region27: #{tpu_custom_call.1} parent=11 // pred_region
          _
        $region28: #{tpu_custom_call.1} parent=11 // pred_fallthru
          _
        // Predicated region
        $region29: #{tpu_custom_call.1} parent=11 // pred_check
          %p347 = pneg %p211
        $region30: #{tpu_custom_call.1} parent=11 // pred_check_branch
          %349 = sbr.rel (%p347) target = $region32
        $region31: #{tpu_custom_call.1} parent=11 // pred_region
          %s351 = ssub.s32 1024, 1024
          %352 = vsyncadd [#allocation12], %s351
          %s353 = sshll.u32 [#allocation11], 4
          %s354 = int_to_ptr.vmem [resolvable:$true] %s353
          %359 = dma.hbm_to_vmem [thread:$0]  %s7, 1024, %s354, [#allocation12], 64, 64, 4
        $region32: #{tpu_custom_call.1} parent=11 // pred_fallthru
          _
        // Predicated region
        $region33: #{tpu_custom_call.1} parent=11 // pred_check
          %p360 = pneg %p232
        $region34: #{tpu_custom_call.1} parent=11 // pred_check_branch
          %362 = sbr.rel (%p360) target = $region36
        $region35: #{tpu_custom_call.1} parent=11 // pred_region
          _
        $region36: #{tpu_custom_call.1} parent=11 // pred_fallthru
          _
        // Predicated region
        $region37: #{tpu_custom_call.1} parent=11 // pred_check
          %p363 = pneg %p253
        $region38: #{tpu_custom_call.1} parent=11 // pred_check_branch
          %365 = sbr.rel (%p363) target = $region40
        $region39: #{tpu_custom_call.1} parent=11 // pred_region
          %s367 = ssub.s32 1024, 1024
          %368 = vsyncadd [#allocation12], %s367
          %s369 = sshll.u32 [#allocation13], 4
          %s370 = int_to_ptr.vmem [resolvable:$true] %s369
          %375 = dma.hbm_to_vmem [thread:$0]  %s9, 1024, %s370, [#allocation12], 64, 64, 4
        $region40: #{tpu_custom_call.1} parent=11 // pred_fallthru
          _
        // Predicated region
        $region41: #{tpu_custom_call.1} parent=11 // pred_check
          %p376 = pneg %p274
        $region42: #{tpu_custom_call.1} parent=11 // pred_check_branch
          %378 = sbr.rel (%p376) target = $region44
        $region43: #{tpu_custom_call.1} parent=11 // pred_region
          _
        $region44: #{tpu_custom_call.1} parent=11 // pred_fallthru
          _
      $region12: #{tpu_custom_call.1} parent=5 // pred_fallthru
        _
      %p379 = scmp.lt.s32.totalorder %s28, 2
      // Predicated region
      $region45: #{tpu_custom_call.1} parent=5 // pred_check
        %p380 = pneg %p379
      $region46: #{tpu_custom_call.1} parent=5 // pred_check_branch
        %382 = sbr.rel (%p380) target = $region48
      $region47: #{tpu_custom_call.1} parent=5 // pred_region
        // Predicated region
        $region49: #{tpu_custom_call.1} parent=47 // pred_check
          %p383 = pneg %p48
        $region50: #{tpu_custom_call.1} parent=47 // pred_check_branch
          %385 = sbr.rel (%p383) target = $region52
        $region51: #{tpu_custom_call.1} parent=47 // pred_region
          %s386 = sand.u32 %s38, 1
          %s387 = scalar_lea.sflag [#allocation3], %s386
          %s388 = sand.u32 %s38, 1
          %s389 = smul.addr %s388, 64
          %s390 = scalar_lea.vmem [#allocation2], %s389
          %s392 = ssub.s32 1024, 1024
          %393 = vsyncadd %s387, %s392
          %s394 = smul.addr %s28, 16
          %s395 = smul.addr %s394, 64
          %s396 = scalar_lea.hbm %s0, %s395
          %s397 = sshll.u32 %s390, 4
          %s398 = int_to_ptr.vmem [resolvable:$true] %s397
          %403 = dma.hbm_to_vmem [thread:$0]  %s396, 1024, %s398, %s387, 64, 64, 4
        $region52: #{tpu_custom_call.1} parent=47 // pred_fallthru
          _
        // Predicated region
        $region53: #{tpu_custom_call.1} parent=47 // pred_check
          %p404 = pneg %p74
        $region54: #{tpu_custom_call.1} parent=47 // pred_check_branch
          %406 = sbr.rel (%p404) target = $region56
        $region55: #{tpu_custom_call.1} parent=47 // pred_region
          %s407 = sand.u32 %s28, 1
          %s408 = scalar_lea.sflag [#allocation6], %s407
          %s409 = sand.u32 %s64, 1
          %s410 = smul.addr %s409, 64
          %s411 = scalar_lea.vmem [#allocation5], %s410
          %s413 = ssub.s32 1024, 1024
          %414 = vsyncadd %s408, %s413
          %s415 = smul.addr %s28, 16
          %s416 = smul.addr %s415, 64
          %s417 = scalar_lea.hbm %s1, %s416
          %s418 = sshll.u32 %s411, 4
          %s419 = int_to_ptr.vmem [resolvable:$true] %s418
          %424 = dma.hbm_to_vmem [thread:$0]  %s417, 1024, %s419, %s408, 64, 64, 4
        $region56: #{tpu_custom_call.1} parent=47 // pred_fallthru
          _
        // Predicated region
        $region57: #{tpu_custom_call.1} parent=47 // pred_check
          %p425 = pneg %p100
        $region58: #{tpu_custom_call.1} parent=47 // pred_check_branch
          %427 = sbr.rel (%p425) target = $region60
        $region59: #{tpu_custom_call.1} parent=47 // pred_region
          %s428 = sand.u32 %s28, 1
          %s429 = scalar_lea.sflag [#allocation6], %s428
          %s430 = sand.u32 %s90, 1
          %s431 = smul.addr %s430, 64
          %s432 = scalar_lea.vmem [#allocation7], %s431
          %s434 = ssub.s32 1024, 1024
          %435 = vsyncadd %s429, %s434
          %s436 = smul.addr %s28, 16
          %s437 = smul.addr %s436, 64
          %s438 = scalar_lea.hbm %s2, %s437
          %s439 = sshll.u32 %s432, 4
          %s440 = int_to_ptr.vmem [resolvable:$true] %s439
          %445 = dma.hbm_to_vmem [thread:$0]  %s438, 1024, %s440, %s429, 64, 64, 4
        $region60: #{tpu_custom_call.1} parent=47 // pred_fallthru
          _
      $region48: #{tpu_custom_call.1} parent=5 // pred_fallthru
        _
      %p446 = scmp.le.s32.totalorder 1, %s28
      %p447 = scmp.lt.s32.totalorder %s28, 3
      %p448 = pnand %p446, %p447
      %p449 = pneg %p448
      // Predicated region
      $region61: #{tpu_custom_call.1} parent=5 // pred_check
        _
      $region62: #{tpu_custom_call.1} parent=5 // pred_check_branch
        %451 = sbr.rel (%p448) target = $region64
      $region63: #{tpu_custom_call.1} parent=5 // pred_region
        %s452 = ssub.s32 %s28, 1
        %s453 = sand.u32 %s41, 1
        %s454 = scalar_lea.sflag [#allocation3], %s453
        %s455 = sand.u32 %s41, 1
        %s456 = smul.addr %s455, 64
        %s457 = scalar_lea.vmem [#allocation2], %s456
        // Predicated region
        $region65: #{tpu_custom_call.1} parent=63 // pred_check
          %p458 = pneg %p54
        $region66: #{tpu_custom_call.1} parent=63 // pred_check_branch
          %460 = sbr.rel (%p458) target = $region68
        $region67: #{tpu_custom_call.1} parent=63 // pred_region
          %461 = dma.done %s454, 1024
        $region68: #{tpu_custom_call.1} parent=63 // pred_fallthru
          _
        %s462 = sand.u32 %s33, 1
        %s463 = scalar_lea.sflag [#allocation6], %s462
        %s464 = sand.u32 %s67, 1
        %s465 = smul.addr %s464, 64
        %s466 = scalar_lea.vmem [#allocation5], %s465
        // Predicated region
        $region69: #{tpu_custom_call.1} parent=63 // pred_check
          %p467 = pneg %p80
        $region70: #{tpu_custom_call.1} parent=63 // pred_check_branch
          %469 = sbr.rel (%p467) target = $region72
        $region71: #{tpu_custom_call.1} parent=63 // pred_region
          %470 = dma.done %s463, 1024
        $region72: #{tpu_custom_call.1} parent=63 // pred_fallthru
          _
        %s471 = sand.u32 %s33, 1
        %s472 = scalar_lea.sflag [#allocation6], %s471
        %s473 = sand.u32 %s93, 1
        %s474 = smul.addr %s473, 64
        %s475 = scalar_lea.vmem [#allocation7], %s474
        // Predicated region
        $region73: #{tpu_custom_call.1} parent=63 // pred_check
          %p476 = pneg %p106
        $region74: #{tpu_custom_call.1} parent=63 // pred_check_branch
          %478 = sbr.rel (%p476) target = $region76
        $region75: #{tpu_custom_call.1} parent=63 // pred_region
          %479 = dma.done %s472, 1024
        $region76: #{tpu_custom_call.1} parent=63 // pred_fallthru
          _
        // Predicated region
        $region77: #{tpu_custom_call.1} parent=63 // pred_check
          %p480 = pneg %p127
        $region78: #{tpu_custom_call.1} parent=63 // pred_check_branch
          %482 = sbr.rel (%p480) target = $region80
        $region79: #{tpu_custom_call.1} parent=63 // pred_region
          %483 = dma.done [#allocation9], 1024
        $region80: #{tpu_custom_call.1} parent=63 // pred_fallthru
          _
        // Predicated region
        $region81: #{tpu_custom_call.1} parent=63 // pred_check
          %p484 = pneg %p169
        $region82: #{tpu_custom_call.1} parent=63 // pred_check_branch
          %486 = sbr.rel (%p484) target = $region84
        $region83: #{tpu_custom_call.1} parent=63 // pred_region
          %487 = dma.done [#allocation9], 1024
        $region84: #{tpu_custom_call.1} parent=63 // pred_fallthru
          _
        // Predicated region
        $region85: #{tpu_custom_call.1} parent=63 // pred_check
          %p488 = pneg %p211
        $region86: #{tpu_custom_call.1} parent=63 // pred_check_branch
          %490 = sbr.rel (%p488) target = $region88
        $region87: #{tpu_custom_call.1} parent=63 // pred_region
          %491 = dma.done [#allocation12], 1024
        $region88: #{tpu_custom_call.1} parent=63 // pred_fallthru
          _
        // Predicated region
        $region89: #{tpu_custom_call.1} parent=63 // pred_check
          %p492 = pneg %p253
        $region90: #{tpu_custom_call.1} parent=63 // pred_check_branch
          %494 = sbr.rel (%p492) target = $region92
        $region91: #{tpu_custom_call.1} parent=63 // pred_region
          %495 = dma.done [#allocation12], 1024
        $region92: #{tpu_custom_call.1} parent=63 // pred_fallthru
          _
        %s496 = sand.u32 %s41, 1
        %s497 = scalar_lea.sflag [#allocation3], %s496
        %s498 = sand.u32 %s41, 1
        %s499 = smul.addr %s498, 64
        %s500 = scalar_lea.vmem [#allocation2], %s499
        %p501 = pneg %p54
        %p502 = pneg %p51
        %s503 = sand.u32 %s33, 1
        %s504 = scalar_lea.sflag [#allocation6], %s503
        %s505 = sand.u32 %s67, 1
        %s506 = smul.addr %s505, 64
        %s507 = scalar_lea.vmem [#allocation5], %s506
        %p508 = pneg %p80
        %p509 = pneg %p77
        %s510 = sand.u32 %s33, 1
        %s511 = scalar_lea.sflag [#allocation6], %s510
        %s512 = sand.u32 %s93, 1
        %s513 = smul.addr %s512, 64
        %s514 = scalar_lea.vmem [#allocation7], %s513
        %p515 = pneg %p106
        %p516 = pneg %p103
        %p517 = pneg %p127
        %p518 = pneg %p124
        %p519 = pneg %p148
        %p520 = pneg %p145
        %p521 = pneg %p169
        %p522 = pneg %p166
        %p523 = pneg %p190
        %p524 = pneg %p187
        %p525 = pneg %p211
        %p526 = pneg %p208
        %p527 = pneg %p232
        %p528 = pneg %p229
        %p529 = pneg %p253
        %p530 = pneg %p250
        %p531 = pneg %p274
        %p532 = pneg %p271
        %p533 = pneg %p300
        %p534 = pneg %p297
        %s535 = sand.u32 %s287, 1
        %s536 = scalar_lea.sflag [#allocation4], %s535
        %s537 = sand.u32 %s287, 1
        %s538 = smul.addr %s537, 128
        %s539 = scalar_lea.vmem [#allocation14], %s538
        %v541 = vld [vmem:[%s457] sm:$0xf]
        %v542 = vld [vmem:[%s457 + $0x4] sm:$0xf]
        %v543 = vld [vmem:[%s457 + $0x8] sm:$0xf]
        %v544 = vld [vmem:[%s457 + $0xc] sm:$0xf]
        %v545 = vld [vmem:[%s457 + $0x10] sm:$0xf]
        %v546 = vld [vmem:[%s457 + $0x14] sm:$0xf]
        %v547 = vld [vmem:[%s457 + $0x18] sm:$0xf]
        %v548 = vld [vmem:[%s457 + $0x1c] sm:$0xf]
        %v549 = vld [vmem:[%s457 + $0x20] sm:$0xf]
        %v550 = vld [vmem:[%s457 + $0x24] sm:$0xf]
        %v551 = vld [vmem:[%s457 + $0x28] sm:$0xf]
        %v552 = vld [vmem:[%s457 + $0x2c] sm:$0xf]
        %v553 = vld [vmem:[%s457 + $0x30] sm:$0xf]
        %v554 = vld [vmem:[%s457 + $0x34] sm:$0xf]
        %v555 = vld [vmem:[%s457 + $0x38] sm:$0xf]
        %v556 = vld [vmem:[%s457 + $0x3c] sm:$0xf]
        %v557 = vld [vmem:[%s466] sm:$0xf]
        %v558 = vld [vmem:[%s466 + $0x4] sm:$0xf]
        %v559 = vld [vmem:[%s466 + $0x8] sm:$0xf]
        %v560 = vld [vmem:[%s466 + $0xc] sm:$0xf]
        %v561 = vld [vmem:[%s466 + $0x10] sm:$0xf]
        %v562 = vld [vmem:[%s466 + $0x14] sm:$0xf]
        %v563 = vld [vmem:[%s466 + $0x18] sm:$0xf]
        %v564 = vld [vmem:[%s466 + $0x1c] sm:$0xf]
        %v565 = vld [vmem:[%s466 + $0x20] sm:$0xf]
        %v566 = vld [vmem:[%s466 + $0x24] sm:$0xf]
        %v567 = vld [vmem:[%s466 + $0x28] sm:$0xf]
        %v568 = vld [vmem:[%s466 + $0x2c] sm:$0xf]
        %v569 = vld [vmem:[%s466 + $0x30] sm:$0xf]
        %v570 = vld [vmem:[%s466 + $0x34] sm:$0xf]
        %v571 = vld [vmem:[%s466 + $0x38] sm:$0xf]
        %v572 = vld [vmem:[%s466 + $0x3c] sm:$0xf]
        %v573 = vld [vmem:[%s475] sm:$0xf]
        %v574 = vld [vmem:[%s475 + $0x4] sm:$0xf]
        %v575 = vld [vmem:[%s475 + $0x8] sm:$0xf]
        %v576 = vld [vmem:[%s475 + $0xc] sm:$0xf]
        %v577 = vld [vmem:[%s475 + $0x10] sm:$0xf]
        %v578 = vld [vmem:[%s475 + $0x14] sm:$0xf]
        %v579 = vld [vmem:[%s475 + $0x18] sm:$0xf]
        %v580 = vld [vmem:[%s475 + $0x1c] sm:$0xf]
        %v581 = vld [vmem:[%s475 + $0x20] sm:$0xf]
        %v582 = vld [vmem:[%s475 + $0x24] sm:$0xf]
        %v583 = vld [vmem:[%s475 + $0x28] sm:$0xf]
        %v584 = vld [vmem:[%s475 + $0x2c] sm:$0xf]
        %v585 = vld [vmem:[%s475 + $0x30] sm:$0xf]
        %v586 = vld [vmem:[%s475 + $0x34] sm:$0xf]
        %v587 = vld [vmem:[%s475 + $0x38] sm:$0xf]
        %v588 = vld [vmem:[%s475 + $0x3c] sm:$0xf]
        %v589 = vld [vmem:[#allocation8] sm:$0xf]
        %v590 = vld [vmem:[#allocation8 + $0x4] sm:$0xf]
        %v591 = vld [vmem:[#allocation8 + $0x8] sm:$0xf]
        %v592 = vld [vmem:[#allocation8 + $0xc] sm:$0xf]
        %v593 = vld [vmem:[#allocation8 + $0x10] sm:$0xf]
        %v594 = vld [vmem:[#allocation8 + $0x14] sm:$0xf]
        %v595 = vld [vmem:[#allocation8 + $0x18] sm:$0xf]
        %v596 = vld [vmem:[#allocation8 + $0x1c] sm:$0xf]
        %v597 = vld [vmem:[#allocation8 + $0x20] sm:$0xf]
        %v598 = vld [vmem:[#allocation8 + $0x24] sm:$0xf]
        %v599 = vld [vmem:[#allocation8 + $0x28] sm:$0xf]
        %v600 = vld [vmem:[#allocation8 + $0x2c] sm:$0xf]
        %v601 = vld [vmem:[#allocation8 + $0x30] sm:$0xf]
        %v602 = vld [vmem:[#allocation8 + $0x34] sm:$0xf]
        %v603 = vld [vmem:[#allocation8 + $0x38] sm:$0xf]
        %v604 = vld [vmem:[#allocation8 + $0x3c] sm:$0xf]
        %v605 = vld [vmem:[%s4] sm:$0x1]
        %v607 = vlaneseq
        %v608 = vshrl.u32 %v607, 7
        %v609 = vsub.s32 0, %v608
        %v610 = vrot.slane %v605, %v609
        %v628 = vunpack.c.l.b16 %v541
        %v629 = vunpack.c.l.b16 %v542
        %v630 = vunpack.c.l.b16 %v543
        %v631 = vunpack.c.l.b16 %v544
        %v632 = vunpack.c.l.b16 %v545
        %v633 = vunpack.c.l.b16 %v546
        %v634 = vunpack.c.l.b16 %v547
        %v635 = vunpack.c.l.b16 %v548
        %v636 = vunpack.c.l.b16 %v549
        %v637 = vunpack.c.l.b16 %v550
        %v638 = vunpack.c.l.b16 %v551
        %v639 = vunpack.c.l.b16 %v552
        %v640 = vunpack.c.l.b16 %v553
        %v641 = vunpack.c.l.b16 %v554
        %v642 = vunpack.c.l.b16 %v555
        %v643 = vunpack.c.l.b16 %v556
        %v644 = vpack.c.b16 %v629, %v628
        %v645 = vpack.c.b16 %v631, %v630
        %v646 = vpack.c.b16 %v633, %v632
        %v647 = vpack.c.b16 %v635, %v634
        %v648 = vpack.c.b16 %v637, %v636
        %v649 = vpack.c.b16 %v639, %v638
        %v650 = vpack.c.b16 %v641, %v640
        %v651 = vpack.c.b16 %v643, %v642
        %v676 = vunpack.c.l.b16 %v589
        %v677 = vunpack.c.l.b16 %v590
        %v678 = vunpack.c.l.b16 %v591
        %v679 = vunpack.c.l.b16 %v592
        %v680 = vunpack.c.l.b16 %v593
        %v681 = vunpack.c.l.b16 %v594
        %v682 = vunpack.c.l.b16 %v595
        %v683 = vunpack.c.l.b16 %v596
        %v684 = vunpack.c.l.b16 %v597
        %v685 = vunpack.c.l.b16 %v598
        %v686 = vunpack.c.l.b16 %v599
        %v687 = vunpack.c.l.b16 %v600
        %v688 = vunpack.c.l.b16 %v601
        %v689 = vunpack.c.l.b16 %v602
        %v690 = vunpack.c.l.b16 %v603
        %v691 = vunpack.c.l.b16 %v604
        %v692 = vpack.c.b16 %v677, %v676
        %v693 = vpack.c.b16 %v679, %v678
        %v694 = vpack.c.b16 %v681, %v680
        %v695 = vpack.c.b16 %v683, %v682
        %v696 = vpack.c.b16 %v685, %v684
        %v697 = vpack.c.b16 %v687, %v686
        %v698 = vpack.c.b16 %v689, %v688
        %v699 = vpack.c.b16 %v691, %v690
        %708 = vmatprep.subr.bf16.mxu0 0
        %709 = vmatpush1.bf16.msra.mxu0 %v699
        %710 = vmatprep.subr.bf16.mxu0 0
        %711 = vmatpush1.bf16.msra.mxu0 %v698
        %712 = vmatprep.subr.bf16.mxu0 0
        %713 = vmatpush1.bf16.msra.mxu0 %v697
        %714 = vmatprep.subr.bf16.mxu0 0
        %715 = vmatpush1.bf16.msra.mxu0 %v696
        %716 = vmatprep.subr.bf16.mxu0 0
        %717 = vmatpush1.bf16.msra.mxu0 %v695
        %718 = vmatprep.subr.bf16.mxu0 0
        %719 = vmatpush1.bf16.msra.mxu0 %v694
        %720 = vmatprep.subr.bf16.mxu0 0
        %721 = vmatpush1.bf16.msra.mxu0 %v693
        %722 = vmatprep.subr.bf16.mxu0 0
        %723 = vmatpush1.bf16.msra.mxu0 %v692
        %724 = vmatprep.subr.bf16.mxu0 0
        %725 = vmatpush2.bf16.msra.mxu0 0
        %726 = vmatprep.subr.bf16.mxu0 0
        %727 = vmatpush2.bf16.msra.mxu0 0
        %728 = vmatprep.subr.bf16.mxu0 0
        %729 = vmatpush2.bf16.msra.mxu0 0
        %730 = vmatprep.subr.bf16.mxu0 0
        %731 = vmatpush2.bf16.msra.mxu0 0
        %732 = vmatprep.subr.bf16.mxu0 0
        %733 = vmatpush2.bf16.msra.mxu0 0
        %734 = vmatprep.subr.bf16.mxu0 0
        %735 = vmatpush2.bf16.msra.mxu0 0
        %736 = vmatprep.subr.bf16.mxu0 0
        %737 = vmatpush2.bf16.msra.mxu0 0
        %738 = vmatprep.subr.bf16.mxu0 0
        %739 = vmatpush2.bf16.msra.mxu0 0
        %740 = vmatprep.mubr.bf16.mxu0 0
        %741 = vmatmul.mubr.bf16.gmra.mxu0 %v644
        %v742 = vpop.f32.mrf.mxu0
        %v743 = vadd.f32 %v610, %v742
        %v744 = vpop.f32.mrf.mxu0
        %v745 = vpop.f32.mrf.mxu0
        %v746 = vadd.f32 %v610, %v745
        %v747 = vpop.f32.mrf.mxu0
        %748 = vmatprep.mubr.bf16.mxu0 0
        %749 = vmatmul.mubr.bf16.gmra.mxu0 %v645
        %v750 = vpop.f32.mrf.mxu0
        %v751 = vadd.f32 %v610, %v750
        %v752 = vpop.f32.mrf.mxu0
        %v753 = vpop.f32.mrf.mxu0
        %v754 = vadd.f32 %v610, %v753
        %v755 = vpop.f32.mrf.mxu0
        %756 = vmatprep.mubr.bf16.mxu0 0
        %757 = vmatmul.mubr.bf16.gmra.mxu0 %v646
        %v758 = vpop.f32.mrf.mxu0
        %v759 = vadd.f32 %v610, %v758
        %v760 = vpop.f32.mrf.mxu0
        %v761 = vpop.f32.mrf.mxu0
        %v762 = vadd.f32 %v610, %v761
        %v763 = vpop.f32.mrf.mxu0
        %764 = vmatprep.mubr.bf16.mxu0 0
        %765 = vmatmul.mubr.bf16.gmra.mxu0 %v647
        %v766 = vpop.f32.mrf.mxu0
        %v767 = vadd.f32 %v610, %v766
        %v768 = vpop.f32.mrf.mxu0
        %v769 = vpop.f32.mrf.mxu0
        %v770 = vadd.f32 %v610, %v769
        %v771 = vpop.f32.mrf.mxu0
        %772 = vmatprep.mubr.bf16.mxu0 0
        %773 = vmatmul.mubr.bf16.gmra.mxu0 %v648
        %v774 = vpop.f32.mrf.mxu0
        %v775 = vadd.f32 %v610, %v774
        %v776 = vpop.f32.mrf.mxu0
        %v777 = vpop.f32.mrf.mxu0
        %v778 = vadd.f32 %v610, %v777
        %v779 = vpop.f32.mrf.mxu0
        %780 = vmatprep.mubr.bf16.mxu0 0
        %781 = vmatmul.mubr.bf16.gmra.mxu0 %v649
        %v782 = vpop.f32.mrf.mxu0
        %v783 = vadd.f32 %v610, %v782
        %v784 = vpop.f32.mrf.mxu0
        %v785 = vpop.f32.mrf.mxu0
        %v786 = vadd.f32 %v610, %v785
        %v787 = vpop.f32.mrf.mxu0
        %788 = vmatprep.mubr.bf16.mxu0 0
        %789 = vmatmul.mubr.bf16.gmra.mxu0 %v650
        %v790 = vpop.f32.mrf.mxu0
        %v791 = vadd.f32 %v610, %v790
        %v792 = vpop.f32.mrf.mxu0
        %v793 = vpop.f32.mrf.mxu0
        %v794 = vadd.f32 %v610, %v793
        %v795 = vpop.f32.mrf.mxu0
        %796 = vmatprep.mubr.bf16.mxu0 0
        %797 = vmatmul.mubr.bf16.gmra.mxu0 %v651
        %v798 = vpop.f32.mrf.mxu0
        %v799 = vadd.f32 %v610, %v798
        %v800 = vpop.f32.mrf.mxu0
        %v801 = vpop.f32.mrf.mxu0
        %v802 = vadd.f32 %v610, %v801
        %v803 = vpop.f32.mrf.mxu0
        %804 = vdwg.mxu0
        %v805 = vld [vmem:[#allocation10] sm:$0xf]
        %v806 = vld [vmem:[#allocation10 + $0x4] sm:$0xf]
        %v807 = vld [vmem:[#allocation10 + $0x8] sm:$0xf]
        %v808 = vld [vmem:[#allocation10 + $0xc] sm:$0xf]
        %v809 = vld [vmem:[#allocation10 + $0x10] sm:$0xf]
        %v810 = vld [vmem:[#allocation10 + $0x14] sm:$0xf]
        %v811 = vld [vmem:[#allocation10 + $0x18] sm:$0xf]
        %v812 = vld [vmem:[#allocation10 + $0x1c] sm:$0xf]
        %v813 = vld [vmem:[#allocation10 + $0x20] sm:$0xf]
        %v814 = vld [vmem:[#allocation10 + $0x24] sm:$0xf]
        %v815 = vld [vmem:[#allocation10 + $0x28] sm:$0xf]
        %v816 = vld [vmem:[#allocation10 + $0x2c] sm:$0xf]
        %v817 = vld [vmem:[#allocation10 + $0x30] sm:$0xf]
        %v818 = vld [vmem:[#allocation10 + $0x34] sm:$0xf]
        %v819 = vld [vmem:[#allocation10 + $0x38] sm:$0xf]
        %v820 = vld [vmem:[#allocation10 + $0x3c] sm:$0xf]
        %v821 = vld [vmem:[%s6] sm:$0x1]
        %v823 = vlaneseq
        %v824 = vshrl.u32 %v823, 7
        %v825 = vsub.s32 0, %v824
        %v826 = vrot.slane %v821, %v825
        %v844 = vunpack.c.l.b16 %v557
        %v845 = vunpack.c.l.b16 %v558
        %v846 = vunpack.c.l.b16 %v559
        %v847 = vunpack.c.l.b16 %v560
        %v848 = vunpack.c.l.b16 %v561
        %v849 = vunpack.c.l.b16 %v562
        %v850 = vunpack.c.l.b16 %v563
        %v851 = vunpack.c.l.b16 %v564
        %v852 = vunpack.c.l.b16 %v565
        %v853 = vunpack.c.l.b16 %v566
        %v854 = vunpack.c.l.b16 %v567
        %v855 = vunpack.c.l.b16 %v568
        %v856 = vunpack.c.l.b16 %v569
        %v857 = vunpack.c.l.b16 %v570
        %v858 = vunpack.c.l.b16 %v571
        %v859 = vunpack.c.l.b16 %v572
        %v860 = vpack.c.b16 %v845, %v844
        %v861 = vpack.c.b16 %v847, %v846
        %v862 = vpack.c.b16 %v849, %v848
        %v863 = vpack.c.b16 %v851, %v850
        %v864 = vpack.c.b16 %v853, %v852
        %v865 = vpack.c.b16 %v855, %v854
        %v866 = vpack.c.b16 %v857, %v856
        %v867 = vpack.c.b16 %v859, %v858
        %v892 = vunpack.c.l.b16 %v805
        %v893 = vunpack.c.l.b16 %v806
        %v894 = vunpack.c.l.b16 %v807
        %v895 = vunpack.c.l.b16 %v808
        %v896 = vunpack.c.l.b16 %v809
        %v897 = vunpack.c.l.b16 %v810
        %v898 = vunpack.c.l.b16 %v811
        %v899 = vunpack.c.l.b16 %v812
        %v900 = vunpack.c.l.b16 %v813
        %v901 = vunpack.c.l.b16 %v814
        %v902 = vunpack.c.l.b16 %v815
        %v903 = vunpack.c.l.b16 %v816
        %v904 = vunpack.c.l.b16 %v817
        %v905 = vunpack.c.l.b16 %v818
        %v906 = vunpack.c.l.b16 %v819
        %v907 = vunpack.c.l.b16 %v820
        %v908 = vpack.c.b16 %v893, %v892
        %v909 = vpack.c.b16 %v895, %v894
        %v910 = vpack.c.b16 %v897, %v896
        %v911 = vpack.c.b16 %v899, %v898
        %v912 = vpack.c.b16 %v901, %v900
        %v913 = vpack.c.b16 %v903, %v902
        %v914 = vpack.c.b16 %v905, %v904
        %v915 = vpack.c.b16 %v907, %v906
        %924 = vmatprep.subr.bf16.mxu0 0
        %925 = vmatpush1.bf16.msra.mxu0 %v915
        %926 = vmatprep.subr.bf16.mxu0 0
        %927 = vmatpush1.bf16.msra.mxu0 %v914
        %928 = vmatprep.subr.bf16.mxu0 0
        %929 = vmatpush1.bf16.msra.mxu0 %v913
        %930 = vmatprep.subr.bf16.mxu0 0
        %931 = vmatpush1.bf16.msra.mxu0 %v912
        %932 = vmatprep.subr.bf16.mxu0 0
        %933 = vmatpush1.bf16.msra.mxu0 %v911
        %934 = vmatprep.subr.bf16.mxu0 0
        %935 = vmatpush1.bf16.msra.mxu0 %v910
        %936 = vmatprep.subr.bf16.mxu0 0
        %937 = vmatpush1.bf16.msra.mxu0 %v909
        %938 = vmatprep.subr.bf16.mxu0 0
        %939 = vmatpush1.bf16.msra.mxu0 %v908
        %940 = vmatprep.subr.bf16.mxu0 0
        %941 = vmatpush2.bf16.msra.mxu0 0
        %942 = vmatprep.subr.bf16.mxu0 0
        %943 = vmatpush2.bf16.msra.mxu0 0
        %944 = vmatprep.subr.bf16.mxu0 0
        %945 = vmatpush2.bf16.msra.mxu0 0
        %946 = vmatprep.subr.bf16.mxu0 0
        %947 = vmatpush2.bf16.msra.mxu0 0
        %948 = vmatprep.subr.bf16.mxu0 0
        %949 = vmatpush2.bf16.msra.mxu0 0
        %950 = vmatprep.subr.bf16.mxu0 0
        %951 = vmatpush2.bf16.msra.mxu0 0
        %952 = vmatprep.subr.bf16.mxu0 0
        %953 = vmatpush2.bf16.msra.mxu0 0
        %954 = vmatprep.subr.bf16.mxu0 0
        %955 = vmatpush2.bf16.msra.mxu0 0
        %956 = vmatprep.mubr.bf16.mxu0 0
        %957 = vmatmul.mubr.bf16.gmra.mxu0 %v860
        %v958 = vpop.f32.mrf.mxu0
        %v959 = vadd.f32 %v826, %v958
        %v960 = vpop.f32.mrf.mxu0
        %v961 = vpop.f32.mrf.mxu0
        %v962 = vadd.f32 %v826, %v961
        %v963 = vpop.f32.mrf.mxu0
        %964 = vmatprep.mubr.bf16.mxu0 0
        %965 = vmatmul.mubr.bf16.gmra.mxu0 %v861
        %v966 = vpop.f32.mrf.mxu0
        %v967 = vadd.f32 %v826, %v966
        %v968 = vpop.f32.mrf.mxu0
        %v969 = vpop.f32.mrf.mxu0
        %v970 = vadd.f32 %v826, %v969
        %v971 = vpop.f32.mrf.mxu0
        %972 = vmatprep.mubr.bf16.mxu0 0
        %973 = vmatmul.mubr.bf16.gmra.mxu0 %v862
        %v974 = vpop.f32.mrf.mxu0
        %v975 = vadd.f32 %v826, %v974
        %v976 = vpop.f32.mrf.mxu0
        %v977 = vpop.f32.mrf.mxu0
        %v978 = vadd.f32 %v826, %v977
        %v979 = vpop.f32.mrf.mxu0
        %980 = vmatprep.mubr.bf16.mxu0 0
        %981 = vmatmul.mubr.bf16.gmra.mxu0 %v863
        %v982 = vpop.f32.mrf.mxu0
        %v983 = vadd.f32 %v826, %v982
        %v984 = vpop.f32.mrf.mxu0
        %v985 = vpop.f32.mrf.mxu0
        %v986 = vadd.f32 %v826, %v985
        %v987 = vpop.f32.mrf.mxu0
        %988 = vmatprep.mubr.bf16.mxu0 0
        %989 = vmatmul.mubr.bf16.gmra.mxu0 %v864
        %v990 = vpop.f32.mrf.mxu0
        %v991 = vadd.f32 %v826, %v990
        %v992 = vpop.f32.mrf.mxu0
        %v993 = vpop.f32.mrf.mxu0
        %v994 = vadd.f32 %v826, %v993
        %v995 = vpop.f32.mrf.mxu0
        %996 = vmatprep.mubr.bf16.mxu0 0
        %997 = vmatmul.mubr.bf16.gmra.mxu0 %v865
        %v998 = vpop.f32.mrf.mxu0
        %v999 = vadd.f32 %v826, %v998
        %v1000 = vpop.f32.mrf.mxu0
        %v1001 = vpop.f32.mrf.mxu0
        %v1002 = vadd.f32 %v826, %v1001
        %v1003 = vpop.f32.mrf.mxu0
        %1004 = vmatprep.mubr.bf16.mxu0 0
        %1005 = vmatmul.mubr.bf16.gmra.mxu0 %v866
        %v1006 = vpop.f32.mrf.mxu0
        %v1007 = vadd.f32 %v826, %v1006
        %v1008 = vpop.f32.mrf.mxu0
        %v1009 = vpop.f32.mrf.mxu0
        %v1010 = vadd.f32 %v826, %v1009
        %v1011 = vpop.f32.mrf.mxu0
        %1012 = vmatprep.mubr.bf16.mxu0 0
        %1013 = vmatmul.mubr.bf16.gmra.mxu0 %v867
        %v1014 = vpop.f32.mrf.mxu0
        %v1015 = vadd.f32 %v826, %v1014
        %v1016 = vpop.f32.mrf.mxu0
        %v1017 = vpop.f32.mrf.mxu0
        %v1018 = vadd.f32 %v826, %v1017
        %v1019 = vpop.f32.mrf.mxu0
        %1020 = vdwg.mxu0
        %v1021 = vld [vmem:[#allocation11] sm:$0xf]
        %v1022 = vld [vmem:[#allocation11 + $0x4] sm:$0xf]
        %v1023 = vld [vmem:[#allocation11 + $0x8] sm:$0xf]
        %v1024 = vld [vmem:[#allocation11 + $0xc] sm:$0xf]
        %v1025 = vld [vmem:[#allocation11 + $0x10] sm:$0xf]
        %v1026 = vld [vmem:[#allocation11 + $0x14] sm:$0xf]
        %v1027 = vld [vmem:[#allocation11 + $0x18] sm:$0xf]
        %v1028 = vld [vmem:[#allocation11 + $0x1c] sm:$0xf]
        %v1029 = vld [vmem:[#allocation11 + $0x20] sm:$0xf]
        %v1030 = vld [vmem:[#allocation11 + $0x24] sm:$0xf]
        %v1031 = vld [vmem:[#allocation11 + $0x28] sm:$0xf]
        %v1032 = vld [vmem:[#allocation11 + $0x2c] sm:$0xf]
        %v1033 = vld [vmem:[#allocation11 + $0x30] sm:$0xf]
        %v1034 = vld [vmem:[#allocation11 + $0x34] sm:$0xf]
        %v1035 = vld [vmem:[#allocation11 + $0x38] sm:$0xf]
        %v1036 = vld [vmem:[#allocation11 + $0x3c] sm:$0xf]
        %v1037 = vld [vmem:[%s8] sm:$0x1]
        %v1039 = vlaneseq
        %v1040 = vshrl.u32 %v1039, 7
        %v1041 = vsub.s32 0, %v1040
        %v1042 = vrot.slane %v1037, %v1041
        %v1060 = vunpack.c.l.b16 %v573
        %v1061 = vunpack.c.l.b16 %v574
        %v1062 = vunpack.c.l.b16 %v575
        %v1063 = vunpack.c.l.b16 %v576
        %v1064 = vunpack.c.l.b16 %v577
        %v1065 = vunpack.c.l.b16 %v578
        %v1066 = vunpack.c.l.b16 %v579
        %v1067 = vunpack.c.l.b16 %v580
        %v1068 = vunpack.c.l.b16 %v581
        %v1069 = vunpack.c.l.b16 %v582
        %v1070 = vunpack.c.l.b16 %v583
        %v1071 = vunpack.c.l.b16 %v584
        %v1072 = vunpack.c.l.b16 %v585
        %v1073 = vunpack.c.l.b16 %v586
        %v1074 = vunpack.c.l.b16 %v587
        %v1075 = vunpack.c.l.b16 %v588
        %v1076 = vpack.c.b16 %v1061, %v1060
        %v1077 = vpack.c.b16 %v1063, %v1062
        %v1078 = vpack.c.b16 %v1065, %v1064
        %v1079 = vpack.c.b16 %v1067, %v1066
        %v1080 = vpack.c.b16 %v1069, %v1068
        %v1081 = vpack.c.b16 %v1071, %v1070
        %v1082 = vpack.c.b16 %v1073, %v1072
        %v1083 = vpack.c.b16 %v1075, %v1074
        %v1108 = vunpack.c.l.b16 %v1021
        %v1109 = vunpack.c.l.b16 %v1022
        %v1110 = vunpack.c.l.b16 %v1023
        %v1111 = vunpack.c.l.b16 %v1024
        %v1112 = vunpack.c.l.b16 %v1025
        %v1113 = vunpack.c.l.b16 %v1026
        %v1114 = vunpack.c.l.b16 %v1027
        %v1115 = vunpack.c.l.b16 %v1028
        %v1116 = vunpack.c.l.b16 %v1029
        %v1117 = vunpack.c.l.b16 %v1030
        %v1118 = vunpack.c.l.b16 %v1031
        %v1119 = vunpack.c.l.b16 %v1032
        %v1120 = vunpack.c.l.b16 %v1033
        %v1121 = vunpack.c.l.b16 %v1034
        %v1122 = vunpack.c.l.b16 %v1035
        %v1123 = vunpack.c.l.b16 %v1036
        %v1124 = vpack.c.b16 %v1109, %v1108
        %v1125 = vpack.c.b16 %v1111, %v1110
        %v1126 = vpack.c.b16 %v1113, %v1112
        %v1127 = vpack.c.b16 %v1115, %v1114
        %v1128 = vpack.c.b16 %v1117, %v1116
        %v1129 = vpack.c.b16 %v1119, %v1118
        %v1130 = vpack.c.b16 %v1121, %v1120
        %v1131 = vpack.c.b16 %v1123, %v1122
        %1140 = vmatprep.subr.bf16.mxu0 0
        %1141 = vmatpush1.bf16.msra.mxu0 %v1131
        %1142 = vmatprep.subr.bf16.mxu0 0
        %1143 = vmatpush1.bf16.msra.mxu0 %v1130
        %1144 = vmatprep.subr.bf16.mxu0 0
        %1145 = vmatpush1.bf16.msra.mxu0 %v1129
        %1146 = vmatprep.subr.bf16.mxu0 0
        %1147 = vmatpush1.bf16.msra.mxu0 %v1128
        %1148 = vmatprep.subr.bf16.mxu0 0
        %1149 = vmatpush1.bf16.msra.mxu0 %v1127
        %1150 = vmatprep.subr.bf16.mxu0 0
        %1151 = vmatpush1.bf16.msra.mxu0 %v1126
        %1152 = vmatprep.subr.bf16.mxu0 0
        %1153 = vmatpush1.bf16.msra.mxu0 %v1125
        %1154 = vmatprep.subr.bf16.mxu0 0
        %1155 = vmatpush1.bf16.msra.mxu0 %v1124
        %1156 = vmatprep.subr.bf16.mxu0 0
        %1157 = vmatpush2.bf16.msra.mxu0 0
        %1158 = vmatprep.subr.bf16.mxu0 0
        %1159 = vmatpush2.bf16.msra.mxu0 0
        %1160 = vmatprep.subr.bf16.mxu0 0
        %1161 = vmatpush2.bf16.msra.mxu0 0
        %1162 = vmatprep.subr.bf16.mxu0 0
        %1163 = vmatpush2.bf16.msra.mxu0 0
        %1164 = vmatprep.subr.bf16.mxu0 0
        %1165 = vmatpush2.bf16.msra.mxu0 0
        %1166 = vmatprep.subr.bf16.mxu0 0
        %1167 = vmatpush2.bf16.msra.mxu0 0
        %1168 = vmatprep.subr.bf16.mxu0 0
        %1169 = vmatpush2.bf16.msra.mxu0 0
        %1170 = vmatprep.subr.bf16.mxu0 0
        %1171 = vmatpush2.bf16.msra.mxu0 0
        %1172 = vmatprep.mubr.bf16.mxu0 0
        %1173 = vmatmul.mubr.bf16.gmra.mxu0 %v1076
        %v1174 = vpop.f32.mrf.mxu0
        %v1175 = vadd.f32 %v1042, %v1174
        %v1176 = vpop.f32.mrf.mxu0
        %v1177 = vpop.f32.mrf.mxu0
        %v1178 = vadd.f32 %v1042, %v1177
        %v1179 = vpop.f32.mrf.mxu0
        %1180 = vmatprep.mubr.bf16.mxu0 0
        %1181 = vmatmul.mubr.bf16.gmra.mxu0 %v1077
        %v1182 = vpop.f32.mrf.mxu0
        %v1183 = vadd.f32 %v1042, %v1182
        %v1184 = vpop.f32.mrf.mxu0
        %v1185 = vpop.f32.mrf.mxu0
        %v1186 = vadd.f32 %v1042, %v1185
        %v1187 = vpop.f32.mrf.mxu0
        %1188 = vmatprep.mubr.bf16.mxu0 0
        %1189 = vmatmul.mubr.bf16.gmra.mxu0 %v1078
        %v1190 = vpop.f32.mrf.mxu0
        %v1191 = vadd.f32 %v1042, %v1190
        %v1192 = vpop.f32.mrf.mxu0
        %v1193 = vpop.f32.mrf.mxu0
        %v1194 = vadd.f32 %v1042, %v1193
        %v1195 = vpop.f32.mrf.mxu0
        %1196 = vmatprep.mubr.bf16.mxu0 0
        %1197 = vmatmul.mubr.bf16.gmra.mxu0 %v1079
        %v1198 = vpop.f32.mrf.mxu0
        %v1199 = vadd.f32 %v1042, %v1198
        %v1200 = vpop.f32.mrf.mxu0
        %v1201 = vpop.f32.mrf.mxu0
        %v1202 = vadd.f32 %v1042, %v1201
        %v1203 = vpop.f32.mrf.mxu0
        %1204 = vmatprep.mubr.bf16.mxu0 0
        %1205 = vmatmul.mubr.bf16.gmra.mxu0 %v1080
        %v1206 = vpop.f32.mrf.mxu0
        %v1207 = vadd.f32 %v1042, %v1206
        %v1208 = vpop.f32.mrf.mxu0
        %v1209 = vpop.f32.mrf.mxu0
        %v1210 = vadd.f32 %v1042, %v1209
        %v1211 = vpop.f32.mrf.mxu0
        %1212 = vmatprep.mubr.bf16.mxu0 0
        %1213 = vmatmul.mubr.bf16.gmra.mxu0 %v1081
        %v1214 = vpop.f32.mrf.mxu0
        %v1215 = vadd.f32 %v1042, %v1214
        %v1216 = vpop.f32.mrf.mxu0
        %v1217 = vpop.f32.mrf.mxu0
        %v1218 = vadd.f32 %v1042, %v1217
        %v1219 = vpop.f32.mrf.mxu0
        %1220 = vmatprep.mubr.bf16.mxu0 0
        %1221 = vmatmul.mubr.bf16.gmra.mxu0 %v1082
        %v1222 = vpop.f32.mrf.mxu0
        %v1223 = vadd.f32 %v1042, %v1222
        %v1224 = vpop.f32.mrf.mxu0
        %v1225 = vpop.f32.mrf.mxu0
        %v1226 = vadd.f32 %v1042, %v1225
        %v1227 = vpop.f32.mrf.mxu0
        %1228 = vmatprep.mubr.bf16.mxu0 0
        %1229 = vmatmul.mubr.bf16.gmra.mxu0 %v1083
        %v1230 = vpop.f32.mrf.mxu0
        %v1231 = vadd.f32 %v1042, %v1230
        %v1232 = vpop.f32.mrf.mxu0
        %v1233 = vpop.f32.mrf.mxu0
        %v1234 = vadd.f32 %v1042, %v1233
        %v1235 = vpop.f32.mrf.mxu0
        %1236 = vdwg.mxu0
        %v1237 = vmul.f32 %v743, 0.17677669
        %v1238 = vmul.f32 %v746, 0.17677669
        %v1239 = vmul.f32 %v751, 0.17677669
        %v1240 = vmul.f32 %v754, 0.17677669
        %v1241 = vmul.f32 %v759, 0.17677669
        %v1242 = vmul.f32 %v762, 0.17677669
        %v1243 = vmul.f32 %v767, 0.17677669
        %v1244 = vmul.f32 %v770, 0.17677669
        %v1245 = vmul.f32 %v775, 0.17677669
        %v1246 = vmul.f32 %v778, 0.17677669
        %v1247 = vmul.f32 %v783, 0.17677669
        %v1248 = vmul.f32 %v786, 0.17677669
        %v1249 = vmul.f32 %v791, 0.17677669
        %v1250 = vmul.f32 %v794, 0.17677669
        %v1251 = vmul.f32 %v799, 0.17677669
        %v1252 = vmul.f32 %v802, 0.17677669
        %v1253 = vpack.c.bf16 %v1238, %v1237
        %v1254 = vpack.c.bf16 %v1240, %v1239
        %v1255 = vpack.c.bf16 %v1242, %v1241
        %v1256 = vpack.c.bf16 %v1244, %v1243
        %v1257 = vpack.c.bf16 %v1246, %v1245
        %v1258 = vpack.c.bf16 %v1248, %v1247
        %v1259 = vpack.c.bf16 %v1250, %v1249
        %v1260 = vpack.c.bf16 %v1252, %v1251
        %v1261 = vpack.c.bf16 %v962, %v959
        %v1262 = vpack.c.bf16 %v970, %v967
        %v1263 = vpack.c.bf16 %v978, %v975
        %v1264 = vpack.c.bf16 %v986, %v983
        %v1265 = vpack.c.bf16 %v994, %v991
        %v1266 = vpack.c.bf16 %v1002, %v999
        %v1267 = vpack.c.bf16 %v1010, %v1007
        %v1268 = vpack.c.bf16 %v1018, %v1015
        %v1269 = vpack.c.bf16 %v1178, %v1175
        %v1270 = vpack.c.bf16 %v1186, %v1183
        %v1271 = vpack.c.bf16 %v1194, %v1191
        %v1272 = vpack.c.bf16 %v1202, %v1199
        %v1273 = vpack.c.bf16 %v1210, %v1207
        %v1274 = vpack.c.bf16 %v1218, %v1215
        %v1275 = vpack.c.bf16 %v1226, %v1223
        %v1276 = vpack.c.bf16 %v1234, %v1231
        %vm1277 = vcmask 261120
        %v1279 = vsel %vm1277, %v1253, 0
        %v1282 = vsel %vm1277, %v1254, 0
        %v1285 = vsel %vm1277, %v1255, 0
        %v1288 = vsel %vm1277, %v1256, 0
        %v1291 = vsel %vm1277, %v1257, 0
        %v1294 = vsel %vm1277, %v1258, 0
        %v1297 = vsel %vm1277, %v1259, 0
        %v1300 = vsel %vm1277, %v1260, 0
        %v1303 = vsel %vm1277, %v1261, 0
        %v1306 = vsel %vm1277, %v1262, 0
        %v1309 = vsel %vm1277, %v1263, 0
        %v1312 = vsel %vm1277, %v1264, 0
        %v1315 = vsel %vm1277, %v1265, 0
        %v1318 = vsel %vm1277, %v1266, 0
        %v1321 = vsel %vm1277, %v1267, 0
        %v1324 = vsel %vm1277, %v1268, 0
        %1326 = vmatprep.subr.bf16.mxu0 0
        %1327 = vmatpush1.bf16.xpose.msra.mxu0 %v1324
        %1328 = vmatprep.subr.bf16.mxu0 0
        %1329 = vmatpush1.bf16.xpose.msra.mxu0 %v1321
        %1330 = vmatprep.subr.bf16.mxu0 0
        %1331 = vmatpush1.bf16.xpose.msra.mxu0 %v1318
        %1332 = vmatprep.subr.bf16.mxu0 0
        %1333 = vmatpush1.bf16.xpose.msra.mxu0 %v1315
        %1334 = vmatprep.subr.bf16.mxu0 0
        %1335 = vmatpush1.bf16.xpose.msra.mxu0 %v1312
        %1336 = vmatprep.subr.bf16.mxu0 0
        %1337 = vmatpush1.bf16.xpose.msra.mxu0 %v1309
        %1338 = vmatprep.subr.bf16.mxu0 0
        %1339 = vmatpush1.bf16.xpose.msra.mxu0 %v1306
        %1340 = vmatprep.subr.bf16.mxu0 0
        %1341 = vmatpush1.bf16.xpose.msra.mxu0 %v1303
        %1342 = vmatprep.subr.bf16.mxu0 0
        %1343 = vmatpush2.bf16.xpose.msra.mxu0 0
        %1344 = vmatprep.subr.bf16.mxu0 0
        %1345 = vmatpush2.bf16.xpose.msra.mxu0 0
        %1346 = vmatprep.subr.bf16.mxu0 0
        %1347 = vmatpush2.bf16.xpose.msra.mxu0 0
        %1348 = vmatprep.subr.bf16.mxu0 0
        %1349 = vmatpush2.bf16.xpose.msra.mxu0 0
        %1350 = vmatprep.subr.bf16.mxu0 0
        %1351 = vmatpush2.bf16.xpose.msra.mxu0 0
        %1352 = vmatprep.subr.bf16.mxu0 0
        %1353 = vmatpush2.bf16.xpose.msra.mxu0 0
        %1354 = vmatprep.subr.bf16.mxu0 0
        %1355 = vmatpush2.bf16.xpose.msra.mxu0 0
        %1356 = vmatprep.subr.bf16.mxu0 0
        %1357 = vmatpush2.bf16.xpose.msra.mxu0 0
        %1358 = vmatprep.mubr.bf16.mxu0 0
        %1359 = vmatmul.mubr.bf16.gmra.mxu0 %v1279
        %v1360 = vpop.f32.mrf.mxu0
        %v1361 = vadd.f32 0.0, %v1360
        %v1362 = vpop.f32.mrf.mxu0
        %v1363 = vpop.f32.mrf.mxu0
        %v1364 = vadd.f32 0.0, %v1363
        %v1365 = vpop.f32.mrf.mxu0
        %1366 = vmatprep.mubr.bf16.mxu0 0
        %1367 = vmatmul.mubr.bf16.gmra.mxu0 %v1282
        %v1368 = vpop.f32.mrf.mxu0
        %v1369 = vadd.f32 0.0, %v1368
        %v1370 = vpop.f32.mrf.mxu0
        %v1371 = vpop.f32.mrf.mxu0
        %v1372 = vadd.f32 0.0, %v1371
        %v1373 = vpop.f32.mrf.mxu0
        %1374 = vmatprep.mubr.bf16.mxu0 0
        %1375 = vmatmul.mubr.bf16.gmra.mxu0 %v1285
        %v1376 = vpop.f32.mrf.mxu0
        %v1377 = vadd.f32 0.0, %v1376
        %v1378 = vpop.f32.mrf.mxu0
        %v1379 = vpop.f32.mrf.mxu0
        %v1380 = vadd.f32 0.0, %v1379
        %v1381 = vpop.f32.mrf.mxu0
        %1382 = vmatprep.mubr.bf16.mxu0 0
        %1383 = vmatmul.mubr.bf16.gmra.mxu0 %v1288
        %v1384 = vpop.f32.mrf.mxu0
        %v1385 = vadd.f32 0.0, %v1384
        %v1386 = vpop.f32.mrf.mxu0
        %v1387 = vpop.f32.mrf.mxu0
        %v1388 = vadd.f32 0.0, %v1387
        %v1389 = vpop.f32.mrf.mxu0
        %1390 = vmatprep.mubr.bf16.mxu0 0
        %1391 = vmatmul.mubr.bf16.gmra.mxu0 %v1291
        %v1392 = vpop.f32.mrf.mxu0
        %v1393 = vadd.f32 0.0, %v1392
        %v1394 = vpop.f32.mrf.mxu0
        %v1395 = vpop.f32.mrf.mxu0
        %v1396 = vadd.f32 0.0, %v1395
        %v1397 = vpop.f32.mrf.mxu0
        %1398 = vmatprep.mubr.bf16.mxu0 0
        %1399 = vmatmul.mubr.bf16.gmra.mxu0 %v1294
        %v1400 = vpop.f32.mrf.mxu0
        %v1401 = vadd.f32 0.0, %v1400
        %v1402 = vpop.f32.mrf.mxu0
        %v1403 = vpop.f32.mrf.mxu0
        %v1404 = vadd.f32 0.0, %v1403
        %v1405 = vpop.f32.mrf.mxu0
        %1406 = vmatprep.mubr.bf16.mxu0 0
        %1407 = vmatmul.mubr.bf16.gmra.mxu0 %v1297
        %v1408 = vpop.f32.mrf.mxu0
        %v1409 = vadd.f32 0.0, %v1408
        %v1410 = vpop.f32.mrf.mxu0
        %v1411 = vpop.f32.mrf.mxu0
        %v1412 = vadd.f32 0.0, %v1411
        %v1413 = vpop.f32.mrf.mxu0
        %1414 = vmatprep.mubr.bf16.mxu0 0
        %1415 = vmatmul.mubr.bf16.gmra.mxu0 %v1300
        %v1416 = vpop.f32.mrf.mxu0
        %v1417 = vadd.f32 0.0, %v1416
        %v1418 = vpop.f32.mrf.mxu0
        %v1419 = vpop.f32.mrf.mxu0
        %v1420 = vadd.f32 0.0, %v1419
        %v1421 = vpop.f32.mrf.mxu0
        %1422 = vdwg.mxu0
        %1423 = vmax.xlane.f32.xlu0 %v1361
        %v1424 = vpop.xlane.xlu0 %1423
        %1425 = vmax.xlane.f32.xlu0 %v1364
        %v1426 = vpop.xlane.xlu0 %1425
        %1427 = vmax.xlane.f32.xlu0 %v1369
        %v1428 = vpop.xlane.xlu0 %1427
        %1429 = vmax.xlane.f32.xlu0 %v1372
        %v1430 = vpop.xlane.xlu0 %1429
        %1431 = vmax.xlane.f32.xlu0 %v1377
        %v1432 = vpop.xlane.xlu0 %1431
        %1433 = vmax.xlane.f32.xlu0 %v1380
        %v1434 = vpop.xlane.xlu0 %1433
        %1435 = vmax.xlane.f32.xlu0 %v1385
        %v1436 = vpop.xlane.xlu0 %1435
        %1437 = vmax.xlane.f32.xlu0 %v1388
        %v1438 = vpop.xlane.xlu0 %1437
        %1439 = vmax.xlane.f32.xlu0 %v1393
        %v1440 = vpop.xlane.xlu0 %1439
        %1441 = vmax.xlane.f32.xlu0 %v1396
        %v1442 = vpop.xlane.xlu0 %1441
        %1443 = vmax.xlane.f32.xlu0 %v1401
        %v1444 = vpop.xlane.xlu0 %1443
        %1445 = vmax.xlane.f32.xlu0 %v1404
        %v1446 = vpop.xlane.xlu0 %1445
        %1447 = vmax.xlane.f32.xlu0 %v1409
        %v1448 = vpop.xlane.xlu0 %1447
        %1449 = vmax.xlane.f32.xlu0 %v1412
        %v1450 = vpop.xlane.xlu0 %1449
        %1451 = vmax.xlane.f32.xlu0 %v1417
        %v1452 = vpop.xlane.xlu0 %1451
        %1453 = vmax.xlane.f32.xlu0 %v1420
        %v1454 = vpop.xlane.xlu0 %1453
        %v1455 = vsub.f32 %v1361, %v1424
        %v1456 = vsub.f32 %v1364, %v1426
        %v1457 = vsub.f32 %v1369, %v1428
        %v1458 = vsub.f32 %v1372, %v1430
        %v1459 = vsub.f32 %v1377, %v1432
        %v1460 = vsub.f32 %v1380, %v1434
        %v1461 = vsub.f32 %v1385, %v1436
        %v1462 = vsub.f32 %v1388, %v1438
        %v1463 = vsub.f32 %v1393, %v1440
        %v1464 = vsub.f32 %v1396, %v1442
        %v1465 = vsub.f32 %v1401, %v1444
        %v1466 = vsub.f32 %v1404, %v1446
        %v1467 = vsub.f32 %v1409, %v1448
        %v1468 = vsub.f32 %v1412, %v1450
        %v1469 = vsub.f32 %v1417, %v1452
        %v1470 = vsub.f32 %v1420, %v1454
        %v1471 = vmul.f32 %v1455, 1.442695
        %v1472 = vpow.pop %v1471
        %v1473 = vmul.f32 %v1456, 1.442695
        %v1474 = vpow.pop %v1473
        %v1475 = vmul.f32 %v1457, 1.442695
        %v1476 = vpow.pop %v1475
        %v1477 = vmul.f32 %v1458, 1.442695
        %v1478 = vpow.pop %v1477
        %v1479 = vmul.f32 %v1459, 1.442695
        %v1480 = vpow.pop %v1479
        %v1481 = vmul.f32 %v1460, 1.442695
        %v1482 = vpow.pop %v1481
        %v1483 = vmul.f32 %v1461, 1.442695
        %v1484 = vpow.pop %v1483
        %v1485 = vmul.f32 %v1462, 1.442695
        %v1486 = vpow.pop %v1485
        %v1487 = vmul.f32 %v1463, 1.442695
        %v1488 = vpow.pop %v1487
        %v1489 = vmul.f32 %v1464, 1.442695
        %v1490 = vpow.pop %v1489
        %v1491 = vmul.f32 %v1465, 1.442695
        %v1492 = vpow.pop %v1491
        %v1493 = vmul.f32 %v1466, 1.442695
        %v1494 = vpow.pop %v1493
        %v1495 = vmul.f32 %v1467, 1.442695
        %v1496 = vpow.pop %v1495
        %v1497 = vmul.f32 %v1468, 1.442695
        %v1498 = vpow.pop %v1497
        %v1499 = vmul.f32 %v1469, 1.442695
        %v1500 = vpow.pop %v1499
        %v1501 = vmul.f32 %v1470, 1.442695
        %v1502 = vpow.pop %v1501
        %1503 = vadd.xlane.f32.xlu0 %v1472
        %v1504 = vpop.xlane.xlu0 %1503
        %1505 = vadd.xlane.f32.xlu0 %v1474
        %v1506 = vpop.xlane.xlu0 %1505
        %1507 = vadd.xlane.f32.xlu0 %v1476
        %v1508 = vpop.xlane.xlu0 %1507
        %1509 = vadd.xlane.f32.xlu0 %v1478
        %v1510 = vpop.xlane.xlu0 %1509
        %1511 = vadd.xlane.f32.xlu0 %v1480
        %v1512 = vpop.xlane.xlu0 %1511
        %1513 = vadd.xlane.f32.xlu0 %v1482
        %v1514 = vpop.xlane.xlu0 %1513
        %1515 = vadd.xlane.f32.xlu0 %v1484
        %v1516 = vpop.xlane.xlu0 %1515
        %1517 = vadd.xlane.f32.xlu0 %v1486
        %v1518 = vpop.xlane.xlu0 %1517
        %1519 = vadd.xlane.f32.xlu0 %v1488
        %v1520 = vpop.xlane.xlu0 %1519
        %1521 = vadd.xlane.f32.xlu0 %v1490
        %v1522 = vpop.xlane.xlu0 %1521
        %1523 = vadd.xlane.f32.xlu0 %v1492
        %v1524 = vpop.xlane.xlu0 %1523
        %1525 = vadd.xlane.f32.xlu0 %v1494
        %v1526 = vpop.xlane.xlu0 %1525
        %1527 = vadd.xlane.f32.xlu0 %v1496
        %v1528 = vpop.xlane.xlu0 %1527
        %1529 = vadd.xlane.f32.xlu0 %v1498
        %v1530 = vpop.xlane.xlu0 %1529
        %1531 = vadd.xlane.f32.xlu0 %v1500
        %v1532 = vpop.xlane.xlu0 %1531
        %1533 = vadd.xlane.f32.xlu0 %v1502
        %v1534 = vpop.xlane.xlu0 %1533
        %v1535 = vrcp.pop %v1504
        %v1536 = vrcp.pop %v1506
        %v1537 = vrcp.pop %v1508
        %v1538 = vrcp.pop %v1510
        %v1539 = vrcp.pop %v1512
        %v1540 = vrcp.pop %v1514
        %v1541 = vrcp.pop %v1516
        %v1542 = vrcp.pop %v1518
        %v1543 = vrcp.pop %v1520
        %v1544 = vrcp.pop %v1522
        %v1545 = vrcp.pop %v1524
        %v1546 = vrcp.pop %v1526
        %v1547 = vrcp.pop %v1528
        %v1548 = vrcp.pop %v1530
        %v1549 = vrcp.pop %v1532
        %v1550 = vrcp.pop %v1534
        %v1551 = vmul.f32 %v1472, %v1535
        %v1552 = vmul.f32 %v1474, %v1536
        %v1553 = vmul.f32 %v1476, %v1537
        %v1554 = vmul.f32 %v1478, %v1538
        %v1555 = vmul.f32 %v1480, %v1539
        %v1556 = vmul.f32 %v1482, %v1540
        %v1557 = vmul.f32 %v1484, %v1541
        %v1558 = vmul.f32 %v1486, %v1542
        %v1559 = vmul.f32 %v1488, %v1543
        %v1560 = vmul.f32 %v1490, %v1544
        %v1561 = vmul.f32 %v1492, %v1545
        %v1562 = vmul.f32 %v1494, %v1546
        %v1563 = vmul.f32 %v1496, %v1547
        %v1564 = vmul.f32 %v1498, %v1548
        %v1565 = vmul.f32 %v1500, %v1549
        %v1566 = vmul.f32 %v1502, %v1550
        %v1567 = vpack.c.bf16 %v1552, %v1551
        %v1568 = vpack.c.bf16 %v1554, %v1553
        %v1569 = vpack.c.bf16 %v1556, %v1555
        %v1570 = vpack.c.bf16 %v1558, %v1557
        %v1571 = vpack.c.bf16 %v1560, %v1559
        %v1572 = vpack.c.bf16 %v1562, %v1561
        %v1573 = vpack.c.bf16 %v1564, %v1563
        %v1574 = vpack.c.bf16 %v1566, %v1565
        %1575 = vmatprep.subr.bf16.mxu0 0
        %1576 = vmatpush1.bf16.msra.mxu0 %v1276
        %1577 = vmatprep.subr.bf16.mxu0 0
        %1578 = vmatpush1.bf16.msra.mxu0 %v1275
        %1579 = vmatprep.subr.bf16.mxu0 0
        %1580 = vmatpush1.bf16.msra.mxu0 %v1274
        %1581 = vmatprep.subr.bf16.mxu0 0
        %1582 = vmatpush1.bf16.msra.mxu0 %v1273
        %1583 = vmatprep.subr.bf16.mxu0 0
        %1584 = vmatpush1.bf16.msra.mxu0 %v1272
        %1585 = vmatprep.subr.bf16.mxu0 0
        %1586 = vmatpush1.bf16.msra.mxu0 %v1271
        %1587 = vmatprep.subr.bf16.mxu0 0
        %1588 = vmatpush1.bf16.msra.mxu0 %v1270
        %1589 = vmatprep.subr.bf16.mxu0 0
        %1590 = vmatpush1.bf16.msra.mxu0 %v1269
        %1591 = vmatprep.subr.bf16.mxu0 0
        %1592 = vmatpush2.bf16.msra.mxu0 0
        %1593 = vmatprep.subr.bf16.mxu0 0
        %1594 = vmatpush2.bf16.msra.mxu0 0
        %1595 = vmatprep.subr.bf16.mxu0 0
        %1596 = vmatpush2.bf16.msra.mxu0 0
        %1597 = vmatprep.subr.bf16.mxu0 0
        %1598 = vmatpush2.bf16.msra.mxu0 0
        %1599 = vmatprep.subr.bf16.mxu0 0
        %1600 = vmatpush2.bf16.msra.mxu0 0
        %1601 = vmatprep.subr.bf16.mxu0 0
        %1602 = vmatpush2.bf16.msra.mxu0 0
        %1603 = vmatprep.subr.bf16.mxu0 0
        %1604 = vmatpush2.bf16.msra.mxu0 0
        %1605 = vmatprep.subr.bf16.mxu0 0
        %1606 = vmatpush2.bf16.msra.mxu0 0
        %1607 = vmatprep.mubr.bf16.mxu0 0
        %1608 = vmatmul.mubr.bf16.gmra.mxu0 %v1567
        %v1609 = vpop.f32.mrf.mxu0
        %v1610 = vadd.f32 0.0, %v1609
        %v1611 = vpop.f32.mrf.mxu0
        %v1612 = vpop.f32.mrf.mxu0
        %v1613 = vadd.f32 0.0, %v1612
        %v1614 = vpop.f32.mrf.mxu0
        %1615 = vmatprep.mubr.bf16.mxu0 0
        %1616 = vmatmul.mubr.bf16.gmra.mxu0 %v1568
        %v1617 = vpop.f32.mrf.mxu0
        %v1618 = vadd.f32 0.0, %v1617
        %v1619 = vpop.f32.mrf.mxu0
        %v1620 = vpop.f32.mrf.mxu0
        %v1621 = vadd.f32 0.0, %v1620
        %v1622 = vpop.f32.mrf.mxu0
        %1623 = vmatprep.mubr.bf16.mxu0 0
        %1624 = vmatmul.mubr.bf16.gmra.mxu0 %v1569
        %v1625 = vpop.f32.mrf.mxu0
        %v1626 = vadd.f32 0.0, %v1625
        %v1627 = vpop.f32.mrf.mxu0
        %v1628 = vpop.f32.mrf.mxu0
        %v1629 = vadd.f32 0.0, %v1628
        %v1630 = vpop.f32.mrf.mxu0
        %1631 = vmatprep.mubr.bf16.mxu0 0
        %1632 = vmatmul.mubr.bf16.gmra.mxu0 %v1570
        %v1633 = vpop.f32.mrf.mxu0
        %v1634 = vadd.f32 0.0, %v1633
        %v1635 = vpop.f32.mrf.mxu0
        %v1636 = vpop.f32.mrf.mxu0
        %v1637 = vadd.f32 0.0, %v1636
        %v1638 = vpop.f32.mrf.mxu0
        %1639 = vmatprep.mubr.bf16.mxu0 0
        %1640 = vmatmul.mubr.bf16.gmra.mxu0 %v1571
        %v1641 = vpop.f32.mrf.mxu0
        %v1642 = vadd.f32 0.0, %v1641
        %v1643 = vpop.f32.mrf.mxu0
        %v1644 = vpop.f32.mrf.mxu0
        %v1645 = vadd.f32 0.0, %v1644
        %v1646 = vpop.f32.mrf.mxu0
        %1647 = vmatprep.mubr.bf16.mxu0 0
        %1648 = vmatmul.mubr.bf16.gmra.mxu0 %v1572
        %v1649 = vpop.f32.mrf.mxu0
        %v1650 = vadd.f32 0.0, %v1649
        %v1651 = vpop.f32.mrf.mxu0
        %v1652 = vpop.f32.mrf.mxu0
        %v1653 = vadd.f32 0.0, %v1652
        %v1654 = vpop.f32.mrf.mxu0
        %1655 = vmatprep.mubr.bf16.mxu0 0
        %1656 = vmatmul.mubr.bf16.gmra.mxu0 %v1573
        %v1657 = vpop.f32.mrf.mxu0
        %v1658 = vadd.f32 0.0, %v1657
        %v1659 = vpop.f32.mrf.mxu0
        %v1660 = vpop.f32.mrf.mxu0
        %v1661 = vadd.f32 0.0, %v1660
        %v1662 = vpop.f32.mrf.mxu0
        %1663 = vmatprep.mubr.bf16.mxu0 0
        %1664 = vmatmul.mubr.bf16.gmra.mxu0 %v1574
        %v1665 = vpop.f32.mrf.mxu0
        %v1666 = vadd.f32 0.0, %v1665
        %v1667 = vpop.f32.mrf.mxu0
        %v1668 = vpop.f32.mrf.mxu0
        %v1669 = vadd.f32 0.0, %v1668
        %v1670 = vpop.f32.mrf.mxu0
        %1671 = vdwg.mxu0
        %1680 = vrot.lane.b32.xlu0 %v1253, 96
        %v1681 = vpop.permute.xlu0 %1680
        %1682 = vrot.lane.b32.xlu0 %v1254, 96
        %v1683 = vpop.permute.xlu0 %1682
        %1684 = vrot.lane.b32.xlu0 %v1255, 96
        %v1685 = vpop.permute.xlu0 %1684
        %1686 = vrot.lane.b32.xlu0 %v1256, 96
        %v1687 = vpop.permute.xlu0 %1686
        %1688 = vrot.lane.b32.xlu0 %v1257, 96
        %v1689 = vpop.permute.xlu0 %1688
        %1690 = vrot.lane.b32.xlu0 %v1258, 96
        %v1691 = vpop.permute.xlu0 %1690
        %1692 = vrot.lane.b32.xlu0 %v1259, 96
        %v1693 = vpop.permute.xlu0 %1692
        %1694 = vrot.lane.b32.xlu0 %v1260, 96
        %v1695 = vpop.permute.xlu0 %1694
        %1704 = vrot.lane.b32.xlu0 %v1261, 96
        %v1705 = vpop.permute.xlu0 %1704
        %1706 = vrot.lane.b32.xlu0 %v1262, 96
        %v1707 = vpop.permute.xlu0 %1706
        %1708 = vrot.lane.b32.xlu0 %v1263, 96
        %v1709 = vpop.permute.xlu0 %1708
        %1710 = vrot.lane.b32.xlu0 %v1264, 96
        %v1711 = vpop.permute.xlu0 %1710
        %1712 = vrot.lane.b32.xlu0 %v1265, 96
        %v1713 = vpop.permute.xlu0 %1712
        %1714 = vrot.lane.b32.xlu0 %v1266, 96
        %v1715 = vpop.permute.xlu0 %1714
        %1716 = vrot.lane.b32.xlu0 %v1267, 96
        %v1717 = vpop.permute.xlu0 %1716
        %1718 = vrot.lane.b32.xlu0 %v1268, 96
        %v1719 = vpop.permute.xlu0 %1718
        %v1721 = vsel %vm1277, %v1681, 0
        %v1724 = vsel %vm1277, %v1683, 0
        %v1727 = vsel %vm1277, %v1685, 0
        %v1730 = vsel %vm1277, %v1687, 0
        %v1733 = vsel %vm1277, %v1689, 0
        %v1736 = vsel %vm1277, %v1691, 0
        %v1739 = vsel %vm1277, %v1693, 0
        %v1742 = vsel %vm1277, %v1695, 0
        %v1745 = vsel %vm1277, %v1705, 0
        %v1748 = vsel %vm1277, %v1707, 0
        %v1751 = vsel %vm1277, %v1709, 0
        %v1754 = vsel %vm1277, %v1711, 0
        %v1757 = vsel %vm1277, %v1713, 0
        %v1760 = vsel %vm1277, %v1715, 0
        %v1763 = vsel %vm1277, %v1717, 0
        %v1766 = vsel %vm1277, %v1719, 0
        %1768 = vmatprep.subr.bf16.mxu0 0
        %1769 = vmatpush1.bf16.xpose.msra.mxu0 %v1766
        %1770 = vmatprep.subr.bf16.mxu0 0
        %1771 = vmatpush1.bf16.xpose.msra.mxu0 %v1763
        %1772 = vmatprep.subr.bf16.mxu0 0
        %1773 = vmatpush1.bf16.xpose.msra.mxu0 %v1760
        %1774 = vmatprep.subr.bf16.mxu0 0
        %1775 = vmatpush1.bf16.xpose.msra.mxu0 %v1757
        %1776 = vmatprep.subr.bf16.mxu0 0
        %1777 = vmatpush1.bf16.xpose.msra.mxu0 %v1754
        %1778 = vmatprep.subr.bf16.mxu0 0
        %1779 = vmatpush1.bf16.xpose.msra.mxu0 %v1751
        %1780 = vmatprep.subr.bf16.mxu0 0
        %1781 = vmatpush1.bf16.xpose.msra.mxu0 %v1748
        %1782 = vmatprep.subr.bf16.mxu0 0
        %1783 = vmatpush1.bf16.xpose.msra.mxu0 %v1745
        %1784 = vmatprep.subr.bf16.mxu0 0
        %1785 = vmatpush2.bf16.xpose.msra.mxu0 0
        %1786 = vmatprep.subr.bf16.mxu0 0
        %1787 = vmatpush2.bf16.xpose.msra.mxu0 0
        %1788 = vmatprep.subr.bf16.mxu0 0
        %1789 = vmatpush2.bf16.xpose.msra.mxu0 0
        %1790 = vmatprep.subr.bf16.mxu0 0
        %1791 = vmatpush2.bf16.xpose.msra.mxu0 0
        %1792 = vmatprep.subr.bf16.mxu0 0
        %1793 = vmatpush2.bf16.xpose.msra.mxu0 0
        %1794 = vmatprep.subr.bf16.mxu0 0
        %1795 = vmatpush2.bf16.xpose.msra.mxu0 0
        %1796 = vmatprep.subr.bf16.mxu0 0
        %1797 = vmatpush2.bf16.xpose.msra.mxu0 0
        %1798 = vmatprep.subr.bf16.mxu0 0
        %1799 = vmatpush2.bf16.xpose.msra.mxu0 0
        %1800 = vmatprep.mubr.bf16.mxu0 0
        %1801 = vmatmul.mubr.bf16.gmra.mxu0 %v1721
        %v1802 = vpop.f32.mrf.mxu0
        %v1803 = vadd.f32 0.0, %v1802
        %v1804 = vpop.f32.mrf.mxu0
        %v1805 = vpop.f32.mrf.mxu0
        %v1806 = vadd.f32 0.0, %v1805
        %v1807 = vpop.f32.mrf.mxu0
        %1808 = vmatprep.mubr.bf16.mxu0 0
        %1809 = vmatmul.mubr.bf16.gmra.mxu0 %v1724
        %v1810 = vpop.f32.mrf.mxu0
        %v1811 = vadd.f32 0.0, %v1810
        %v1812 = vpop.f32.mrf.mxu0
        %v1813 = vpop.f32.mrf.mxu0
        %v1814 = vadd.f32 0.0, %v1813
        %v1815 = vpop.f32.mrf.mxu0
        %1816 = vmatprep.mubr.bf16.mxu0 0
        %1817 = vmatmul.mubr.bf16.gmra.mxu0 %v1727
        %v1818 = vpop.f32.mrf.mxu0
        %v1819 = vadd.f32 0.0, %v1818
        %v1820 = vpop.f32.mrf.mxu0
        %v1821 = vpop.f32.mrf.mxu0
        %v1822 = vadd.f32 0.0, %v1821
        %v1823 = vpop.f32.mrf.mxu0
        %1824 = vmatprep.mubr.bf16.mxu0 0
        %1825 = vmatmul.mubr.bf16.gmra.mxu0 %v1730
        %v1826 = vpop.f32.mrf.mxu0
        %v1827 = vadd.f32 0.0, %v1826
        %v1828 = vpop.f32.mrf.mxu0
        %v1829 = vpop.f32.mrf.mxu0
        %v1830 = vadd.f32 0.0, %v1829
        %v1831 = vpop.f32.mrf.mxu0
        %1832 = vmatprep.mubr.bf16.mxu0 0
        %1833 = vmatmul.mubr.bf16.gmra.mxu0 %v1733
        %v1834 = vpop.f32.mrf.mxu0
        %v1835 = vadd.f32 0.0, %v1834
        %v1836 = vpop.f32.mrf.mxu0
        %v1837 = vpop.f32.mrf.mxu0
        %v1838 = vadd.f32 0.0, %v1837
        %v1839 = vpop.f32.mrf.mxu0
        %1840 = vmatprep.mubr.bf16.mxu0 0
        %1841 = vmatmul.mubr.bf16.gmra.mxu0 %v1736
        %v1842 = vpop.f32.mrf.mxu0
        %v1843 = vadd.f32 0.0, %v1842
        %v1844 = vpop.f32.mrf.mxu0
        %v1845 = vpop.f32.mrf.mxu0
        %v1846 = vadd.f32 0.0, %v1845
        %v1847 = vpop.f32.mrf.mxu0
        %1848 = vmatprep.mubr.bf16.mxu0 0
        %1849 = vmatmul.mubr.bf16.gmra.mxu0 %v1739
        %v1850 = vpop.f32.mrf.mxu0
        %v1851 = vadd.f32 0.0, %v1850
        %v1852 = vpop.f32.mrf.mxu0
        %v1853 = vpop.f32.mrf.mxu0
        %v1854 = vadd.f32 0.0, %v1853
        %v1855 = vpop.f32.mrf.mxu0
        %1856 = vmatprep.mubr.bf16.mxu0 0
        %1857 = vmatmul.mubr.bf16.gmra.mxu0 %v1742
        %v1858 = vpop.f32.mrf.mxu0
        %v1859 = vadd.f32 0.0, %v1858
        %v1860 = vpop.f32.mrf.mxu0
        %v1861 = vpop.f32.mrf.mxu0
        %v1862 = vadd.f32 0.0, %v1861
        %v1863 = vpop.f32.mrf.mxu0
        %1864 = vdwg.mxu0
        %1865 = vmax.xlane.f32.xlu0 %v1803
        %v1866 = vpop.xlane.xlu0 %1865
        %1867 = vmax.xlane.f32.xlu0 %v1806
        %v1868 = vpop.xlane.xlu0 %1867
        %1869 = vmax.xlane.f32.xlu0 %v1811
        %v1870 = vpop.xlane.xlu0 %1869
        %1871 = vmax.xlane.f32.xlu0 %v1814
        %v1872 = vpop.xlane.xlu0 %1871
        %1873 = vmax.xlane.f32.xlu0 %v1819
        %v1874 = vpop.xlane.xlu0 %1873
        %1875 = vmax.xlane.f32.xlu0 %v1822
        %v1876 = vpop.xlane.xlu0 %1875
        %1877 = vmax.xlane.f32.xlu0 %v1827
        %v1878 = vpop.xlane.xlu0 %1877
        %1879 = vmax.xlane.f32.xlu0 %v1830
        %v1880 = vpop.xlane.xlu0 %1879
        %1881 = vmax.xlane.f32.xlu0 %v1835
        %v1882 = vpop.xlane.xlu0 %1881
        %1883 = vmax.xlane.f32.xlu0 %v1838
        %v1884 = vpop.xlane.xlu0 %1883
        %1885 = vmax.xlane.f32.xlu0 %v1843
        %v1886 = vpop.xlane.xlu0 %1885
        %1887 = vmax.xlane.f32.xlu0 %v1846
        %v1888 = vpop.xlane.xlu0 %1887
        %1889 = vmax.xlane.f32.xlu0 %v1851
        %v1890 = vpop.xlane.xlu0 %1889
        %1891 = vmax.xlane.f32.xlu0 %v1854
        %v1892 = vpop.xlane.xlu0 %1891
        %1893 = vmax.xlane.f32.xlu0 %v1859
        %v1894 = vpop.xlane.xlu0 %1893
        %1895 = vmax.xlane.f32.xlu0 %v1862
        %v1896 = vpop.xlane.xlu0 %1895
        %v1897 = vsub.f32 %v1803, %v1866
        %v1898 = vsub.f32 %v1806, %v1868
        %v1899 = vsub.f32 %v1811, %v1870
        %v1900 = vsub.f32 %v1814, %v1872
        %v1901 = vsub.f32 %v1819, %v1874
        %v1902 = vsub.f32 %v1822, %v1876
        %v1903 = vsub.f32 %v1827, %v1878
        %v1904 = vsub.f32 %v1830, %v1880
        %v1905 = vsub.f32 %v1835, %v1882
        %v1906 = vsub.f32 %v1838, %v1884
        %v1907 = vsub.f32 %v1843, %v1886
        %v1908 = vsub.f32 %v1846, %v1888
        %v1909 = vsub.f32 %v1851, %v1890
        %v1910 = vsub.f32 %v1854, %v1892
        %v1911 = vsub.f32 %v1859, %v1894
        %v1912 = vsub.f32 %v1862, %v1896
        %v1913 = vmul.f32 %v1897, 1.442695
        %v1914 = vpow.pop %v1913
        %v1915 = vmul.f32 %v1898, 1.442695
        %v1916 = vpow.pop %v1915
        %v1917 = vmul.f32 %v1899, 1.442695
        %v1918 = vpow.pop %v1917
        %v1919 = vmul.f32 %v1900, 1.442695
        %v1920 = vpow.pop %v1919
        %v1921 = vmul.f32 %v1901, 1.442695
        %v1922 = vpow.pop %v1921
        %v1923 = vmul.f32 %v1902, 1.442695
        %v1924 = vpow.pop %v1923
        %v1925 = vmul.f32 %v1903, 1.442695
        %v1926 = vpow.pop %v1925
        %v1927 = vmul.f32 %v1904, 1.442695
        %v1928 = vpow.pop %v1927
        %v1929 = vmul.f32 %v1905, 1.442695
        %v1930 = vpow.pop %v1929
        %v1931 = vmul.f32 %v1906, 1.442695
        %v1932 = vpow.pop %v1931
        %v1933 = vmul.f32 %v1907, 1.442695
        %v1934 = vpow.pop %v1933
        %v1935 = vmul.f32 %v1908, 1.442695
        %v1936 = vpow.pop %v1935
        %v1937 = vmul.f32 %v1909, 1.442695
        %v1938 = vpow.pop %v1937
        %v1939 = vmul.f32 %v1910, 1.442695
        %v1940 = vpow.pop %v1939
        %v1941 = vmul.f32 %v1911, 1.442695
        %v1942 = vpow.pop %v1941
        %v1943 = vmul.f32 %v1912, 1.442695
        %v1944 = vpow.pop %v1943
        %1945 = vadd.xlane.f32.xlu0 %v1914
        %v1946 = vpop.xlane.xlu0 %1945
        %1947 = vadd.xlane.f32.xlu0 %v1916
        %v1948 = vpop.xlane.xlu0 %1947
        %1949 = vadd.xlane.f32.xlu0 %v1918
        %v1950 = vpop.xlane.xlu0 %1949
        %1951 = vadd.xlane.f32.xlu0 %v1920
        %v1952 = vpop.xlane.xlu0 %1951
        %1953 = vadd.xlane.f32.xlu0 %v1922
        %v1954 = vpop.xlane.xlu0 %1953
        %1955 = vadd.xlane.f32.xlu0 %v1924
        %v1956 = vpop.xlane.xlu0 %1955
        %1957 = vadd.xlane.f32.xlu0 %v1926
        %v1958 = vpop.xlane.xlu0 %1957
        %1959 = vadd.xlane.f32.xlu0 %v1928
        %v1960 = vpop.xlane.xlu0 %1959
        %1961 = vadd.xlane.f32.xlu0 %v1930
        %v1962 = vpop.xlane.xlu0 %1961
        %1963 = vadd.xlane.f32.xlu0 %v1932
        %v1964 = vpop.xlane.xlu0 %1963
        %1965 = vadd.xlane.f32.xlu0 %v1934
        %v1966 = vpop.xlane.xlu0 %1965
        %1967 = vadd.xlane.f32.xlu0 %v1936
        %v1968 = vpop.xlane.xlu0 %1967
        %1969 = vadd.xlane.f32.xlu0 %v1938
        %v1970 = vpop.xlane.xlu0 %1969
        %1971 = vadd.xlane.f32.xlu0 %v1940
        %v1972 = vpop.xlane.xlu0 %1971
        %1973 = vadd.xlane.f32.xlu0 %v1942
        %v1974 = vpop.xlane.xlu0 %1973
        %1975 = vadd.xlane.f32.xlu0 %v1944
        %v1976 = vpop.xlane.xlu0 %1975
        %v1977 = vrcp.pop %v1946
        %v1978 = vrcp.pop %v1948
        %v1979 = vrcp.pop %v1950
        %v1980 = vrcp.pop %v1952
        %v1981 = vrcp.pop %v1954
        %v1982 = vrcp.pop %v1956
        %v1983 = vrcp.pop %v1958
        %v1984 = vrcp.pop %v1960
        %v1985 = vrcp.pop %v1962
        %v1986 = vrcp.pop %v1964
        %v1987 = vrcp.pop %v1966
        %v1988 = vrcp.pop %v1968
        %v1989 = vrcp.pop %v1970
        %v1990 = vrcp.pop %v1972
        %v1991 = vrcp.pop %v1974
        %v1992 = vrcp.pop %v1976
        %v1993 = vmul.f32 %v1914, %v1977
        %v1994 = vmul.f32 %v1916, %v1978
        %v1995 = vmul.f32 %v1918, %v1979
        %v1996 = vmul.f32 %v1920, %v1980
        %v1997 = vmul.f32 %v1922, %v1981
        %v1998 = vmul.f32 %v1924, %v1982
        %v1999 = vmul.f32 %v1926, %v1983
        %v2000 = vmul.f32 %v1928, %v1984
        %v2001 = vmul.f32 %v1930, %v1985
        %v2002 = vmul.f32 %v1932, %v1986
        %v2003 = vmul.f32 %v1934, %v1987
        %v2004 = vmul.f32 %v1936, %v1988
        %v2005 = vmul.f32 %v1938, %v1989
        %v2006 = vmul.f32 %v1940, %v1990
        %v2007 = vmul.f32 %v1942, %v1991
        %v2008 = vmul.f32 %v1944, %v1992
        %v2009 = vpack.c.bf16 %v1994, %v1993
        %v2010 = vpack.c.bf16 %v1996, %v1995
        %v2011 = vpack.c.bf16 %v1998, %v1997
        %v2012 = vpack.c.bf16 %v2000, %v1999
        %v2013 = vpack.c.bf16 %v2002, %v2001
        %v2014 = vpack.c.bf16 %v2004, %v2003
        %v2015 = vpack.c.bf16 %v2006, %v2005
        %v2016 = vpack.c.bf16 %v2008, %v2007
        %2025 = vrot.lane.b32.xlu0 %v1269, 96
        %v2026 = vpop.permute.xlu0 %2025
        %2027 = vrot.lane.b32.xlu0 %v1270, 96
        %v2028 = vpop.permute.xlu0 %2027
        %2029 = vrot.lane.b32.xlu0 %v1271, 96
        %v2030 = vpop.permute.xlu0 %2029
        %2031 = vrot.lane.b32.xlu0 %v1272, 96
        %v2032 = vpop.permute.xlu0 %2031
        %2033 = vrot.lane.b32.xlu0 %v1273, 96
        %v2034 = vpop.permute.xlu0 %2033
        %2035 = vrot.lane.b32.xlu0 %v1274, 96
        %v2036 = vpop.permute.xlu0 %2035
        %2037 = vrot.lane.b32.xlu0 %v1275, 96
        %v2038 = vpop.permute.xlu0 %2037
        %2039 = vrot.lane.b32.xlu0 %v1276, 96
        %v2040 = vpop.permute.xlu0 %2039
        %2049 = vmatprep.subr.bf16.mxu0 0
        %2050 = vmatpush1.bf16.msra.mxu0 %v2040
        %2051 = vmatprep.subr.bf16.mxu0 0
        %2052 = vmatpush1.bf16.msra.mxu0 %v2038
        %2053 = vmatprep.subr.bf16.mxu0 0
        %2054 = vmatpush1.bf16.msra.mxu0 %v2036
        %2055 = vmatprep.subr.bf16.mxu0 0
        %2056 = vmatpush1.bf16.msra.mxu0 %v2034
        %2057 = vmatprep.subr.bf16.mxu0 0
        %2058 = vmatpush1.bf16.msra.mxu0 %v2032
        %2059 = vmatprep.subr.bf16.mxu0 0
        %2060 = vmatpush1.bf16.msra.mxu0 %v2030
        %2061 = vmatprep.subr.bf16.mxu0 0
        %2062 = vmatpush1.bf16.msra.mxu0 %v2028
        %2063 = vmatprep.subr.bf16.mxu0 0
        %2064 = vmatpush1.bf16.msra.mxu0 %v2026
        %2065 = vmatprep.subr.bf16.mxu0 0
        %2066 = vmatpush2.bf16.msra.mxu0 0
        %2067 = vmatprep.subr.bf16.mxu0 0
        %2068 = vmatpush2.bf16.msra.mxu0 0
        %2069 = vmatprep.subr.bf16.mxu0 0
        %2070 = vmatpush2.bf16.msra.mxu0 0
        %2071 = vmatprep.subr.bf16.mxu0 0
        %2072 = vmatpush2.bf16.msra.mxu0 0
        %2073 = vmatprep.subr.bf16.mxu0 0
        %2074 = vmatpush2.bf16.msra.mxu0 0
        %2075 = vmatprep.subr.bf16.mxu0 0
        %2076 = vmatpush2.bf16.msra.mxu0 0
        %2077 = vmatprep.subr.bf16.mxu0 0
        %2078 = vmatpush2.bf16.msra.mxu0 0
        %2079 = vmatprep.subr.bf16.mxu0 0
        %2080 = vmatpush2.bf16.msra.mxu0 0
        %2081 = vmatprep.mubr.bf16.mxu0 0
        %2082 = vmatmul.mubr.bf16.gmra.mxu0 %v2009
        %v2083 = vpop.f32.mrf.mxu0
        %v2084 = vadd.f32 0.0, %v2083
        %v2085 = vpop.f32.mrf.mxu0
        %v2086 = vpop.f32.mrf.mxu0
        %v2087 = vadd.f32 0.0, %v2086
        %v2088 = vpop.f32.mrf.mxu0
        %2089 = vmatprep.mubr.bf16.mxu0 0
        %2090 = vmatmul.mubr.bf16.gmra.mxu0 %v2010
        %v2091 = vpop.f32.mrf.mxu0
        %v2092 = vadd.f32 0.0, %v2091
        %v2093 = vpop.f32.mrf.mxu0
        %v2094 = vpop.f32.mrf.mxu0
        %v2095 = vadd.f32 0.0, %v2094
        %v2096 = vpop.f32.mrf.mxu0
        %2097 = vmatprep.mubr.bf16.mxu0 0
        %2098 = vmatmul.mubr.bf16.gmra.mxu0 %v2011
        %v2099 = vpop.f32.mrf.mxu0
        %v2100 = vadd.f32 0.0, %v2099
        %v2101 = vpop.f32.mrf.mxu0
        %v2102 = vpop.f32.mrf.mxu0
        %v2103 = vadd.f32 0.0, %v2102
        %v2104 = vpop.f32.mrf.mxu0
        %2105 = vmatprep.mubr.bf16.mxu0 0
        %2106 = vmatmul.mubr.bf16.gmra.mxu0 %v2012
        %v2107 = vpop.f32.mrf.mxu0
        %v2108 = vadd.f32 0.0, %v2107
        %v2109 = vpop.f32.mrf.mxu0
        %v2110 = vpop.f32.mrf.mxu0
        %v2111 = vadd.f32 0.0, %v2110
        %v2112 = vpop.f32.mrf.mxu0
        %2113 = vmatprep.mubr.bf16.mxu0 0
        %2114 = vmatmul.mubr.bf16.gmra.mxu0 %v2013
        %v2115 = vpop.f32.mrf.mxu0
        %v2116 = vadd.f32 0.0, %v2115
        %v2117 = vpop.f32.mrf.mxu0
        %v2118 = vpop.f32.mrf.mxu0
        %v2119 = vadd.f32 0.0, %v2118
        %v2120 = vpop.f32.mrf.mxu0
        %2121 = vmatprep.mubr.bf16.mxu0 0
        %2122 = vmatmul.mubr.bf16.gmra.mxu0 %v2014
        %v2123 = vpop.f32.mrf.mxu0
        %v2124 = vadd.f32 0.0, %v2123
        %v2125 = vpop.f32.mrf.mxu0
        %v2126 = vpop.f32.mrf.mxu0
        %v2127 = vadd.f32 0.0, %v2126
        %v2128 = vpop.f32.mrf.mxu0
        %2129 = vmatprep.mubr.bf16.mxu0 0
        %2130 = vmatmul.mubr.bf16.gmra.mxu0 %v2015
        %v2131 = vpop.f32.mrf.mxu0
        %v2132 = vadd.f32 0.0, %v2131
        %v2133 = vpop.f32.mrf.mxu0
        %v2134 = vpop.f32.mrf.mxu0
        %v2135 = vadd.f32 0.0, %v2134
        %v2136 = vpop.f32.mrf.mxu0
        %2137 = vmatprep.mubr.bf16.mxu0 0
        %2138 = vmatmul.mubr.bf16.gmra.mxu0 %v2016
        %v2139 = vpop.f32.mrf.mxu0
        %v2140 = vadd.f32 0.0, %v2139
        %v2141 = vpop.f32.mrf.mxu0
        %v2142 = vpop.f32.mrf.mxu0
        %v2143 = vadd.f32 0.0, %v2142
        %v2144 = vpop.f32.mrf.mxu0
        %2145 = vdwg.mxu0
        %2146 = vrot.lane.b32.xlu0 %v1253, 64
        %v2147 = vpop.permute.xlu0 %2146
        %2148 = vrot.lane.b32.xlu0 %v1254, 64
        %v2149 = vpop.permute.xlu0 %2148
        %2150 = vrot.lane.b32.xlu0 %v1255, 64
        %v2151 = vpop.permute.xlu0 %2150
        %2152 = vrot.lane.b32.xlu0 %v1256, 64
        %v2153 = vpop.permute.xlu0 %2152
        %2154 = vrot.lane.b32.xlu0 %v1257, 64
        %v2155 = vpop.permute.xlu0 %2154
        %2156 = vrot.lane.b32.xlu0 %v1258, 64
        %v2157 = vpop.permute.xlu0 %2156
        %2158 = vrot.lane.b32.xlu0 %v1259, 64
        %v2159 = vpop.permute.xlu0 %2158
        %2160 = vrot.lane.b32.xlu0 %v1260, 64
        %v2161 = vpop.permute.xlu0 %2160
        %2162 = vrot.lane.b32.xlu0 %v1261, 64
        %v2163 = vpop.permute.xlu0 %2162
        %2164 = vrot.lane.b32.xlu0 %v1262, 64
        %v2165 = vpop.permute.xlu0 %2164
        %2166 = vrot.lane.b32.xlu0 %v1263, 64
        %v2167 = vpop.permute.xlu0 %2166
        %2168 = vrot.lane.b32.xlu0 %v1264, 64
        %v2169 = vpop.permute.xlu0 %2168
        %2170 = vrot.lane.b32.xlu0 %v1265, 64
        %v2171 = vpop.permute.xlu0 %2170
        %2172 = vrot.lane.b32.xlu0 %v1266, 64
        %v2173 = vpop.permute.xlu0 %2172
        %2174 = vrot.lane.b32.xlu0 %v1267, 64
        %v2175 = vpop.permute.xlu0 %2174
        %2176 = vrot.lane.b32.xlu0 %v1268, 64
        %v2177 = vpop.permute.xlu0 %2176
        %v2179 = vsel %vm1277, %v2147, 0
        %v2182 = vsel %vm1277, %v2149, 0
        %v2185 = vsel %vm1277, %v2151, 0
        %v2188 = vsel %vm1277, %v2153, 0
        %v2191 = vsel %vm1277, %v2155, 0
        %v2194 = vsel %vm1277, %v2157, 0
        %v2197 = vsel %vm1277, %v2159, 0
        %v2200 = vsel %vm1277, %v2161, 0
        %v2203 = vsel %vm1277, %v2163, 0
        %v2206 = vsel %vm1277, %v2165, 0
        %v2209 = vsel %vm1277, %v2167, 0
        %v2212 = vsel %vm1277, %v2169, 0
        %v2215 = vsel %vm1277, %v2171, 0
        %v2218 = vsel %vm1277, %v2173, 0
        %v2221 = vsel %vm1277, %v2175, 0
        %v2224 = vsel %vm1277, %v2177, 0
        %2226 = vmatprep.subr.bf16.mxu0 0
        %2227 = vmatpush1.bf16.xpose.msra.mxu0 %v2224
        %2228 = vmatprep.subr.bf16.mxu0 0
        %2229 = vmatpush1.bf16.xpose.msra.mxu0 %v2221
        %2230 = vmatprep.subr.bf16.mxu0 0
        %2231 = vmatpush1.bf16.xpose.msra.mxu0 %v2218
        %2232 = vmatprep.subr.bf16.mxu0 0
        %2233 = vmatpush1.bf16.xpose.msra.mxu0 %v2215
        %2234 = vmatprep.subr.bf16.mxu0 0
        %2235 = vmatpush1.bf16.xpose.msra.mxu0 %v2212
        %2236 = vmatprep.subr.bf16.mxu0 0
        %2237 = vmatpush1.bf16.xpose.msra.mxu0 %v2209
        %2238 = vmatprep.subr.bf16.mxu0 0
        %2239 = vmatpush1.bf16.xpose.msra.mxu0 %v2206
        %2240 = vmatprep.subr.bf16.mxu0 0
        %2241 = vmatpush1.bf16.xpose.msra.mxu0 %v2203
        %2242 = vmatprep.subr.bf16.mxu0 0
        %2243 = vmatpush2.bf16.xpose.msra.mxu0 0
        %2244 = vmatprep.subr.bf16.mxu0 0
        %2245 = vmatpush2.bf16.xpose.msra.mxu0 0
        %2246 = vmatprep.subr.bf16.mxu0 0
        %2247 = vmatpush2.bf16.xpose.msra.mxu0 0
        %2248 = vmatprep.subr.bf16.mxu0 0
        %2249 = vmatpush2.bf16.xpose.msra.mxu0 0
        %2250 = vmatprep.subr.bf16.mxu0 0
        %2251 = vmatpush2.bf16.xpose.msra.mxu0 0
        %2252 = vmatprep.subr.bf16.mxu0 0
        %2253 = vmatpush2.bf16.xpose.msra.mxu0 0
        %2254 = vmatprep.subr.bf16.mxu0 0
        %2255 = vmatpush2.bf16.xpose.msra.mxu0 0
        %2256 = vmatprep.subr.bf16.mxu0 0
        %2257 = vmatpush2.bf16.xpose.msra.mxu0 0
        %2258 = vmatprep.mubr.bf16.mxu0 0
        %2259 = vmatmul.mubr.bf16.gmra.mxu0 %v2179
        %v2260 = vpop.f32.mrf.mxu0
        %v2261 = vadd.f32 0.0, %v2260
        %v2262 = vpop.f32.mrf.mxu0
        %v2263 = vpop.f32.mrf.mxu0
        %v2264 = vadd.f32 0.0, %v2263
        %v2265 = vpop.f32.mrf.mxu0
        %2266 = vmatprep.mubr.bf16.mxu0 0
        %2267 = vmatmul.mubr.bf16.gmra.mxu0 %v2182
        %v2268 = vpop.f32.mrf.mxu0
        %v2269 = vadd.f32 0.0, %v2268
        %v2270 = vpop.f32.mrf.mxu0
        %v2271 = vpop.f32.mrf.mxu0
        %v2272 = vadd.f32 0.0, %v2271
        %v2273 = vpop.f32.mrf.mxu0
        %2274 = vmatprep.mubr.bf16.mxu0 0
        %2275 = vmatmul.mubr.bf16.gmra.mxu0 %v2185
        %v2276 = vpop.f32.mrf.mxu0
        %v2277 = vadd.f32 0.0, %v2276
        %v2278 = vpop.f32.mrf.mxu0
        %v2279 = vpop.f32.mrf.mxu0
        %v2280 = vadd.f32 0.0, %v2279
        %v2281 = vpop.f32.mrf.mxu0
        %2282 = vmatprep.mubr.bf16.mxu0 0
        %2283 = vmatmul.mubr.bf16.gmra.mxu0 %v2188
        %v2284 = vpop.f32.mrf.mxu0
        %v2285 = vadd.f32 0.0, %v2284
        %v2286 = vpop.f32.mrf.mxu0
        %v2287 = vpop.f32.mrf.mxu0
        %v2288 = vadd.f32 0.0, %v2287
        %v2289 = vpop.f32.mrf.mxu0
        %2290 = vmatprep.mubr.bf16.mxu0 0
        %2291 = vmatmul.mubr.bf16.gmra.mxu0 %v2191
        %v2292 = vpop.f32.mrf.mxu0
        %v2293 = vadd.f32 0.0, %v2292
        %v2294 = vpop.f32.mrf.mxu0
        %v2295 = vpop.f32.mrf.mxu0
        %v2296 = vadd.f32 0.0, %v2295
        %v2297 = vpop.f32.mrf.mxu0
        %2298 = vmatprep.mubr.bf16.mxu0 0
        %2299 = vmatmul.mubr.bf16.gmra.mxu0 %v2194
        %v2300 = vpop.f32.mrf.mxu0
        %v2301 = vadd.f32 0.0, %v2300
        %v2302 = vpop.f32.mrf.mxu0
        %v2303 = vpop.f32.mrf.mxu0
        %v2304 = vadd.f32 0.0, %v2303
        %v2305 = vpop.f32.mrf.mxu0
        %2306 = vmatprep.mubr.bf16.mxu0 0
        %2307 = vmatmul.mubr.bf16.gmra.mxu0 %v2197
        %v2308 = vpop.f32.mrf.mxu0
        %v2309 = vadd.f32 0.0, %v2308
        %v2310 = vpop.f32.mrf.mxu0
        %v2311 = vpop.f32.mrf.mxu0
        %v2312 = vadd.f32 0.0, %v2311
        %v2313 = vpop.f32.mrf.mxu0
        %2314 = vmatprep.mubr.bf16.mxu0 0
        %2315 = vmatmul.mubr.bf16.gmra.mxu0 %v2200
        %v2316 = vpop.f32.mrf.mxu0
        %v2317 = vadd.f32 0.0, %v2316
        %v2318 = vpop.f32.mrf.mxu0
        %v2319 = vpop.f32.mrf.mxu0
        %v2320 = vadd.f32 0.0, %v2319
        %v2321 = vpop.f32.mrf.mxu0
        %2322 = vdwg.mxu0
        %2323 = vmax.xlane.f32.xlu0 %v2261
        %v2324 = vpop.xlane.xlu0 %2323
        %2325 = vmax.xlane.f32.xlu0 %v2264
        %v2326 = vpop.xlane.xlu0 %2325
        %2327 = vmax.xlane.f32.xlu0 %v2269
        %v2328 = vpop.xlane.xlu0 %2327
        %2329 = vmax.xlane.f32.xlu0 %v2272
        %v2330 = vpop.xlane.xlu0 %2329
        %2331 = vmax.xlane.f32.xlu0 %v2277
        %v2332 = vpop.xlane.xlu0 %2331
        %2333 = vmax.xlane.f32.xlu0 %v2280
        %v2334 = vpop.xlane.xlu0 %2333
        %2335 = vmax.xlane.f32.xlu0 %v2285
        %v2336 = vpop.xlane.xlu0 %2335
        %2337 = vmax.xlane.f32.xlu0 %v2288
        %v2338 = vpop.xlane.xlu0 %2337
        %2339 = vmax.xlane.f32.xlu0 %v2293
        %v2340 = vpop.xlane.xlu0 %2339
        %2341 = vmax.xlane.f32.xlu0 %v2296
        %v2342 = vpop.xlane.xlu0 %2341
        %2343 = vmax.xlane.f32.xlu0 %v2301
        %v2344 = vpop.xlane.xlu0 %2343
        %2345 = vmax.xlane.f32.xlu0 %v2304
        %v2346 = vpop.xlane.xlu0 %2345
        %2347 = vmax.xlane.f32.xlu0 %v2309
        %v2348 = vpop.xlane.xlu0 %2347
        %2349 = vmax.xlane.f32.xlu0 %v2312
        %v2350 = vpop.xlane.xlu0 %2349
        %2351 = vmax.xlane.f32.xlu0 %v2317
        %v2352 = vpop.xlane.xlu0 %2351
        %2353 = vmax.xlane.f32.xlu0 %v2320
        %v2354 = vpop.xlane.xlu0 %2353
        %v2355 = vsub.f32 %v2261, %v2324
        %v2356 = vsub.f32 %v2264, %v2326
        %v2357 = vsub.f32 %v2269, %v2328
        %v2358 = vsub.f32 %v2272, %v2330
        %v2359 = vsub.f32 %v2277, %v2332
        %v2360 = vsub.f32 %v2280, %v2334
        %v2361 = vsub.f32 %v2285, %v2336
        %v2362 = vsub.f32 %v2288, %v2338
        %v2363 = vsub.f32 %v2293, %v2340
        %v2364 = vsub.f32 %v2296, %v2342
        %v2365 = vsub.f32 %v2301, %v2344
        %v2366 = vsub.f32 %v2304, %v2346
        %v2367 = vsub.f32 %v2309, %v2348
        %v2368 = vsub.f32 %v2312, %v2350
        %v2369 = vsub.f32 %v2317, %v2352
        %v2370 = vsub.f32 %v2320, %v2354
        %v2371 = vmul.f32 %v2355, 1.442695
        %v2372 = vpow.pop %v2371
        %v2373 = vmul.f32 %v2356, 1.442695
        %v2374 = vpow.pop %v2373
        %v2375 = vmul.f32 %v2357, 1.442695
        %v2376 = vpow.pop %v2375
        %v2377 = vmul.f32 %v2358, 1.442695
        %v2378 = vpow.pop %v2377
        %v2379 = vmul.f32 %v2359, 1.442695
        %v2380 = vpow.pop %v2379
        %v2381 = vmul.f32 %v2360, 1.442695
        %v2382 = vpow.pop %v2381
        %v2383 = vmul.f32 %v2361, 1.442695
        %v2384 = vpow.pop %v2383
        %v2385 = vmul.f32 %v2362, 1.442695
        %v2386 = vpow.pop %v2385
        %v2387 = vmul.f32 %v2363, 1.442695
        %v2388 = vpow.pop %v2387
        %v2389 = vmul.f32 %v2364, 1.442695
        %v2390 = vpow.pop %v2389
        %v2391 = vmul.f32 %v2365, 1.442695
        %v2392 = vpow.pop %v2391
        %v2393 = vmul.f32 %v2366, 1.442695
        %v2394 = vpow.pop %v2393
        %v2395 = vmul.f32 %v2367, 1.442695
        %v2396 = vpow.pop %v2395
        %v2397 = vmul.f32 %v2368, 1.442695
        %v2398 = vpow.pop %v2397
        %v2399 = vmul.f32 %v2369, 1.442695
        %v2400 = vpow.pop %v2399
        %v2401 = vmul.f32 %v2370, 1.442695
        %v2402 = vpow.pop %v2401
        %2403 = vadd.xlane.f32.xlu0 %v2372
        %v2404 = vpop.xlane.xlu0 %2403
        %2405 = vadd.xlane.f32.xlu0 %v2374
        %v2406 = vpop.xlane.xlu0 %2405
        %2407 = vadd.xlane.f32.xlu0 %v2376
        %v2408 = vpop.xlane.xlu0 %2407
        %2409 = vadd.xlane.f32.xlu0 %v2378
        %v2410 = vpop.xlane.xlu0 %2409
        %2411 = vadd.xlane.f32.xlu0 %v2380
        %v2412 = vpop.xlane.xlu0 %2411
        %2413 = vadd.xlane.f32.xlu0 %v2382
        %v2414 = vpop.xlane.xlu0 %2413
        %2415 = vadd.xlane.f32.xlu0 %v2384
        %v2416 = vpop.xlane.xlu0 %2415
        %2417 = vadd.xlane.f32.xlu0 %v2386
        %v2418 = vpop.xlane.xlu0 %2417
        %2419 = vadd.xlane.f32.xlu0 %v2388
        %v2420 = vpop.xlane.xlu0 %2419
        %2421 = vadd.xlane.f32.xlu0 %v2390
        %v2422 = vpop.xlane.xlu0 %2421
        %2423 = vadd.xlane.f32.xlu0 %v2392
        %v2424 = vpop.xlane.xlu0 %2423
        %2425 = vadd.xlane.f32.xlu0 %v2394
        %v2426 = vpop.xlane.xlu0 %2425
        %2427 = vadd.xlane.f32.xlu0 %v2396
        %v2428 = vpop.xlane.xlu0 %2427
        %2429 = vadd.xlane.f32.xlu0 %v2398
        %v2430 = vpop.xlane.xlu0 %2429
        %2431 = vadd.xlane.f32.xlu0 %v2400
        %v2432 = vpop.xlane.xlu0 %2431
        %2433 = vadd.xlane.f32.xlu0 %v2402
        %v2434 = vpop.xlane.xlu0 %2433
        %v2435 = vrcp.pop %v2404
        %v2436 = vrcp.pop %v2406
        %v2437 = vrcp.pop %v2408
        %v2438 = vrcp.pop %v2410
        %v2439 = vrcp.pop %v2412
        %v2440 = vrcp.pop %v2414
        %v2441 = vrcp.pop %v2416
        %v2442 = vrcp.pop %v2418
        %v2443 = vrcp.pop %v2420
        %v2444 = vrcp.pop %v2422
        %v2445 = vrcp.pop %v2424
        %v2446 = vrcp.pop %v2426
        %v2447 = vrcp.pop %v2428
        %v2448 = vrcp.pop %v2430
        %v2449 = vrcp.pop %v2432
        %v2450 = vrcp.pop %v2434
        %v2451 = vmul.f32 %v2372, %v2435
        %v2452 = vmul.f32 %v2374, %v2436
        %v2453 = vmul.f32 %v2376, %v2437
        %v2454 = vmul.f32 %v2378, %v2438
        %v2455 = vmul.f32 %v2380, %v2439
        %v2456 = vmul.f32 %v2382, %v2440
        %v2457 = vmul.f32 %v2384, %v2441
        %v2458 = vmul.f32 %v2386, %v2442
        %v2459 = vmul.f32 %v2388, %v2443
        %v2460 = vmul.f32 %v2390, %v2444
        %v2461 = vmul.f32 %v2392, %v2445
        %v2462 = vmul.f32 %v2394, %v2446
        %v2463 = vmul.f32 %v2396, %v2447
        %v2464 = vmul.f32 %v2398, %v2448
        %v2465 = vmul.f32 %v2400, %v2449
        %v2466 = vmul.f32 %v2402, %v2450
        %v2467 = vpack.c.bf16 %v2452, %v2451
        %v2468 = vpack.c.bf16 %v2454, %v2453
        %v2469 = vpack.c.bf16 %v2456, %v2455
        %v2470 = vpack.c.bf16 %v2458, %v2457
        %v2471 = vpack.c.bf16 %v2460, %v2459
        %v2472 = vpack.c.bf16 %v2462, %v2461
        %v2473 = vpack.c.bf16 %v2464, %v2463
        %v2474 = vpack.c.bf16 %v2466, %v2465
        %2475 = vrot.lane.b32.xlu0 %v1269, 64
        %v2476 = vpop.permute.xlu0 %2475
        %2477 = vrot.lane.b32.xlu0 %v1270, 64
        %v2478 = vpop.permute.xlu0 %2477
        %2479 = vrot.lane.b32.xlu0 %v1271, 64
        %v2480 = vpop.permute.xlu0 %2479
        %2481 = vrot.lane.b32.xlu0 %v1272, 64
        %v2482 = vpop.permute.xlu0 %2481
        %2483 = vrot.lane.b32.xlu0 %v1273, 64
        %v2484 = vpop.permute.xlu0 %2483
        %2485 = vrot.lane.b32.xlu0 %v1274, 64
        %v2486 = vpop.permute.xlu0 %2485
        %2487 = vrot.lane.b32.xlu0 %v1275, 64
        %v2488 = vpop.permute.xlu0 %2487
        %2489 = vrot.lane.b32.xlu0 %v1276, 64
        %v2490 = vpop.permute.xlu0 %2489
        %2499 = vmatprep.subr.bf16.mxu0 0
        %2500 = vmatpush1.bf16.msra.mxu0 %v2490
        %2501 = vmatprep.subr.bf16.mxu0 0
        %2502 = vmatpush1.bf16.msra.mxu0 %v2488
        %2503 = vmatprep.subr.bf16.mxu0 0
        %2504 = vmatpush1.bf16.msra.mxu0 %v2486
        %2505 = vmatprep.subr.bf16.mxu0 0
        %2506 = vmatpush1.bf16.msra.mxu0 %v2484
        %2507 = vmatprep.subr.bf16.mxu0 0
        %2508 = vmatpush1.bf16.msra.mxu0 %v2482
        %2509 = vmatprep.subr.bf16.mxu0 0
        %2510 = vmatpush1.bf16.msra.mxu0 %v2480
        %2511 = vmatprep.subr.bf16.mxu0 0
        %2512 = vmatpush1.bf16.msra.mxu0 %v2478
        %2513 = vmatprep.subr.bf16.mxu0 0
        %2514 = vmatpush1.bf16.msra.mxu0 %v2476
        %2515 = vmatprep.subr.bf16.mxu0 0
        %2516 = vmatpush2.bf16.msra.mxu0 0
        %2517 = vmatprep.subr.bf16.mxu0 0
        %2518 = vmatpush2.bf16.msra.mxu0 0
        %2519 = vmatprep.subr.bf16.mxu0 0
        %2520 = vmatpush2.bf16.msra.mxu0 0
        %2521 = vmatprep.subr.bf16.mxu0 0
        %2522 = vmatpush2.bf16.msra.mxu0 0
        %2523 = vmatprep.subr.bf16.mxu0 0
        %2524 = vmatpush2.bf16.msra.mxu0 0
        %2525 = vmatprep.subr.bf16.mxu0 0
        %2526 = vmatpush2.bf16.msra.mxu0 0
        %2527 = vmatprep.subr.bf16.mxu0 0
        %2528 = vmatpush2.bf16.msra.mxu0 0
        %2529 = vmatprep.subr.bf16.mxu0 0
        %2530 = vmatpush2.bf16.msra.mxu0 0
        %2531 = vmatprep.mubr.bf16.mxu0 0
        %2532 = vmatmul.mubr.bf16.gmra.mxu0 %v2467
        %v2533 = vpop.f32.mrf.mxu0
        %v2534 = vadd.f32 0.0, %v2533
        %v2535 = vpop.f32.mrf.mxu0
        %v2536 = vpop.f32.mrf.mxu0
        %v2537 = vadd.f32 0.0, %v2536
        %v2538 = vpop.f32.mrf.mxu0
        %2539 = vmatprep.mubr.bf16.mxu0 0
        %2540 = vmatmul.mubr.bf16.gmra.mxu0 %v2468
        %v2541 = vpop.f32.mrf.mxu0
        %v2542 = vadd.f32 0.0, %v2541
        %v2543 = vpop.f32.mrf.mxu0
        %v2544 = vpop.f32.mrf.mxu0
        %v2545 = vadd.f32 0.0, %v2544
        %v2546 = vpop.f32.mrf.mxu0
        %2547 = vmatprep.mubr.bf16.mxu0 0
        %2548 = vmatmul.mubr.bf16.gmra.mxu0 %v2469
        %v2549 = vpop.f32.mrf.mxu0
        %v2550 = vadd.f32 0.0, %v2549
        %v2551 = vpop.f32.mrf.mxu0
        %v2552 = vpop.f32.mrf.mxu0
        %v2553 = vadd.f32 0.0, %v2552
        %v2554 = vpop.f32.mrf.mxu0
        %2555 = vmatprep.mubr.bf16.mxu0 0
        %2556 = vmatmul.mubr.bf16.gmra.mxu0 %v2470
        %v2557 = vpop.f32.mrf.mxu0
        %v2558 = vadd.f32 0.0, %v2557
        %v2559 = vpop.f32.mrf.mxu0
        %v2560 = vpop.f32.mrf.mxu0
        %v2561 = vadd.f32 0.0, %v2560
        %v2562 = vpop.f32.mrf.mxu0
        %2563 = vmatprep.mubr.bf16.mxu0 0
        %2564 = vmatmul.mubr.bf16.gmra.mxu0 %v2471
        %v2565 = vpop.f32.mrf.mxu0
        %v2566 = vadd.f32 0.0, %v2565
        %v2567 = vpop.f32.mrf.mxu0
        %v2568 = vpop.f32.mrf.mxu0
        %v2569 = vadd.f32 0.0, %v2568
        %v2570 = vpop.f32.mrf.mxu0
        %2571 = vmatprep.mubr.bf16.mxu0 0
        %2572 = vmatmul.mubr.bf16.gmra.mxu0 %v2472
        %v2573 = vpop.f32.mrf.mxu0
        %v2574 = vadd.f32 0.0, %v2573
        %v2575 = vpop.f32.mrf.mxu0
        %v2576 = vpop.f32.mrf.mxu0
        %v2577 = vadd.f32 0.0, %v2576
        %v2578 = vpop.f32.mrf.mxu0
        %2579 = vmatprep.mubr.bf16.mxu0 0
        %2580 = vmatmul.mubr.bf16.gmra.mxu0 %v2473
        %v2581 = vpop.f32.mrf.mxu0
        %v2582 = vadd.f32 0.0, %v2581
        %v2583 = vpop.f32.mrf.mxu0
        %v2584 = vpop.f32.mrf.mxu0
        %v2585 = vadd.f32 0.0, %v2584
        %v2586 = vpop.f32.mrf.mxu0
        %2587 = vmatprep.mubr.bf16.mxu0 0
        %2588 = vmatmul.mubr.bf16.gmra.mxu0 %v2474
        %v2589 = vpop.f32.mrf.mxu0
        %v2590 = vadd.f32 0.0, %v2589
        %v2591 = vpop.f32.mrf.mxu0
        %v2592 = vpop.f32.mrf.mxu0
        %v2593 = vadd.f32 0.0, %v2592
        %v2594 = vpop.f32.mrf.mxu0
        %2595 = vdwg.mxu0
        %2596 = vrot.lane.b32.xlu0 %v1253, 32
        %v2597 = vpop.permute.xlu0 %2596
        %2598 = vrot.lane.b32.xlu0 %v1254, 32
        %v2599 = vpop.permute.xlu0 %2598
        %2600 = vrot.lane.b32.xlu0 %v1255, 32
        %v2601 = vpop.permute.xlu0 %2600
        %2602 = vrot.lane.b32.xlu0 %v1256, 32
        %v2603 = vpop.permute.xlu0 %2602
        %2604 = vrot.lane.b32.xlu0 %v1257, 32
        %v2605 = vpop.permute.xlu0 %2604
        %2606 = vrot.lane.b32.xlu0 %v1258, 32
        %v2607 = vpop.permute.xlu0 %2606
        %2608 = vrot.lane.b32.xlu0 %v1259, 32
        %v2609 = vpop.permute.xlu0 %2608
        %2610 = vrot.lane.b32.xlu0 %v1260, 32
        %v2611 = vpop.permute.xlu0 %2610
        %2612 = vrot.lane.b32.xlu0 %v1261, 32
        %v2613 = vpop.permute.xlu0 %2612
        %2614 = vrot.lane.b32.xlu0 %v1262, 32
        %v2615 = vpop.permute.xlu0 %2614
        %2616 = vrot.lane.b32.xlu0 %v1263, 32
        %v2617 = vpop.permute.xlu0 %2616
        %2618 = vrot.lane.b32.xlu0 %v1264, 32
        %v2619 = vpop.permute.xlu0 %2618
        %2620 = vrot.lane.b32.xlu0 %v1265, 32
        %v2621 = vpop.permute.xlu0 %2620
        %2622 = vrot.lane.b32.xlu0 %v1266, 32
        %v2623 = vpop.permute.xlu0 %2622
        %2624 = vrot.lane.b32.xlu0 %v1267, 32
        %v2625 = vpop.permute.xlu0 %2624
        %2626 = vrot.lane.b32.xlu0 %v1268, 32
        %v2627 = vpop.permute.xlu0 %2626
        %v2629 = vsel %vm1277, %v2597, 0
        %v2632 = vsel %vm1277, %v2599, 0
        %v2635 = vsel %vm1277, %v2601, 0
        %v2638 = vsel %vm1277, %v2603, 0
        %v2641 = vsel %vm1277, %v2605, 0
        %v2644 = vsel %vm1277, %v2607, 0
        %v2647 = vsel %vm1277, %v2609, 0
        %v2650 = vsel %vm1277, %v2611, 0
        %v2653 = vsel %vm1277, %v2613, 0
        %v2656 = vsel %vm1277, %v2615, 0
        %v2659 = vsel %vm1277, %v2617, 0
        %v2662 = vsel %vm1277, %v2619, 0
        %v2665 = vsel %vm1277, %v2621, 0
        %v2668 = vsel %vm1277, %v2623, 0
        %v2671 = vsel %vm1277, %v2625, 0
        %v2674 = vsel %vm1277, %v2627, 0
        %2676 = vmatprep.subr.bf16.mxu0 0
        %2677 = vmatpush1.bf16.xpose.msra.mxu0 %v2674
        %2678 = vmatprep.subr.bf16.mxu0 0
        %2679 = vmatpush1.bf16.xpose.msra.mxu0 %v2671
        %2680 = vmatprep.subr.bf16.mxu0 0
        %2681 = vmatpush1.bf16.xpose.msra.mxu0 %v2668
        %2682 = vmatprep.subr.bf16.mxu0 0
        %2683 = vmatpush1.bf16.xpose.msra.mxu0 %v2665
        %2684 = vmatprep.subr.bf16.mxu0 0
        %2685 = vmatpush1.bf16.xpose.msra.mxu0 %v2662
        %2686 = vmatprep.subr.bf16.mxu0 0
        %2687 = vmatpush1.bf16.xpose.msra.mxu0 %v2659
        %2688 = vmatprep.subr.bf16.mxu0 0
        %2689 = vmatpush1.bf16.xpose.msra.mxu0 %v2656
        %2690 = vmatprep.subr.bf16.mxu0 0
        %2691 = vmatpush1.bf16.xpose.msra.mxu0 %v2653
        %2692 = vmatprep.subr.bf16.mxu0 0
        %2693 = vmatpush2.bf16.xpose.msra.mxu0 0
        %2694 = vmatprep.subr.bf16.mxu0 0
        %2695 = vmatpush2.bf16.xpose.msra.mxu0 0
        %2696 = vmatprep.subr.bf16.mxu0 0
        %2697 = vmatpush2.bf16.xpose.msra.mxu0 0
        %2698 = vmatprep.subr.bf16.mxu0 0
        %2699 = vmatpush2.bf16.xpose.msra.mxu0 0
        %2700 = vmatprep.subr.bf16.mxu0 0
        %2701 = vmatpush2.bf16.xpose.msra.mxu0 0
        %2702 = vmatprep.subr.bf16.mxu0 0
        %2703 = vmatpush2.bf16.xpose.msra.mxu0 0
        %2704 = vmatprep.subr.bf16.mxu0 0
        %2705 = vmatpush2.bf16.xpose.msra.mxu0 0
        %2706 = vmatprep.subr.bf16.mxu0 0
        %2707 = vmatpush2.bf16.xpose.msra.mxu0 0
        %2708 = vmatprep.mubr.bf16.mxu0 0
        %2709 = vmatmul.mubr.bf16.gmra.mxu0 %v2629
        %v2710 = vpop.f32.mrf.mxu0
        %v2711 = vadd.f32 0.0, %v2710
        %v2712 = vpop.f32.mrf.mxu0
        %v2713 = vpop.f32.mrf.mxu0
        %v2714 = vadd.f32 0.0, %v2713
        %v2715 = vpop.f32.mrf.mxu0
        %2716 = vmatprep.mubr.bf16.mxu0 0
        %2717 = vmatmul.mubr.bf16.gmra.mxu0 %v2632
        %v2718 = vpop.f32.mrf.mxu0
        %v2719 = vadd.f32 0.0, %v2718
        %v2720 = vpop.f32.mrf.mxu0
        %v2721 = vpop.f32.mrf.mxu0
        %v2722 = vadd.f32 0.0, %v2721
        %v2723 = vpop.f32.mrf.mxu0
        %2724 = vmatprep.mubr.bf16.mxu0 0
        %2725 = vmatmul.mubr.bf16.gmra.mxu0 %v2635
        %v2726 = vpop.f32.mrf.mxu0
        %v2727 = vadd.f32 0.0, %v2726
        %v2728 = vpop.f32.mrf.mxu0
        %v2729 = vpop.f32.mrf.mxu0
        %v2730 = vadd.f32 0.0, %v2729
        %v2731 = vpop.f32.mrf.mxu0
        %2732 = vmatprep.mubr.bf16.mxu0 0
        %2733 = vmatmul.mubr.bf16.gmra.mxu0 %v2638
        %v2734 = vpop.f32.mrf.mxu0
        %v2735 = vadd.f32 0.0, %v2734
        %v2736 = vpop.f32.mrf.mxu0
        %v2737 = vpop.f32.mrf.mxu0
        %v2738 = vadd.f32 0.0, %v2737
        %v2739 = vpop.f32.mrf.mxu0
        %2740 = vmatprep.mubr.bf16.mxu0 0
        %2741 = vmatmul.mubr.bf16.gmra.mxu0 %v2641
        %v2742 = vpop.f32.mrf.mxu0
        %v2743 = vadd.f32 0.0, %v2742
        %v2744 = vpop.f32.mrf.mxu0
        %v2745 = vpop.f32.mrf.mxu0
        %v2746 = vadd.f32 0.0, %v2745
        %v2747 = vpop.f32.mrf.mxu0
        %2748 = vmatprep.mubr.bf16.mxu0 0
        %2749 = vmatmul.mubr.bf16.gmra.mxu0 %v2644
        %v2750 = vpop.f32.mrf.mxu0
        %v2751 = vadd.f32 0.0, %v2750
        %v2752 = vpop.f32.mrf.mxu0
        %v2753 = vpop.f32.mrf.mxu0
        %v2754 = vadd.f32 0.0, %v2753
        %v2755 = vpop.f32.mrf.mxu0
        %2756 = vmatprep.mubr.bf16.mxu0 0
        %2757 = vmatmul.mubr.bf16.gmra.mxu0 %v2647
        %v2758 = vpop.f32.mrf.mxu0
        %v2759 = vadd.f32 0.0, %v2758
        %v2760 = vpop.f32.mrf.mxu0
        %v2761 = vpop.f32.mrf.mxu0
        %v2762 = vadd.f32 0.0, %v2761
        %v2763 = vpop.f32.mrf.mxu0
        %2764 = vmatprep.mubr.bf16.mxu0 0
        %2765 = vmatmul.mubr.bf16.gmra.mxu0 %v2650
        %v2766 = vpop.f32.mrf.mxu0
        %v2767 = vadd.f32 0.0, %v2766
        %v2768 = vpop.f32.mrf.mxu0
        %v2769 = vpop.f32.mrf.mxu0
        %v2770 = vadd.f32 0.0, %v2769
        %v2771 = vpop.f32.mrf.mxu0
        %2772 = vdwg.mxu0
        %2773 = vmax.xlane.f32.xlu0 %v2711
        %v2774 = vpop.xlane.xlu0 %2773
        %2775 = vmax.xlane.f32.xlu0 %v2714
        %v2776 = vpop.xlane.xlu0 %2775
        %2777 = vmax.xlane.f32.xlu0 %v2719
        %v2778 = vpop.xlane.xlu0 %2777
        %2779 = vmax.xlane.f32.xlu0 %v2722
        %v2780 = vpop.xlane.xlu0 %2779
        %2781 = vmax.xlane.f32.xlu0 %v2727
        %v2782 = vpop.xlane.xlu0 %2781
        %2783 = vmax.xlane.f32.xlu0 %v2730
        %v2784 = vpop.xlane.xlu0 %2783
        %2785 = vmax.xlane.f32.xlu0 %v2735
        %v2786 = vpop.xlane.xlu0 %2785
        %2787 = vmax.xlane.f32.xlu0 %v2738
        %v2788 = vpop.xlane.xlu0 %2787
        %2789 = vmax.xlane.f32.xlu0 %v2743
        %v2790 = vpop.xlane.xlu0 %2789
        %2791 = vmax.xlane.f32.xlu0 %v2746
        %v2792 = vpop.xlane.xlu0 %2791
        %2793 = vmax.xlane.f32.xlu0 %v2751
        %v2794 = vpop.xlane.xlu0 %2793
        %2795 = vmax.xlane.f32.xlu0 %v2754
        %v2796 = vpop.xlane.xlu0 %2795
        %2797 = vmax.xlane.f32.xlu0 %v2759
        %v2798 = vpop.xlane.xlu0 %2797
        %2799 = vmax.xlane.f32.xlu0 %v2762
        %v2800 = vpop.xlane.xlu0 %2799
        %2801 = vmax.xlane.f32.xlu0 %v2767
        %v2802 = vpop.xlane.xlu0 %2801
        %2803 = vmax.xlane.f32.xlu0 %v2770
        %v2804 = vpop.xlane.xlu0 %2803
        %v2805 = vsub.f32 %v2711, %v2774
        %v2806 = vsub.f32 %v2714, %v2776
        %v2807 = vsub.f32 %v2719, %v2778
        %v2808 = vsub.f32 %v2722, %v2780
        %v2809 = vsub.f32 %v2727, %v2782
        %v2810 = vsub.f32 %v2730, %v2784
        %v2811 = vsub.f32 %v2735, %v2786
        %v2812 = vsub.f32 %v2738, %v2788
        %v2813 = vsub.f32 %v2743, %v2790
        %v2814 = vsub.f32 %v2746, %v2792
        %v2815 = vsub.f32 %v2751, %v2794
        %v2816 = vsub.f32 %v2754, %v2796
        %v2817 = vsub.f32 %v2759, %v2798
        %v2818 = vsub.f32 %v2762, %v2800
        %v2819 = vsub.f32 %v2767, %v2802
        %v2820 = vsub.f32 %v2770, %v2804
        %v2821 = vmul.f32 %v2805, 1.442695
        %v2822 = vpow.pop %v2821
        %v2823 = vmul.f32 %v2806, 1.442695
        %v2824 = vpow.pop %v2823
        %v2825 = vmul.f32 %v2807, 1.442695
        %v2826 = vpow.pop %v2825
        %v2827 = vmul.f32 %v2808, 1.442695
        %v2828 = vpow.pop %v2827
        %v2829 = vmul.f32 %v2809, 1.442695
        %v2830 = vpow.pop %v2829
        %v2831 = vmul.f32 %v2810, 1.442695
        %v2832 = vpow.pop %v2831
        %v2833 = vmul.f32 %v2811, 1.442695
        %v2834 = vpow.pop %v2833
        %v2835 = vmul.f32 %v2812, 1.442695
        %v2836 = vpow.pop %v2835
        %v2837 = vmul.f32 %v2813, 1.442695
        %v2838 = vpow.pop %v2837
        %v2839 = vmul.f32 %v2814, 1.442695
        %v2840 = vpow.pop %v2839
        %v2841 = vmul.f32 %v2815, 1.442695
        %v2842 = vpow.pop %v2841
        %v2843 = vmul.f32 %v2816, 1.442695
        %v2844 = vpow.pop %v2843
        %v2845 = vmul.f32 %v2817, 1.442695
        %v2846 = vpow.pop %v2845
        %v2847 = vmul.f32 %v2818, 1.442695
        %v2848 = vpow.pop %v2847
        %v2849 = vmul.f32 %v2819, 1.442695
        %v2850 = vpow.pop %v2849
        %v2851 = vmul.f32 %v2820, 1.442695
        %v2852 = vpow.pop %v2851
        %2853 = vadd.xlane.f32.xlu0 %v2822
        %v2854 = vpop.xlane.xlu0 %2853
        %2855 = vadd.xlane.f32.xlu0 %v2824
        %v2856 = vpop.xlane.xlu0 %2855
        %2857 = vadd.xlane.f32.xlu0 %v2826
        %v2858 = vpop.xlane.xlu0 %2857
        %2859 = vadd.xlane.f32.xlu0 %v2828
        %v2860 = vpop.xlane.xlu0 %2859
        %2861 = vadd.xlane.f32.xlu0 %v2830
        %v2862 = vpop.xlane.xlu0 %2861
        %2863 = vadd.xlane.f32.xlu0 %v2832
        %v2864 = vpop.xlane.xlu0 %2863
        %2865 = vadd.xlane.f32.xlu0 %v2834
        %v2866 = vpop.xlane.xlu0 %2865
        %2867 = vadd.xlane.f32.xlu0 %v2836
        %v2868 = vpop.xlane.xlu0 %2867
        %2869 = vadd.xlane.f32.xlu0 %v2838
        %v2870 = vpop.xlane.xlu0 %2869
        %2871 = vadd.xlane.f32.xlu0 %v2840
        %v2872 = vpop.xlane.xlu0 %2871
        %2873 = vadd.xlane.f32.xlu0 %v2842
        %v2874 = vpop.xlane.xlu0 %2873
        %2875 = vadd.xlane.f32.xlu0 %v2844
        %v2876 = vpop.xlane.xlu0 %2875
        %2877 = vadd.xlane.f32.xlu0 %v2846
        %v2878 = vpop.xlane.xlu0 %2877
        %2879 = vadd.xlane.f32.xlu0 %v2848
        %v2880 = vpop.xlane.xlu0 %2879
        %2881 = vadd.xlane.f32.xlu0 %v2850
        %v2882 = vpop.xlane.xlu0 %2881
        %2883 = vadd.xlane.f32.xlu0 %v2852
        %v2884 = vpop.xlane.xlu0 %2883
        %v2885 = vrcp.pop %v2854
        %v2886 = vrcp.pop %v2856
        %v2887 = vrcp.pop %v2858
        %v2888 = vrcp.pop %v2860
        %v2889 = vrcp.pop %v2862
        %v2890 = vrcp.pop %v2864
        %v2891 = vrcp.pop %v2866
        %v2892 = vrcp.pop %v2868
        %v2893 = vrcp.pop %v2870
        %v2894 = vrcp.pop %v2872
        %v2895 = vrcp.pop %v2874
        %v2896 = vrcp.pop %v2876
        %v2897 = vrcp.pop %v2878
        %v2898 = vrcp.pop %v2880
        %v2899 = vrcp.pop %v2882
        %v2900 = vrcp.pop %v2884
        %v2901 = vmul.f32 %v2822, %v2885
        %v2902 = vmul.f32 %v2824, %v2886
        %v2903 = vmul.f32 %v2826, %v2887
        %v2904 = vmul.f32 %v2828, %v2888
        %v2905 = vmul.f32 %v2830, %v2889
        %v2906 = vmul.f32 %v2832, %v2890
        %v2907 = vmul.f32 %v2834, %v2891
        %v2908 = vmul.f32 %v2836, %v2892
        %v2909 = vmul.f32 %v2838, %v2893
        %v2910 = vmul.f32 %v2840, %v2894
        %v2911 = vmul.f32 %v2842, %v2895
        %v2912 = vmul.f32 %v2844, %v2896
        %v2913 = vmul.f32 %v2846, %v2897
        %v2914 = vmul.f32 %v2848, %v2898
        %v2915 = vmul.f32 %v2850, %v2899
        %v2916 = vmul.f32 %v2852, %v2900
        %v2917 = vpack.c.bf16 %v2902, %v2901
        %v2918 = vpack.c.bf16 %v2904, %v2903
        %v2919 = vpack.c.bf16 %v2906, %v2905
        %v2920 = vpack.c.bf16 %v2908, %v2907
        %v2921 = vpack.c.bf16 %v2910, %v2909
        %v2922 = vpack.c.bf16 %v2912, %v2911
        %v2923 = vpack.c.bf16 %v2914, %v2913
        %v2924 = vpack.c.bf16 %v2916, %v2915
        %2925 = vrot.lane.b32.xlu0 %v1269, 32
        %v2926 = vpop.permute.xlu0 %2925
        %2927 = vrot.lane.b32.xlu0 %v1270, 32
        %v2928 = vpop.permute.xlu0 %2927
        %2929 = vrot.lane.b32.xlu0 %v1271, 32
        %v2930 = vpop.permute.xlu0 %2929
        %2931 = vrot.lane.b32.xlu0 %v1272, 32
        %v2932 = vpop.permute.xlu0 %2931
        %2933 = vrot.lane.b32.xlu0 %v1273, 32
        %v2934 = vpop.permute.xlu0 %2933
        %2935 = vrot.lane.b32.xlu0 %v1274, 32
        %v2936 = vpop.permute.xlu0 %2935
        %2937 = vrot.lane.b32.xlu0 %v1275, 32
        %v2938 = vpop.permute.xlu0 %2937
        %2939 = vrot.lane.b32.xlu0 %v1276, 32
        %v2940 = vpop.permute.xlu0 %2939
        %2949 = vmatprep.subr.bf16.mxu0 0
        %2950 = vmatpush1.bf16.msra.mxu0 %v2940
        %2951 = vmatprep.subr.bf16.mxu0 0
        %2952 = vmatpush1.bf16.msra.mxu0 %v2938
        %2953 = vmatprep.subr.bf16.mxu0 0
        %2954 = vmatpush1.bf16.msra.mxu0 %v2936
        %2955 = vmatprep.subr.bf16.mxu0 0
        %2956 = vmatpush1.bf16.msra.mxu0 %v2934
        %2957 = vmatprep.subr.bf16.mxu0 0
        %2958 = vmatpush1.bf16.msra.mxu0 %v2932
        %2959 = vmatprep.subr.bf16.mxu0 0
        %2960 = vmatpush1.bf16.msra.mxu0 %v2930
        %2961 = vmatprep.subr.bf16.mxu0 0
        %2962 = vmatpush1.bf16.msra.mxu0 %v2928
        %2963 = vmatprep.subr.bf16.mxu0 0
        %2964 = vmatpush1.bf16.msra.mxu0 %v2926
        %2965 = vmatprep.subr.bf16.mxu0 0
        %2966 = vmatpush2.bf16.msra.mxu0 0
        %2967 = vmatprep.subr.bf16.mxu0 0
        %2968 = vmatpush2.bf16.msra.mxu0 0
        %2969 = vmatprep.subr.bf16.mxu0 0
        %2970 = vmatpush2.bf16.msra.mxu0 0
        %2971 = vmatprep.subr.bf16.mxu0 0
        %2972 = vmatpush2.bf16.msra.mxu0 0
        %2973 = vmatprep.subr.bf16.mxu0 0
        %2974 = vmatpush2.bf16.msra.mxu0 0
        %2975 = vmatprep.subr.bf16.mxu0 0
        %2976 = vmatpush2.bf16.msra.mxu0 0
        %2977 = vmatprep.subr.bf16.mxu0 0
        %2978 = vmatpush2.bf16.msra.mxu0 0
        %2979 = vmatprep.subr.bf16.mxu0 0
        %2980 = vmatpush2.bf16.msra.mxu0 0
        %2981 = vmatprep.mubr.bf16.mxu0 0
        %2982 = vmatmul.mubr.bf16.gmra.mxu0 %v2917
        %v2983 = vpop.f32.mrf.mxu0
        %v2984 = vadd.f32 0.0, %v2983
        %v2985 = vpop.f32.mrf.mxu0
        %v2986 = vpop.f32.mrf.mxu0
        %v2987 = vadd.f32 0.0, %v2986
        %v2988 = vpop.f32.mrf.mxu0
        %2989 = vmatprep.mubr.bf16.mxu0 0
        %2990 = vmatmul.mubr.bf16.gmra.mxu0 %v2918
        %v2991 = vpop.f32.mrf.mxu0
        %v2992 = vadd.f32 0.0, %v2991
        %v2993 = vpop.f32.mrf.mxu0
        %v2994 = vpop.f32.mrf.mxu0
        %v2995 = vadd.f32 0.0, %v2994
        %v2996 = vpop.f32.mrf.mxu0
        %2997 = vmatprep.mubr.bf16.mxu0 0
        %2998 = vmatmul.mubr.bf16.gmra.mxu0 %v2919
        %v2999 = vpop.f32.mrf.mxu0
        %v3000 = vadd.f32 0.0, %v2999
        %v3001 = vpop.f32.mrf.mxu0
        %v3002 = vpop.f32.mrf.mxu0
        %v3003 = vadd.f32 0.0, %v3002
        %v3004 = vpop.f32.mrf.mxu0
        %3005 = vmatprep.mubr.bf16.mxu0 0
        %3006 = vmatmul.mubr.bf16.gmra.mxu0 %v2920
        %v3007 = vpop.f32.mrf.mxu0
        %v3008 = vadd.f32 0.0, %v3007
        %v3009 = vpop.f32.mrf.mxu0
        %v3010 = vpop.f32.mrf.mxu0
        %v3011 = vadd.f32 0.0, %v3010
        %v3012 = vpop.f32.mrf.mxu0
        %3013 = vmatprep.mubr.bf16.mxu0 0
        %3014 = vmatmul.mubr.bf16.gmra.mxu0 %v2921
        %v3015 = vpop.f32.mrf.mxu0
        %v3016 = vadd.f32 0.0, %v3015
        %v3017 = vpop.f32.mrf.mxu0
        %v3018 = vpop.f32.mrf.mxu0
        %v3019 = vadd.f32 0.0, %v3018
        %v3020 = vpop.f32.mrf.mxu0
        %3021 = vmatprep.mubr.bf16.mxu0 0
        %3022 = vmatmul.mubr.bf16.gmra.mxu0 %v2922
        %v3023 = vpop.f32.mrf.mxu0
        %v3024 = vadd.f32 0.0, %v3023
        %v3025 = vpop.f32.mrf.mxu0
        %v3026 = vpop.f32.mrf.mxu0
        %v3027 = vadd.f32 0.0, %v3026
        %v3028 = vpop.f32.mrf.mxu0
        %3029 = vmatprep.mubr.bf16.mxu0 0
        %3030 = vmatmul.mubr.bf16.gmra.mxu0 %v2923
        %v3031 = vpop.f32.mrf.mxu0
        %v3032 = vadd.f32 0.0, %v3031
        %v3033 = vpop.f32.mrf.mxu0
        %v3034 = vpop.f32.mrf.mxu0
        %v3035 = vadd.f32 0.0, %v3034
        %v3036 = vpop.f32.mrf.mxu0
        %3037 = vmatprep.mubr.bf16.mxu0 0
        %3038 = vmatmul.mubr.bf16.gmra.mxu0 %v2924
        %v3039 = vpop.f32.mrf.mxu0
        %v3040 = vadd.f32 0.0, %v3039
        %v3041 = vpop.f32.mrf.mxu0
        %v3042 = vpop.f32.mrf.mxu0
        %v3043 = vadd.f32 0.0, %v3042
        %v3044 = vpop.f32.mrf.mxu0
        %3045 = vdwg.mxu0
        %3062 = vrot.lane.b32.xlu0 %v2084, 32
        %v3063 = vpop.permute.xlu0 %3062
        %3064 = vrot.lane.b32.xlu0 %v2087, 32
        %v3065 = vpop.permute.xlu0 %3064
        %3066 = vrot.lane.b32.xlu0 %v2092, 32
        %v3067 = vpop.permute.xlu0 %3066
        %3068 = vrot.lane.b32.xlu0 %v2095, 32
        %v3069 = vpop.permute.xlu0 %3068
        %3070 = vrot.lane.b32.xlu0 %v2100, 32
        %v3071 = vpop.permute.xlu0 %3070
        %3072 = vrot.lane.b32.xlu0 %v2103, 32
        %v3073 = vpop.permute.xlu0 %3072
        %3074 = vrot.lane.b32.xlu0 %v2108, 32
        %v3075 = vpop.permute.xlu0 %3074
        %3076 = vrot.lane.b32.xlu0 %v2111, 32
        %v3077 = vpop.permute.xlu0 %3076
        %3078 = vrot.lane.b32.xlu0 %v2116, 32
        %v3079 = vpop.permute.xlu0 %3078
        %3080 = vrot.lane.b32.xlu0 %v2119, 32
        %v3081 = vpop.permute.xlu0 %3080
        %3082 = vrot.lane.b32.xlu0 %v2124, 32
        %v3083 = vpop.permute.xlu0 %3082
        %3084 = vrot.lane.b32.xlu0 %v2127, 32
        %v3085 = vpop.permute.xlu0 %3084
        %3086 = vrot.lane.b32.xlu0 %v2132, 32
        %v3087 = vpop.permute.xlu0 %3086
        %3088 = vrot.lane.b32.xlu0 %v2135, 32
        %v3089 = vpop.permute.xlu0 %3088
        %3090 = vrot.lane.b32.xlu0 %v2140, 32
        %v3091 = vpop.permute.xlu0 %3090
        %3092 = vrot.lane.b32.xlu0 %v2143, 32
        %v3093 = vpop.permute.xlu0 %3092
        %3126 = vrot.lane.b32.xlu0 %v2534, 64
        %v3127 = vpop.permute.xlu0 %3126
        %3128 = vrot.lane.b32.xlu0 %v2537, 64
        %v3129 = vpop.permute.xlu0 %3128
        %3130 = vrot.lane.b32.xlu0 %v2542, 64
        %v3131 = vpop.permute.xlu0 %3130
        %3132 = vrot.lane.b32.xlu0 %v2545, 64
        %v3133 = vpop.permute.xlu0 %3132
        %3134 = vrot.lane.b32.xlu0 %v2550, 64
        %v3135 = vpop.permute.xlu0 %3134
        %3136 = vrot.lane.b32.xlu0 %v2553, 64
        %v3137 = vpop.permute.xlu0 %3136
        %3138 = vrot.lane.b32.xlu0 %v2558, 64
        %v3139 = vpop.permute.xlu0 %3138
        %3140 = vrot.lane.b32.xlu0 %v2561, 64
        %v3141 = vpop.permute.xlu0 %3140
        %3142 = vrot.lane.b32.xlu0 %v2566, 64
        %v3143 = vpop.permute.xlu0 %3142
        %3144 = vrot.lane.b32.xlu0 %v2569, 64
        %v3145 = vpop.permute.xlu0 %3144
        %3146 = vrot.lane.b32.xlu0 %v2574, 64
        %v3147 = vpop.permute.xlu0 %3146
        %3148 = vrot.lane.b32.xlu0 %v2577, 64
        %v3149 = vpop.permute.xlu0 %3148
        %3150 = vrot.lane.b32.xlu0 %v2582, 64
        %v3151 = vpop.permute.xlu0 %3150
        %3152 = vrot.lane.b32.xlu0 %v2585, 64
        %v3153 = vpop.permute.xlu0 %3152
        %3154 = vrot.lane.b32.xlu0 %v2590, 64
        %v3155 = vpop.permute.xlu0 %3154
        %3156 = vrot.lane.b32.xlu0 %v2593, 64
        %v3157 = vpop.permute.xlu0 %3156
        %3190 = vrot.lane.b32.xlu0 %v2984, 96
        %v3191 = vpop.permute.xlu0 %3190
        %3192 = vrot.lane.b32.xlu0 %v2987, 96
        %v3193 = vpop.permute.xlu0 %3192
        %3194 = vrot.lane.b32.xlu0 %v2992, 96
        %v3195 = vpop.permute.xlu0 %3194
        %3196 = vrot.lane.b32.xlu0 %v2995, 96
        %v3197 = vpop.permute.xlu0 %3196
        %3198 = vrot.lane.b32.xlu0 %v3000, 96
        %v3199 = vpop.permute.xlu0 %3198
        %3200 = vrot.lane.b32.xlu0 %v3003, 96
        %v3201 = vpop.permute.xlu0 %3200
        %3202 = vrot.lane.b32.xlu0 %v3008, 96
        %v3203 = vpop.permute.xlu0 %3202
        %3204 = vrot.lane.b32.xlu0 %v3011, 96
        %v3205 = vpop.permute.xlu0 %3204
        %3206 = vrot.lane.b32.xlu0 %v3016, 96
        %v3207 = vpop.permute.xlu0 %3206
        %3208 = vrot.lane.b32.xlu0 %v3019, 96
        %v3209 = vpop.permute.xlu0 %3208
        %3210 = vrot.lane.b32.xlu0 %v3024, 96
        %v3211 = vpop.permute.xlu0 %3210
        %3212 = vrot.lane.b32.xlu0 %v3027, 96
        %v3213 = vpop.permute.xlu0 %3212
        %3214 = vrot.lane.b32.xlu0 %v3032, 96
        %v3215 = vpop.permute.xlu0 %3214
        %3216 = vrot.lane.b32.xlu0 %v3035, 96
        %v3217 = vpop.permute.xlu0 %3216
        %3218 = vrot.lane.b32.xlu0 %v3040, 96
        %v3219 = vpop.permute.xlu0 %3218
        %3220 = vrot.lane.b32.xlu0 %v3043, 96
        %v3221 = vpop.permute.xlu0 %3220
        %v3238 = vsel %vm1277, %v1610, %v3063
        %v3239 = vsel %vm1277, %v1613, %v3065
        %v3240 = vsel %vm1277, %v1618, %v3067
        %v3241 = vsel %vm1277, %v1621, %v3069
        %v3242 = vsel %vm1277, %v1626, %v3071
        %v3243 = vsel %vm1277, %v1629, %v3073
        %v3244 = vsel %vm1277, %v1634, %v3075
        %v3245 = vsel %vm1277, %v1637, %v3077
        %v3246 = vsel %vm1277, %v1642, %v3079
        %v3247 = vsel %vm1277, %v1645, %v3081
        %v3248 = vsel %vm1277, %v1650, %v3083
        %v3249 = vsel %vm1277, %v1653, %v3085
        %v3250 = vsel %vm1277, %v1658, %v3087
        %v3251 = vsel %vm1277, %v1661, %v3089
        %v3252 = vsel %vm1277, %v1666, %v3091
        %v3253 = vsel %vm1277, %v1669, %v3093
        %vm3254 = vcmask 523264
        %v3255 = vsel %vm3254, %v3238, %v3127
        %v3256 = vsel %vm3254, %v3239, %v3129
        %v3257 = vsel %vm3254, %v3240, %v3131
        %v3258 = vsel %vm3254, %v3241, %v3133
        %v3259 = vsel %vm3254, %v3242, %v3135
        %v3260 = vsel %vm3254, %v3243, %v3137
        %v3261 = vsel %vm3254, %v3244, %v3139
        %v3262 = vsel %vm3254, %v3245, %v3141
        %v3263 = vsel %vm3254, %v3246, %v3143
        %v3264 = vsel %vm3254, %v3247, %v3145
        %v3265 = vsel %vm3254, %v3248, %v3147
        %v3266 = vsel %vm3254, %v3249, %v3149
        %v3267 = vsel %vm3254, %v3250, %v3151
        %v3268 = vsel %vm3254, %v3251, %v3153
        %v3269 = vsel %vm3254, %v3252, %v3155
        %v3270 = vsel %vm3254, %v3253, %v3157
        %vm3271 = vcmask 785408
        %v3272 = vsel %vm3271, %v3255, %v3191
        %v3273 = vsel %vm3271, %v3256, %v3193
        %v3274 = vsel %vm3271, %v3257, %v3195
        %v3275 = vsel %vm3271, %v3258, %v3197
        %v3276 = vsel %vm3271, %v3259, %v3199
        %v3277 = vsel %vm3271, %v3260, %v3201
        %v3278 = vsel %vm3271, %v3261, %v3203
        %v3279 = vsel %vm3271, %v3262, %v3205
        %v3280 = vsel %vm3271, %v3263, %v3207
        %v3281 = vsel %vm3271, %v3264, %v3209
        %v3282 = vsel %vm3271, %v3265, %v3211
        %v3283 = vsel %vm3271, %v3266, %v3213
        %v3284 = vsel %vm3271, %v3267, %v3215
        %v3285 = vsel %vm3271, %v3268, %v3217
        %v3286 = vsel %vm3271, %v3269, %v3219
        %v3287 = vsel %vm3271, %v3270, %v3221
        %v3288 = vpack.c.bf16 %v3273, %v3272
        %v3289 = vpack.c.bf16 %v3275, %v3274
        %v3290 = vpack.c.bf16 %v3277, %v3276
        %v3291 = vpack.c.bf16 %v3279, %v3278
        %v3292 = vpack.c.bf16 %v3281, %v3280
        %v3293 = vpack.c.bf16 %v3283, %v3282
        %v3294 = vpack.c.bf16 %v3285, %v3284
        %v3295 = vpack.c.bf16 %v3287, %v3286
        %v3296 = vld [vmem:[#allocation13] sm:$0xf]
        %v3297 = vld [vmem:[#allocation13 + $0x4] sm:$0xf]
        %v3298 = vld [vmem:[#allocation13 + $0x8] sm:$0xf]
        %v3299 = vld [vmem:[#allocation13 + $0xc] sm:$0xf]
        %v3300 = vld [vmem:[#allocation13 + $0x10] sm:$0xf]
        %v3301 = vld [vmem:[#allocation13 + $0x14] sm:$0xf]
        %v3302 = vld [vmem:[#allocation13 + $0x18] sm:$0xf]
        %v3303 = vld [vmem:[#allocation13 + $0x1c] sm:$0xf]
        %v3304 = vld [vmem:[#allocation13 + $0x20] sm:$0xf]
        %v3305 = vld [vmem:[#allocation13 + $0x24] sm:$0xf]
        %v3306 = vld [vmem:[#allocation13 + $0x28] sm:$0xf]
        %v3307 = vld [vmem:[#allocation13 + $0x2c] sm:$0xf]
        %v3308 = vld [vmem:[#allocation13 + $0x30] sm:$0xf]
        %v3309 = vld [vmem:[#allocation13 + $0x34] sm:$0xf]
        %v3310 = vld [vmem:[#allocation13 + $0x38] sm:$0xf]
        %v3311 = vld [vmem:[#allocation13 + $0x3c] sm:$0xf]
        %v3312 = vld [vmem:[%s10] sm:$0x1]
        %v3314 = vlaneseq
        %v3315 = vshrl.u32 %v3314, 7
        %v3316 = vsub.s32 0, %v3315
        %v3317 = vrot.slane %v3312, %v3316
        %v3335 = vunpack.c.l.b16 %v3296
        %v3336 = vunpack.c.l.b16 %v3297
        %v3337 = vunpack.c.l.b16 %v3298
        %v3338 = vunpack.c.l.b16 %v3299
        %v3339 = vunpack.c.l.b16 %v3300
        %v3340 = vunpack.c.l.b16 %v3301
        %v3341 = vunpack.c.l.b16 %v3302
        %v3342 = vunpack.c.l.b16 %v3303
        %v3343 = vunpack.c.l.b16 %v3304
        %v3344 = vunpack.c.l.b16 %v3305
        %v3345 = vunpack.c.l.b16 %v3306
        %v3346 = vunpack.c.l.b16 %v3307
        %v3347 = vunpack.c.l.b16 %v3308
        %v3348 = vunpack.c.l.b16 %v3309
        %v3349 = vunpack.c.l.b16 %v3310
        %v3350 = vunpack.c.l.b16 %v3311
        %v3351 = vpack.c.b16 %v3336, %v3335
        %v3352 = vpack.c.b16 %v3338, %v3337
        %v3353 = vpack.c.b16 %v3340, %v3339
        %v3354 = vpack.c.b16 %v3342, %v3341
        %v3355 = vpack.c.b16 %v3344, %v3343
        %v3356 = vpack.c.b16 %v3346, %v3345
        %v3357 = vpack.c.b16 %v3348, %v3347
        %v3358 = vpack.c.b16 %v3350, %v3349
        %3367 = vmatprep.subr.bf16.mxu0 0
        %3368 = vmatpush1.bf16.msra.mxu0 %v3358
        %3369 = vmatprep.subr.bf16.mxu0 0
        %3370 = vmatpush1.bf16.msra.mxu0 %v3357
        %3371 = vmatprep.subr.bf16.mxu0 0
        %3372 = vmatpush1.bf16.msra.mxu0 %v3356
        %3373 = vmatprep.subr.bf16.mxu0 0
        %3374 = vmatpush1.bf16.msra.mxu0 %v3355
        %3375 = vmatprep.subr.bf16.mxu0 0
        %3376 = vmatpush1.bf16.msra.mxu0 %v3354
        %3377 = vmatprep.subr.bf16.mxu0 0
        %3378 = vmatpush1.bf16.msra.mxu0 %v3353
        %3379 = vmatprep.subr.bf16.mxu0 0
        %3380 = vmatpush1.bf16.msra.mxu0 %v3352
        %3381 = vmatprep.subr.bf16.mxu0 0
        %3382 = vmatpush1.bf16.msra.mxu0 %v3351
        %3383 = vmatprep.subr.bf16.mxu0 0
        %3384 = vmatpush2.bf16.msra.mxu0 0
        %3385 = vmatprep.subr.bf16.mxu0 0
        %3386 = vmatpush2.bf16.msra.mxu0 0
        %3387 = vmatprep.subr.bf16.mxu0 0
        %3388 = vmatpush2.bf16.msra.mxu0 0
        %3389 = vmatprep.subr.bf16.mxu0 0
        %3390 = vmatpush2.bf16.msra.mxu0 0
        %3391 = vmatprep.subr.bf16.mxu0 0
        %3392 = vmatpush2.bf16.msra.mxu0 0
        %3393 = vmatprep.subr.bf16.mxu0 0
        %3394 = vmatpush2.bf16.msra.mxu0 0
        %3395 = vmatprep.subr.bf16.mxu0 0
        %3396 = vmatpush2.bf16.msra.mxu0 0
        %3397 = vmatprep.subr.bf16.mxu0 0
        %3398 = vmatpush2.bf16.msra.mxu0 0
        %3399 = vmatprep.mubr.bf16.mxu0 0
        %3400 = vmatmul.mubr.bf16.gmra.mxu0 %v3288
        %v3401 = vpop.f32.mrf.mxu0
        %v3402 = vadd.f32 %v3317, %v3401
        %v3403 = vpop.f32.mrf.mxu0
        %v3404 = vpop.f32.mrf.mxu0
        %v3405 = vadd.f32 %v3317, %v3404
        %v3406 = vpop.f32.mrf.mxu0
        %3407 = vmatprep.mubr.bf16.mxu0 0
        %3408 = vmatmul.mubr.bf16.gmra.mxu0 %v3289
        %v3409 = vpop.f32.mrf.mxu0
        %v3410 = vadd.f32 %v3317, %v3409
        %v3411 = vpop.f32.mrf.mxu0
        %v3412 = vpop.f32.mrf.mxu0
        %v3413 = vadd.f32 %v3317, %v3412
        %v3414 = vpop.f32.mrf.mxu0
        %3415 = vmatprep.mubr.bf16.mxu0 0
        %3416 = vmatmul.mubr.bf16.gmra.mxu0 %v3290
        %v3417 = vpop.f32.mrf.mxu0
        %v3418 = vadd.f32 %v3317, %v3417
        %v3419 = vpop.f32.mrf.mxu0
        %v3420 = vpop.f32.mrf.mxu0
        %v3421 = vadd.f32 %v3317, %v3420
        %v3422 = vpop.f32.mrf.mxu0
        %3423 = vmatprep.mubr.bf16.mxu0 0
        %3424 = vmatmul.mubr.bf16.gmra.mxu0 %v3291
        %v3425 = vpop.f32.mrf.mxu0
        %v3426 = vadd.f32 %v3317, %v3425
        %v3427 = vpop.f32.mrf.mxu0
        %v3428 = vpop.f32.mrf.mxu0
        %v3429 = vadd.f32 %v3317, %v3428
        %v3430 = vpop.f32.mrf.mxu0
        %3431 = vmatprep.mubr.bf16.mxu0 0
        %3432 = vmatmul.mubr.bf16.gmra.mxu0 %v3292
        %v3433 = vpop.f32.mrf.mxu0
        %v3434 = vadd.f32 %v3317, %v3433
        %v3435 = vpop.f32.mrf.mxu0
        %v3436 = vpop.f32.mrf.mxu0
        %v3437 = vadd.f32 %v3317, %v3436
        %v3438 = vpop.f32.mrf.mxu0
        %3439 = vmatprep.mubr.bf16.mxu0 0
        %3440 = vmatmul.mubr.bf16.gmra.mxu0 %v3293
        %v3441 = vpop.f32.mrf.mxu0
        %v3442 = vadd.f32 %v3317, %v3441
        %v3443 = vpop.f32.mrf.mxu0
        %v3444 = vpop.f32.mrf.mxu0
        %v3445 = vadd.f32 %v3317, %v3444
        %v3446 = vpop.f32.mrf.mxu0
        %3447 = vmatprep.mubr.bf16.mxu0 0
        %3448 = vmatmul.mubr.bf16.gmra.mxu0 %v3294
        %v3449 = vpop.f32.mrf.mxu0
        %v3450 = vadd.f32 %v3317, %v3449
        %v3451 = vpop.f32.mrf.mxu0
        %v3452 = vpop.f32.mrf.mxu0
        %v3453 = vadd.f32 %v3317, %v3452
        %v3454 = vpop.f32.mrf.mxu0
        %3455 = vmatprep.mubr.bf16.mxu0 0
        %3456 = vmatmul.mubr.bf16.gmra.mxu0 %v3295
        %v3457 = vpop.f32.mrf.mxu0
        %v3458 = vadd.f32 %v3317, %v3457
        %v3459 = vpop.f32.mrf.mxu0
        %v3460 = vpop.f32.mrf.mxu0
        %v3461 = vadd.f32 %v3317, %v3460
        %v3462 = vpop.f32.mrf.mxu0
        %3463 = vdwg.mxu0
        %3464 = vst [vmem:[%s539] sm:$0xff] %v3402
        %3465 = vst [vmem:[%s539 + $0x8] sm:$0xff] %v3405
        %3466 = vst [vmem:[%s539 + $0x10] sm:$0xff] %v3410
        %3467 = vst [vmem:[%s539 + $0x18] sm:$0xff] %v3413
        %3468 = vst [vmem:[%s539 + $0x20] sm:$0xff] %v3418
        %3469 = vst [vmem:[%s539 + $0x28] sm:$0xff] %v3421
        %3470 = vst [vmem:[%s539 + $0x30] sm:$0xff] %v3426
        %3471 = vst [vmem:[%s539 + $0x38] sm:$0xff] %v3429
        %3472 = vst [vmem:[%s539 + $0x40] sm:$0xff] %v3434
        %3473 = vst [vmem:[%s539 + $0x48] sm:$0xff] %v3437
        %3474 = vst [vmem:[%s539 + $0x50] sm:$0xff] %v3442
        %3475 = vst [vmem:[%s539 + $0x58] sm:$0xff] %v3445
        %3476 = vst [vmem:[%s539 + $0x60] sm:$0xff] %v3450
        %3477 = vst [vmem:[%s539 + $0x68] sm:$0xff] %v3453
        %3478 = vst [vmem:[%s539 + $0x70] sm:$0xff] %v3458
        %3479 = vst [vmem:[%s539 + $0x78] sm:$0xff] %v3461
        %s3480 = sand.u32 %s287, 1
        %s3481 = scalar_lea.sflag [#allocation4], %s3480
        %s3482 = sand.u32 %s287, 1
        %s3483 = smul.addr %s3482, 128
        %s3484 = scalar_lea.vmem [#allocation14], %s3483
        // Predicated region
        $region93: #{tpu_custom_call.1} parent=63 // pred_check
          %p3485 = pneg %p297
        $region94: #{tpu_custom_call.1} parent=63 // pred_check_branch
          %3487 = sbr.rel (%p3485) target = $region96
        $region95: #{tpu_custom_call.1} parent=63 // pred_region
          %s3489 = ssub.s32 2048, 2048
          %3490 = vsyncadd %s3481, %s3489
          %s3491 = smul.addr %s33, 16
          %s3492 = smul.addr %s3491, 128
          %s3493 = scalar_lea.hbm %s11, %s3492
          %s3494 = sshll.u32 %s3484, 4
          %s3495 = int_to_ptr.vmem [resolvable:$true] %s3494
          %3500 = dma.vmem_to_hbm [thread:$0]  %s3495, 2048, %s3493, %s3481, 128, 128, 8
        $region96: #{tpu_custom_call.1} parent=63 // pred_fallthru
          _
      $region64: #{tpu_custom_call.1} parent=5 // pred_fallthru
        _
      %p3501 = scmp.le.s32.totalorder 2, %s28
      // Predicated region
      $region97: #{tpu_custom_call.1} parent=5 // pred_check
        %p3502 = pneg %p3501
      $region98: #{tpu_custom_call.1} parent=5 // pred_check_branch
        %3504 = sbr.rel (%p3502) target = $region100
      $region99: #{tpu_custom_call.1} parent=5 // pred_region
        %s3505 = ssub.s32 %s28, 2
        // Predicated region
        $region101: #{tpu_custom_call.1} parent=99 // pred_check
          %p3506 = pneg %p303
        $region102: #{tpu_custom_call.1} parent=99 // pred_check_branch
          %3508 = sbr.rel (%p3506) target = $region104
        $region103: #{tpu_custom_call.1} parent=99 // pred_region
          %s3509 = sand.u32 %s288, 1
          %s3510 = scalar_lea.sflag [#allocation4], %s3509
          %s3511 = sand.u32 %s288, 1
          %s3512 = smul.addr %s3511, 128
          %s3513 = scalar_lea.vmem [#allocation14], %s3512
          %3514 = dma.done %s3510, 2048
        $region104: #{tpu_custom_call.1} parent=99 // pred_fallthru
          _
      $region100: #{tpu_custom_call.1} parent=5 // pred_fallthru
        _
    $region6: #{tpu_custom_call.1} parent=1 // loop_footer
      %s32 = sadd.s32 1, %s28
    $region7: #{tpu_custom_call.1} parent=1 // loop_footer_branch
      %27 = sbr.rel target = $region3
    $region8: #{tpu_custom_call.1} parent=1 // loop_exit
      _
    %3515 = vsyncpa [#allocation3], 1
    %s3516 = scalar_lea.sflag [#allocation3], 1
    %3517 = vsyncpa %s3516, 1
    %3518 = vsyncpa [#allocation6], 1
    %s3519 = scalar_lea.sflag [#allocation6], 1
    %3520 = vsyncpa %s3519, 1
    %3521 = vsyncpa [#allocation9], 1
    %3522 = vsyncpa [#allocation12], 1
    %3523 = vsyncpa [#allocation4], 1
    %s3524 = scalar_lea.sflag [#allocation4], 1
    %3525 = vsyncpa %s3524, 1

</llo_original>
